<compile_context>
chip_gen: v7x
topology: tpu7x:2x2x1
jax: 0.10.0
libtpu: 0.0.40
codegen_flags: <defaults>
</compile_context>

<pallas_src>
import functools
import math

import jax
import jax.numpy as jnp
from jax import lax
from jax.experimental import pallas as pl
from jax.experimental.pallas import tpu as pltpu


# -----------------------------------------------------------------------------
# Input preprocessing (plain JAX glue: normalization, player select, one-hot, concat)
# -----------------------------------------------------------------------------
def _preprocess(current_step_seq, observed_node_owners, actions_seq, *,
                num_nodes, num_steps, player_type):
    step_norm = (current_step_seq.astype(jnp.float32) / num_steps)[..., None]   # (B,S,1)
    owners = observed_node_owners[..., player_type, :, :].astype(jnp.float32)   # (B,S,N)
    acts = (actions_seq[..., player_type, :] + 1).astype(jnp.int32)             # (B,S)
    acts_oh = jax.nn.one_hot(acts, num_nodes * 2 + 1, dtype=jnp.float32)        # (B,S,2N+1)
    return jnp.concatenate([step_norm, owners, acts_oh], axis=-1)               # (B,S,3N+2)


# -----------------------------------------------------------------------------
# Fused backbone kernel. One grid step = one batch element; all layers run inside.
# -----------------------------------------------------------------------------
def _backbone_kernel(
    x_ref, we_ref, be_ref, pos_ref, mask_ref,
    wqkv_ref, bqkv_ref, wo_ref, bo_ref,
    w1_ref, b1_ref, w2_ref, b2_ref,
    ln1w_ref, ln1b_ref, ln2w_ref, ln2b_ref,
    out_ref,
    *, seq_len, emb, num_heads, head_dim, num_layers, eps):
    S, E, Dh = seq_len, emb, head_dim
    f32 = jnp.float32
    bf16 = jnp.bfloat16

    # ---- observation embedding + positional encoding ----
    x = x_ref[0].astype(bf16)                                            # (S, F)
    h = jnp.dot(x, we_ref[...], preferred_element_type=f32) + be_ref[...]
    h = jnp.maximum(h, 0.0) + pos_ref[...]                               # (S, E) f32

    mask_bias = mask_ref[...]                                            # (S, S) f32
    scale = jnp.float32(1.0 / math.sqrt(Dh))

    for l in range(num_layers):                                          # static unroll
        wqkv = wqkv_ref[l]                                               # (E, 3E) bf16
        wo = wo_ref[l]                                                   # (E, E)  bf16

        # ---- causal multi-head self-attention ----
        qkv = jnp.dot(h.astype(bf16), wqkv,
                      preferred_element_type=f32) + bqkv_ref[l]          # (S, 3E) f32

        attn = None
        for hd in range(num_heads):
            lo = hd * Dh
            qh = qkv[:, lo:lo + Dh]
            kh = qkv[:, E + lo:E + lo + Dh]
            vh = qkv[:, 2 * E + lo:2 * E + lo + Dh]
            s = lax.dot_general(qh, kh, (((1,), (1,)), ((), ())),
                                preferred_element_type=f32) * scale      # (S, S)
            s = s + mask_bias
            s = s - jnp.max(s, axis=-1, keepdims=True)
            p = jnp.exp(s)
            p = p * pl.reciprocal(jnp.sum(p, axis=-1, keepdims=True), approx=True)
            ctx_h = jnp.dot(p, vh, preferred_element_type=f32)           # (S, Dh)
            # concat(heads) @ Wo  ==  sum_h ctx_h @ Wo[h-th row block]
            part = jnp.dot(ctx_h.astype(bf16), wo[lo:lo + Dh, :],
                           preferred_element_type=f32)                   # (S, E)
            attn = part if attn is None else attn + part
        attn = attn + bo_ref[l]

        # residual + LayerNorm1 (norm_first=False) — f32 statistics
        y = h + attn
        mu = jnp.mean(y, axis=-1, keepdims=True)
        var = jnp.mean((y - mu) ** 2, axis=-1, keepdims=True)
        y = (y - mu) * lax.rsqrt(var + eps) * ln1w_ref[l] + ln1b_ref[l]

        # ---- feed-forward (ReLU) ----
        f = jnp.dot(y.astype(bf16), w1_ref[l], preferred_element_type=f32) + b1_ref[l]
        f = jnp.maximum(f, 0.0)
        f = jnp.dot(f.astype(bf16), w2_ref[l], preferred_element_type=f32) + b2_ref[l]

        # residual + LayerNorm2
        z = y + f
        mu2 = jnp.mean(z, axis=-1, keepdims=True)
        var2 = jnp.mean((z - mu2) ** 2, axis=-1, keepdims=True)
        h = (z - mu2) * lax.rsqrt(var2 + eps) * ln2w_ref[l] + ln2b_ref[l]

    # Emit only the final timestep (matches output_sequence[..., -1, :]).
    out_ref[0] = h[S - 1:S, :].astype(out_ref.dtype)


# -----------------------------------------------------------------------------
# Wrapper: preprocess inputs, launch fused kernel
# -----------------------------------------------------------------------------
def backbone_transformer_forward(params, current_step_seq, observed_node_owners,
                                 actions_seq, *, num_nodes, num_steps,
                                 player_type, num_heads):
    expanded = False
    if current_step_seq.ndim == 1:
        expanded = True
        current_step_seq = current_step_seq[None]
        observed_node_owners = observed_node_owners[None]
        actions_seq = actions_seq[None]

    x = _preprocess(current_step_seq, observed_node_owners, actions_seq,
                    num_nodes=num_nodes, num_steps=num_steps,
                    player_type=player_type)
    B, S, F = x.shape
    E = params["we_t"].shape[1]
    L = params["wqkv"].shape[0]
    Dff = params["w1"].shape[2]
    head_dim = E // num_heads

    # Precomputed causal-mask additive bias (hoisted out of the kernel).
    qi = jnp.arange(S)[:, None]
    ki = jnp.arange(S)[None, :]
    mask_bias = jnp.where(ki > qi, -1e30, 0.0).astype(jnp.float32)       # (S, S)

    bf16 = jnp.bfloat16
    we = params["we_t"].astype(bf16)
    wqkv = params["wqkv"].astype(bf16)
    wo = params["wo"].astype(bf16)
    w1 = params["w1"].astype(bf16)
    w2 = params["w2"].astype(bf16)

    kernel = functools.partial(_backbone_kernel, seq_len=S, emb=E,
                               num_heads=num_heads, head_dim=head_dim,
                               num_layers=L, eps=1e-5)

    const2 = lambda b: (0, 0)
    const3 = lambda b: (0, 0, 0)

    out = pl.pallas_call(
        kernel,
        out_shape=jax.ShapeDtypeStruct((B, 1, E), jnp.float32),
        grid=(B,),
        in_specs=[
            pl.BlockSpec((1, S, F), lambda b: (b, 0, 0)),      # x (per-batch block)
            pl.BlockSpec((F, E), const2),                      # We (pre-transposed, bf16)
            pl.BlockSpec((1, E), const2),                      # be
            pl.BlockSpec((S, E), const2),                      # positional table
            pl.BlockSpec((S, S), const2),                      # causal mask bias
            pl.BlockSpec((L, E, 3 * E), const3),               # Wqkv stack (resident)
            pl.BlockSpec((L, 1, 3 * E), const3),               # bqkv stack
            pl.BlockSpec((L, E, E), const3),                   # Wo stack
            pl.BlockSpec((L, 1, E), const3),                   # bo stack
            pl.BlockSpec((L, E, Dff), const3),                 # W1 stack
            pl.BlockSpec((L, 1, Dff), const3),                 # b1 stack
            pl.BlockSpec((L, Dff, E), const3),                 # W2 stack
            pl.BlockSpec((L, 1, E), const3),                   # b2 stack
            pl.BlockSpec((L, 1, E), const3),                   # ln1 weight stack
            pl.BlockSpec((L, 1, E), const3),                   # ln1 bias stack
            pl.BlockSpec((L, 1, E), const3),                   # ln2 weight stack
            pl.BlockSpec((L, 1, E), const3),                   # ln2 bias stack
        ],
        out_specs=pl.BlockSpec((1, 1, E), lambda b: (b, 0, 0)),
        compiler_params=pltpu.CompilerParams(
            dimension_semantics=("parallel",),
            vmem_limit_bytes=32 * 1024 * 1024),
    )(x, we, params["be"], params["pos"], mask_bias,
      wqkv, params["bqkv"], wo, params["bo"],
      w1, params["b1"], w2, params["b2"],
      params["ln1w"], params["ln1b"], params["ln2w"], params["ln2b"])

    out = out[:, 0, :]
    if expanded:
        out = out[0]
    return out


# -----------------------------------------------------------------------------
# Parameter init (deterministic, already in kernel layout: (in, out), per-layer stacked)
# -----------------------------------------------------------------------------
def init_params(key, *, in_features, embedding_size, seq_len, num_layers,
                dim_feedforward):
    E, L, Dff = embedding_size, num_layers, dim_feedforward
    ks = jax.random.split(key, 11)

    def uni(k, shape, fan_in):
        bound = 1.0 / math.sqrt(fan_in)
        return jax.random.uniform(k, shape, minval=-bound, maxval=bound,
                                  dtype=jnp.float32)

    return {
        "we_t": uni(ks[0], (in_features, E), in_features),
        "be":   uni(ks[1], (1, E), in_features),
        "pos":  jax.random.normal(ks[2], (seq_len, E), dtype=jnp.float32),
        "wqkv": uni(ks[3], (L, E, 3 * E), E),
        "bqkv": uni(ks[4], (L, 1, 3 * E), E),
        "wo":   uni(ks[5], (L, E, E), E),
        "bo":   uni(ks[6], (L, 1, E), E),
        "w1":   uni(ks[7], (L, E, Dff), E),
        "b1":   uni(ks[8], (L, 1, Dff), E),
        "w2":   uni(ks[9], (L, Dff, E), Dff),
        "b2":   uni(ks[10], (L, 1, E), Dff),
        "ln1w": jnp.ones((L, 1, E), jnp.float32),
        "ln1b": jnp.zeros((L, 1, E), jnp.float32),
        "ln2w": jnp.ones((L, 1, E), jnp.float32),
        "ln2b": jnp.zeros((L, 1, E), jnp.float32),
    }


# -----------------------------------------------------------------------------
# Pure-JAX reference with identical math / parameters (f32)
# -----------------------------------------------------------------------------
def _reference_forward(params, x, *, num_heads, eps=1e-5):
    B, S, _ = x.shape
    E = params["we_t"].shape[1]
    L = params["wqkv"].shape[0]
    Dh = E // num_heads

    h = jnp.maximum(jnp.einsum("bsf,fe->bse", x, params["we_t"]) + params["be"][0], 0.0)
    h = h + params["pos"][None]

    qi = jnp.arange(S)[:, None]
    ki = jnp.arange(S)[None, :]
    mask_bias = jnp.where(ki > qi, -1e30, 0.0).astype(jnp.float32)

    for l in range(L):
        qkv = jnp.einsum("bse,ef->bsf", h, params["wqkv"][l]) + params["bqkv"][l][0]
        q, k, v = qkv[..., :E], qkv[..., E:2 * E], qkv[..., 2 * E:]
        qh = q.reshape(B, S, num_heads, Dh)
        kh = k.reshape(B, S, num_heads, Dh)
        vh = v.reshape(B, S, num_heads, Dh)
        s = jnp.einsum("bqhd,bkhd->bhqk", qh, kh) / jnp.sqrt(jnp.float32(Dh))
        s = s + mask_bias[None, None]
        p = jax.nn.softmax(s, axis=-1)
        ctx = jnp.einsum("bhqk,bkhd->bqhd", p, vh).reshape(B, S, E)
        attn = jnp.einsum("bse,ef->bsf", ctx, params["wo"][l]) + params["bo"][l][0]

        y = h + attn
        mu = y.mean(-1, keepdims=True)
        var = ((y - mu) ** 2).mean(-1, keepdims=True)
        y = (y - mu) * jax.lax.rsqrt(var + eps) * params["ln1w"][l][0] + params["ln1b"][l][0]

        f = jnp.maximum(jnp.einsum("bse,ef->bsf", y, params["w1"][l]) + params["b1"][l][0], 0.0)
        f = jnp.einsum("bsf,fe->bse", f, params["w2"][l]) + params["b2"][l][0]
        z = y + f
        mu2 = z.mean(-1, keepdims=True)
        var2 = ((z - mu2) ** 2).mean(-1, keepdims=True)
        h = (z - mu2) * jax.lax.rsqrt(var2 + eps) * params["ln2w"][l][0] + params["ln2b"][l][0]

    return h[:, -1, :]


if __name__ == "__main__":
    num_nodes = 10
    num_steps = 8
    seq_len = num_steps + 1                 # 9
    embedding_size = 128                    # lane-dense (multiple of 128)
    num_heads = 4
    dim_feedforward = 256                   # "d_model" arg of the torch module
    num_layers = 2
    player_type = 0
    num_players = 2
    batch = 2
    in_features = num_nodes + 1 + (num_nodes * 2 + 1)   # 32

    root = jax.random.PRNGKey(0)
    kp, k1, k2 = jax.random.split(root, 3)

    params = init_params(kp, in_features=in_features, embedding_size=embedding_size,
                         seq_len=seq_len, num_layers=num_layers,
                         dim_feedforward=dim_feedforward)

    current_step_seq = jnp.tile(jnp.arange(seq_len, dtype=jnp.float32)[None], (batch, 1))
    observed_node_owners = jax.random.randint(
        k1, (batch, num_players, seq_len, num_nodes), 0, 3).astype(jnp.float32)
    actions_seq = jax.random.randint(
        k2, (batch, num_players, seq_len), -1, 2 * num_nodes)

    out = backbone_transformer_forward(
        params, current_step_seq, observed_node_owners, actions_seq,
        num_nodes=num_nodes, num_steps=num_steps, player_type=player_type,
        num_heads=num_heads)
    out = jax.block_until_ready(out)

    x = _preprocess(current_step_seq, observed_node_owners, actions_seq,
                    num_nodes=num_nodes, num_steps=num_steps, player_type=player_type)
    ref = _reference_forward(params, x, num_heads=num_heads)

    assert out.shape == (batch, embedding_size), out.shape
    # bf16 MXU operands in the kernel vs f32 reference -> tolerance widened accordingly.
    max_err = float(jnp.max(jnp.abs(out - ref)))
    assert jnp.allclose(out, ref, atol=6e-2, rtol=6e-2), max_err

    print("KERNEL_OK")
</pallas_src>

<mosaic_0001>
module attributes {stable_mosaic.version = 11 : i64} {
  func.func @_backbone_kernel(%arg0: i32, %arg1: memref<1x9x32xf32, #tpu.memory_space<vmem>>, %arg2: memref<32x128xbf16, #tpu.memory_space<vmem>>, %arg3: memref<1x128xf32, #tpu.memory_space<vmem>>, %arg4: memref<9x128xf32, #tpu.memory_space<vmem>>, %arg5: memref<9x9xf32, #tpu.memory_space<vmem>>, %arg6: memref<2x128x384xbf16, #tpu.memory_space<vmem>>, %arg7: memref<2x1x384xf32, #tpu.memory_space<vmem>>, %arg8: memref<2x128x128xbf16, #tpu.memory_space<vmem>>, %arg9: memref<2x1x128xf32, #tpu.memory_space<vmem>>, %arg10: memref<2x128x256xbf16, #tpu.memory_space<vmem>>, %arg11: memref<2x1x256xf32, #tpu.memory_space<vmem>>, %arg12: memref<2x256x128xbf16, #tpu.memory_space<vmem>>, %arg13: memref<2x1x128xf32, #tpu.memory_space<vmem>>, %arg14: memref<2x1x128xf32, #tpu.memory_space<vmem>>, %arg15: memref<2x1x128xf32, #tpu.memory_space<vmem>>, %arg16: memref<2x1x128xf32, #tpu.memory_space<vmem>>, %arg17: memref<2x1x128xf32, #tpu.memory_space<vmem>>, %arg18: memref<1x1x128xf32, #tpu.memory_space<vmem>>) attributes {dimension_semantics = [#tpu.dimension_semantics<parallel>], iteration_bounds = array<i64: 2>, scalar_prefetch = 0 : i64, scratch_operands = 0 : i64, tpu.core_type = #tpu.core_type<tc>, window_params = [{transform_indices = @transform_0, window_bounds = array<i64: 1, 9, 32>}, {pipeline_mode = #tpu.pipeline_mode<synchronous>, transform_indices = @transform_1, window_bounds = array<i64: 32, 128>}, {pipeline_mode = #tpu.pipeline_mode<synchronous>, transform_indices = @transform_2, window_bounds = array<i64: 1, 128>}, {pipeline_mode = #tpu.pipeline_mode<synchronous>, transform_indices = @transform_3, window_bounds = array<i64: 9, 128>}, {pipeline_mode = #tpu.pipeline_mode<synchronous>, transform_indices = @transform_4, window_bounds = array<i64: 9, 9>}, {pipeline_mode = #tpu.pipeline_mode<synchronous>, transform_indices = @transform_5, window_bounds = array<i64: 2, 128, 384>}, {pipeline_mode = #tpu.pipeline_mode<synchronous>, transform_indices = @transform_6, window_bounds = array<i64: 2, 1, 384>}, {pipeline_mode = #tpu.pipeline_mode<synchronous>, transform_indices = @transform_7, window_bounds = array<i64: 2, 128, 128>}, {pipeline_mode = #tpu.pipeline_mode<synchronous>, transform_indices = @transform_8, window_bounds = array<i64: 2, 1, 128>}, {pipeline_mode = #tpu.pipeline_mode<synchronous>, transform_indices = @transform_9, window_bounds = array<i64: 2, 128, 256>}, {pipeline_mode = #tpu.pipeline_mode<synchronous>, transform_indices = @transform_10, window_bounds = array<i64: 2, 1, 256>}, {pipeline_mode = #tpu.pipeline_mode<synchronous>, transform_indices = @transform_11, window_bounds = array<i64: 2, 256, 128>}, {pipeline_mode = #tpu.pipeline_mode<synchronous>, transform_indices = @transform_12, window_bounds = array<i64: 2, 1, 128>}, {pipeline_mode = #tpu.pipeline_mode<synchronous>, transform_indices = @transform_13, window_bounds = array<i64: 2, 1, 128>}, {pipeline_mode = #tpu.pipeline_mode<synchronous>, transform_indices = @transform_14, window_bounds = array<i64: 2, 1, 128>}, {pipeline_mode = #tpu.pipeline_mode<synchronous>, transform_indices = @transform_15, window_bounds = array<i64: 2, 1, 128>}, {pipeline_mode = #tpu.pipeline_mode<synchronous>, transform_indices = @transform_16, window_bounds = array<i64: 2, 1, 128>}, {transform_indices = @transform_17, window_bounds = array<i64: 1, 1, 128>}]} {
    %c0 = arith.constant 0 : index
    %c0_0 = arith.constant 0 : index
    %c0_1 = arith.constant 0 : index
    %0 = vector.load %arg1[%c0, %c0_0, %c0_1] : memref<1x9x32xf32, #tpu.memory_space<vmem>>, vector<1x9x32xf32>
    %1 = vector.shape_cast %0 : vector<1x9x32xf32> to vector<9x32xf32>
    %2 = arith.truncf %1 : vector<9x32xf32> to vector<9x32xbf16>
    %c0_2 = arith.constant 0 : index
    %c0_3 = arith.constant 0 : index
    %3 = vector.load %arg2[%c0_2, %c0_3] : memref<32x128xbf16, #tpu.memory_space<vmem>>, vector<32x128xbf16>
    %cst = arith.constant dense<0.000000e+00> : vector<9x128xf32>
    %4 = tpu.matmul %2, %3, %cst {dimension_numbers = #tpu.dot_dimension_numbers<[1], [0], [0], [1], [0, 0, 1, 1], [], []>} : vector<9x32xbf16>, vector<32x128xbf16>, vector<9x128xf32> -> vector<9x128xf32>
    %c0_4 = arith.constant 0 : index
    %c0_5 = arith.constant 0 : index
    %5 = vector.load %arg3[%c0_4, %c0_5] : memref<1x128xf32, #tpu.memory_space<vmem>>, vector<1x128xf32>
    %6 = vector.broadcast %5 : vector<1x128xf32> to vector<9x128xf32>
    %7 = arith.addf %4, %6 : vector<9x128xf32>
    %cst_6 = arith.constant 0.000000e+00 : f32
    %8 = vector.broadcast %cst_6 : f32 to vector<9x128xf32>
    %9 = arith.maximumf %7, %8 : vector<9x128xf32>
    %c0_7 = arith.constant 0 : index
    %c0_8 = arith.constant 0 : index
    %10 = vector.load %arg4[%c0_7, %c0_8] : memref<9x128xf32, #tpu.memory_space<vmem>>, vector<9x128xf32>
    %11 = arith.addf %9, %10 : vector<9x128xf32>
    %c0_9 = arith.constant 0 : index
    %c0_10 = arith.constant 0 : index
    %12 = vector.load %arg5[%c0_9, %c0_10] : memref<9x9xf32, #tpu.memory_space<vmem>>, vector<9x9xf32>
    %c0_11 = arith.constant 0 : index
    %c0_12 = arith.constant 0 : index
    %c0_13 = arith.constant 0 : index
    %13 = vector.load %arg6[%c0_11, %c0_12, %c0_13] : memref<2x128x384xbf16, #tpu.memory_space<vmem>>, vector<1x128x384xbf16>
    %14 = vector.shape_cast %13 : vector<1x128x384xbf16> to vector<128x384xbf16>
    %c0_14 = arith.constant 0 : index
    %c0_15 = arith.constant 0 : index
    %c0_16 = arith.constant 0 : index
    %15 = vector.load %arg8[%c0_14, %c0_15, %c0_16] : memref<2x128x128xbf16, #tpu.memory_space<vmem>>, vector<1x128x128xbf16>
    %16 = vector.shape_cast %15 : vector<1x128x128xbf16> to vector<128x128xbf16>
    %17 = arith.truncf %11 : vector<9x128xf32> to vector<9x128xbf16>
    %cst_17 = arith.constant dense<0.000000e+00> : vector<9x384xf32>
    %18 = tpu.matmul %17, %14, %cst_17 {dimension_numbers = #tpu.dot_dimension_numbers<[1], [0], [0], [1], [0, 0, 1, 1], [], []>} : vector<9x128xbf16>, vector<128x384xbf16>, vector<9x384xf32> -> vector<9x384xf32>
    %c0_18 = arith.constant 0 : index
    %c0_19 = arith.constant 0 : index
    %c0_20 = arith.constant 0 : index
    %19 = vector.load %arg7[%c0_18, %c0_19, %c0_20] : memref<2x1x384xf32, #tpu.memory_space<vmem>>, vector<1x1x384xf32>
    %20 = vector.shape_cast %19 : vector<1x1x384xf32> to vector<1x384xf32>
    %21 = vector.broadcast %20 : vector<1x384xf32> to vector<9x384xf32>
    %22 = arith.addf %18, %21 : vector<9x384xf32>
    %23 = vector.extract_strided_slice %22 {offsets = [0, 0], sizes = [9, 32], strides = [1, 1]} : vector<9x384xf32> to vector<9x32xf32>
    %24 = vector.extract_strided_slice %22 {offsets = [0, 128], sizes = [9, 32], strides = [1, 1]} : vector<9x384xf32> to vector<9x32xf32>
    %25 = vector.extract_strided_slice %22 {offsets = [0, 256], sizes = [9, 32], strides = [1, 1]} : vector<9x384xf32> to vector<9x32xf32>
    %cst_21 = arith.constant dense<0.000000e+00> : vector<9x9xf32>
    %26 = tpu.matmul %23, %24, %cst_21 {dimension_numbers = #tpu.dot_dimension_numbers<[1], [1], [0], [0], [0, 0, 1, 0], [], []>} : vector<9x32xf32>, vector<9x32xf32>, vector<9x9xf32> -> vector<9x9xf32>
    %cst_22 = arith.constant 0.176776692 : f32
    %27 = vector.broadcast %cst_22 : f32 to vector<9x9xf32>
    %28 = arith.mulf %26, %27 : vector<9x9xf32>
    %29 = arith.addf %28, %12 : vector<9x9xf32>
    %cst_23 = arith.constant dense<0xFF800000> : vector<9xf32>
    %30 = vector.multi_reduction <maximumf>, %29, %cst_23 [1] : vector<9x9xf32> to vector<9xf32>
    %31 = vector.shape_cast %30 : vector<9xf32> to vector<9x1xf32>
    %32 = vector.broadcast %31 : vector<9x1xf32> to vector<9x9xf32>
    %33 = arith.subf %29, %32 : vector<9x9xf32>
    %34 = math.exp %33 : vector<9x9xf32>
    %cst_24 = arith.constant dense<0.000000e+00> : vector<9xf32>
    %35 = vector.multi_reduction <add>, %34, %cst_24 [1] : vector<9x9xf32> to vector<9xf32>
    %36 = vector.shape_cast %35 : vector<9xf32> to vector<9x1xf32>
    %37 = tpu.reciprocal %36 {approx = true} : vector<9x1xf32> -> vector<9x1xf32>
    %38 = vector.broadcast %37 : vector<9x1xf32> to vector<9x9xf32>
    %39 = arith.mulf %34, %38 : vector<9x9xf32>
    %cst_25 = arith.constant dense<0.000000e+00> : vector<9x32xf32>
    %40 = tpu.matmul %39, %25, %cst_25 {dimension_numbers = #tpu.dot_dimension_numbers<[1], [0], [0], [1], [0, 0, 1, 1], [], []>} : vector<9x9xf32>, vector<9x32xf32>, vector<9x32xf32> -> vector<9x32xf32>
    %41 = arith.truncf %40 : vector<9x32xf32> to vector<9x32xbf16>
    %42 = vector.extract_strided_slice %16 {offsets = [0, 0], sizes = [32, 128], strides = [1, 1]} : vector<128x128xbf16> to vector<32x128xbf16>
    %cst_26 = arith.constant dense<0.000000e+00> : vector<9x128xf32>
    %43 = tpu.matmul %41, %42, %cst_26 {dimension_numbers = #tpu.dot_dimension_numbers<[1], [0], [0], [1], [0, 0, 1, 1], [], []>} : vector<9x32xbf16>, vector<32x128xbf16>, vector<9x128xf32> -> vector<9x128xf32>
    %44 = vector.extract_strided_slice %22 {offsets = [0, 32], sizes = [9, 32], strides = [1, 1]} : vector<9x384xf32> to vector<9x32xf32>
    %45 = vector.extract_strided_slice %22 {offsets = [0, 160], sizes = [9, 32], strides = [1, 1]} : vector<9x384xf32> to vector<9x32xf32>
    %46 = vector.extract_strided_slice %22 {offsets = [0, 288], sizes = [9, 32], strides = [1, 1]} : vector<9x384xf32> to vector<9x32xf32>
    %cst_27 = arith.constant dense<0.000000e+00> : vector<9x9xf32>
    %47 = tpu.matmul %44, %45, %cst_27 {dimension_numbers = #tpu.dot_dimension_numbers<[1], [1], [0], [0], [0, 0, 1, 0], [], []>} : vector<9x32xf32>, vector<9x32xf32>, vector<9x9xf32> -> vector<9x9xf32>
    %cst_28 = arith.constant 0.176776692 : f32
    %48 = vector.broadcast %cst_28 : f32 to vector<9x9xf32>
    %49 = arith.mulf %47, %48 : vector<9x9xf32>
    %50 = arith.addf %49, %12 : vector<9x9xf32>
    %cst_29 = arith.constant dense<0xFF800000> : vector<9xf32>
    %51 = vector.multi_reduction <maximumf>, %50, %cst_29 [1] : vector<9x9xf32> to vector<9xf32>
    %52 = vector.shape_cast %51 : vector<9xf32> to vector<9x1xf32>
    %53 = vector.broadcast %52 : vector<9x1xf32> to vector<9x9xf32>
    %54 = arith.subf %50, %53 : vector<9x9xf32>
    %55 = math.exp %54 : vector<9x9xf32>
    %cst_30 = arith.constant dense<0.000000e+00> : vector<9xf32>
    %56 = vector.multi_reduction <add>, %55, %cst_30 [1] : vector<9x9xf32> to vector<9xf32>
    %57 = vector.shape_cast %56 : vector<9xf32> to vector<9x1xf32>
    %58 = tpu.reciprocal %57 {approx = true} : vector<9x1xf32> -> vector<9x1xf32>
    %59 = vector.broadcast %58 : vector<9x1xf32> to vector<9x9xf32>
    %60 = arith.mulf %55, %59 : vector<9x9xf32>
    %cst_31 = arith.constant dense<0.000000e+00> : vector<9x32xf32>
    %61 = tpu.matmul %60, %46, %cst_31 {dimension_numbers = #tpu.dot_dimension_numbers<[1], [0], [0], [1], [0, 0, 1, 1], [], []>} : vector<9x9xf32>, vector<9x32xf32>, vector<9x32xf32> -> vector<9x32xf32>
    %62 = arith.truncf %61 : vector<9x32xf32> to vector<9x32xbf16>
    %63 = vector.extract_strided_slice %16 {offsets = [32, 0], sizes = [32, 128], strides = [1, 1]} : vector<128x128xbf16> to vector<32x128xbf16>
    %cst_32 = arith.constant dense<0.000000e+00> : vector<9x128xf32>
    %64 = tpu.matmul %62, %63, %cst_32 {dimension_numbers = #tpu.dot_dimension_numbers<[1], [0], [0], [1], [0, 0, 1, 1], [], []>} : vector<9x32xbf16>, vector<32x128xbf16>, vector<9x128xf32> -> vector<9x128xf32>
    %65 = arith.addf %43, %64 : vector<9x128xf32>
    %66 = vector.extract_strided_slice %22 {offsets = [0, 64], sizes = [9, 32], strides = [1, 1]} : vector<9x384xf32> to vector<9x32xf32>
    %67 = vector.extract_strided_slice %22 {offsets = [0, 192], sizes = [9, 32], strides = [1, 1]} : vector<9x384xf32> to vector<9x32xf32>
    %68 = vector.extract_strided_slice %22 {offsets = [0, 320], sizes = [9, 32], strides = [1, 1]} : vector<9x384xf32> to vector<9x32xf32>
    %cst_33 = arith.constant dense<0.000000e+00> : vector<9x9xf32>
    %69 = tpu.matmul %66, %67, %cst_33 {dimension_numbers = #tpu.dot_dimension_numbers<[1], [1], [0], [0], [0, 0, 1, 0], [], []>} : vector<9x32xf32>, vector<9x32xf32>, vector<9x9xf32> -> vector<9x9xf32>
    %cst_34 = arith.constant 0.176776692 : f32
    %70 = vector.broadcast %cst_34 : f32 to vector<9x9xf32>
    %71 = arith.mulf %69, %70 : vector<9x9xf32>
    %72 = arith.addf %71, %12 : vector<9x9xf32>
    %cst_35 = arith.constant dense<0xFF800000> : vector<9xf32>
    %73 = vector.multi_reduction <maximumf>, %72, %cst_35 [1] : vector<9x9xf32> to vector<9xf32>
    %74 = vector.shape_cast %73 : vector<9xf32> to vector<9x1xf32>
    %75 = vector.broadcast %74 : vector<9x1xf32> to vector<9x9xf32>
    %76 = arith.subf %72, %75 : vector<9x9xf32>
    %77 = math.exp %76 : vector<9x9xf32>
    %cst_36 = arith.constant dense<0.000000e+00> : vector<9xf32>
    %78 = vector.multi_reduction <add>, %77, %cst_36 [1] : vector<9x9xf32> to vector<9xf32>
    %79 = vector.shape_cast %78 : vector<9xf32> to vector<9x1xf32>
    %80 = tpu.reciprocal %79 {approx = true} : vector<9x1xf32> -> vector<9x1xf32>
    %81 = vector.broadcast %80 : vector<9x1xf32> to vector<9x9xf32>
    %82 = arith.mulf %77, %81 : vector<9x9xf32>
    %cst_37 = arith.constant dense<0.000000e+00> : vector<9x32xf32>
    %83 = tpu.matmul %82, %68, %cst_37 {dimension_numbers = #tpu.dot_dimension_numbers<[1], [0], [0], [1], [0, 0, 1, 1], [], []>} : vector<9x9xf32>, vector<9x32xf32>, vector<9x32xf32> -> vector<9x32xf32>
    %84 = arith.truncf %83 : vector<9x32xf32> to vector<9x32xbf16>
    %85 = vector.extract_strided_slice %16 {offsets = [64, 0], sizes = [32, 128], strides = [1, 1]} : vector<128x128xbf16> to vector<32x128xbf16>
    %cst_38 = arith.constant dense<0.000000e+00> : vector<9x128xf32>
    %86 = tpu.matmul %84, %85, %cst_38 {dimension_numbers = #tpu.dot_dimension_numbers<[1], [0], [0], [1], [0, 0, 1, 1], [], []>} : vector<9x32xbf16>, vector<32x128xbf16>, vector<9x128xf32> -> vector<9x128xf32>
    %87 = arith.addf %65, %86 : vector<9x128xf32>
    %88 = vector.extract_strided_slice %22 {offsets = [0, 96], sizes = [9, 32], strides = [1, 1]} : vector<9x384xf32> to vector<9x32xf32>
    %89 = vector.extract_strided_slice %22 {offsets = [0, 224], sizes = [9, 32], strides = [1, 1]} : vector<9x384xf32> to vector<9x32xf32>
    %90 = vector.extract_strided_slice %22 {offsets = [0, 352], sizes = [9, 32], strides = [1, 1]} : vector<9x384xf32> to vector<9x32xf32>
    %cst_39 = arith.constant dense<0.000000e+00> : vector<9x9xf32>
    %91 = tpu.matmul %88, %89, %cst_39 {dimension_numbers = #tpu.dot_dimension_numbers<[1], [1], [0], [0], [0, 0, 1, 0], [], []>} : vector<9x32xf32>, vector<9x32xf32>, vector<9x9xf32> -> vector<9x9xf32>
    %cst_40 = arith.constant 0.176776692 : f32
    %92 = vector.broadcast %cst_40 : f32 to vector<9x9xf32>
    %93 = arith.mulf %91, %92 : vector<9x9xf32>
    %94 = arith.addf %93, %12 : vector<9x9xf32>
    %cst_41 = arith.constant dense<0xFF800000> : vector<9xf32>
    %95 = vector.multi_reduction <maximumf>, %94, %cst_41 [1] : vector<9x9xf32> to vector<9xf32>
    %96 = vector.shape_cast %95 : vector<9xf32> to vector<9x1xf32>
    %97 = vector.broadcast %96 : vector<9x1xf32> to vector<9x9xf32>
    %98 = arith.subf %94, %97 : vector<9x9xf32>
    %99 = math.exp %98 : vector<9x9xf32>
    %cst_42 = arith.constant dense<0.000000e+00> : vector<9xf32>
    %100 = vector.multi_reduction <add>, %99, %cst_42 [1] : vector<9x9xf32> to vector<9xf32>
    %101 = vector.shape_cast %100 : vector<9xf32> to vector<9x1xf32>
    %102 = tpu.reciprocal %101 {approx = true} : vector<9x1xf32> -> vector<9x1xf32>
    %103 = vector.broadcast %102 : vector<9x1xf32> to vector<9x9xf32>
    %104 = arith.mulf %99, %103 : vector<9x9xf32>
    %cst_43 = arith.constant dense<0.000000e+00> : vector<9x32xf32>
    %105 = tpu.matmul %104, %90, %cst_43 {dimension_numbers = #tpu.dot_dimension_numbers<[1], [0], [0], [1], [0, 0, 1, 1], [], []>} : vector<9x9xf32>, vector<9x32xf32>, vector<9x32xf32> -> vector<9x32xf32>
    %106 = arith.truncf %105 : vector<9x32xf32> to vector<9x32xbf16>
    %107 = vector.extract_strided_slice %16 {offsets = [96, 0], sizes = [32, 128], strides = [1, 1]} : vector<128x128xbf16> to vector<32x128xbf16>
    %cst_44 = arith.constant dense<0.000000e+00> : vector<9x128xf32>
    %108 = tpu.matmul %106, %107, %cst_44 {dimension_numbers = #tpu.dot_dimension_numbers<[1], [0], [0], [1], [0, 0, 1, 1], [], []>} : vector<9x32xbf16>, vector<32x128xbf16>, vector<9x128xf32> -> vector<9x128xf32>
    %109 = arith.addf %87, %108 : vector<9x128xf32>
    %c0_45 = arith.constant 0 : index
    %c0_46 = arith.constant 0 : index
    %c0_47 = arith.constant 0 : index
    %110 = vector.load %arg9[%c0_45, %c0_46, %c0_47] : memref<2x1x128xf32, #tpu.memory_space<vmem>>, vector<1x1x128xf32>
    %111 = vector.shape_cast %110 : vector<1x1x128xf32> to vector<1x128xf32>
    %112 = vector.broadcast %111 : vector<1x128xf32> to vector<9x128xf32>
    %113 = arith.addf %109, %112 : vector<9x128xf32>
    %114 = arith.addf %11, %113 : vector<9x128xf32>
    %cst_48 = arith.constant dense<0.000000e+00> : vector<9xf32>
    %115 = vector.multi_reduction <add>, %114, %cst_48 [1] : vector<9x128xf32> to vector<9xf32>
    %116 = vector.shape_cast %115 : vector<9xf32> to vector<9x1xf32>
    %cst_49 = arith.constant 1.280000e+02 : f32
    %117 = vector.broadcast %cst_49 : f32 to vector<9x1xf32>
    %118 = arith.divf %116, %117 : vector<9x1xf32>
    %119 = vector.broadcast %118 : vector<9x1xf32> to vector<9x128xf32>
    %120 = arith.subf %114, %119 : vector<9x128xf32>
    %121 = arith.mulf %120, %120 : vector<9x128xf32>
    %cst_50 = arith.constant dense<0.000000e+00> : vector<9xf32>
    %122 = vector.multi_reduction <add>, %121, %cst_50 [1] : vector<9x128xf32> to vector<9xf32>
    %123 = vector.shape_cast %122 : vector<9xf32> to vector<9x1xf32>
    %cst_51 = arith.constant 1.280000e+02 : f32
    %124 = vector.broadcast %cst_51 : f32 to vector<9x1xf32>
    %125 = arith.divf %123, %124 : vector<9x1xf32>
    %126 = vector.broadcast %118 : vector<9x1xf32> to vector<9x128xf32>
    %127 = arith.subf %114, %126 : vector<9x128xf32>
    %cst_52 = arith.constant 9.99999974E-6 : f32
    %128 = vector.broadcast %cst_52 : f32 to vector<9x1xf32>
    %129 = arith.addf %125, %128 : vector<9x1xf32>
    %130 = math.rsqrt %129 : vector<9x1xf32>
    %131 = vector.broadcast %130 : vector<9x1xf32> to vector<9x128xf32>
    %132 = arith.mulf %127, %131 : vector<9x128xf32>
    %c0_53 = arith.constant 0 : index
    %c0_54 = arith.constant 0 : index
    %c0_55 = arith.constant 0 : index
    %133 = vector.load %arg14[%c0_53, %c0_54, %c0_55] : memref<2x1x128xf32, #tpu.memory_space<vmem>>, vector<1x1x128xf32>
    %134 = vector.shape_cast %133 : vector<1x1x128xf32> to vector<1x128xf32>
    %135 = vector.broadcast %134 : vector<1x128xf32> to vector<9x128xf32>
    %136 = arith.mulf %132, %135 : vector<9x128xf32>
    %c0_56 = arith.constant 0 : index
    %c0_57 = arith.constant 0 : index
    %c0_58 = arith.constant 0 : index
    %137 = vector.load %arg15[%c0_56, %c0_57, %c0_58] : memref<2x1x128xf32, #tpu.memory_space<vmem>>, vector<1x1x128xf32>
    %138 = vector.shape_cast %137 : vector<1x1x128xf32> to vector<1x128xf32>
    %139 = vector.broadcast %138 : vector<1x128xf32> to vector<9x128xf32>
    %140 = arith.addf %136, %139 : vector<9x128xf32>
    %141 = arith.truncf %140 : vector<9x128xf32> to vector<9x128xbf16>
    %c0_59 = arith.constant 0 : index
    %c0_60 = arith.constant 0 : index
    %c0_61 = arith.constant 0 : index
    %142 = vector.load %arg10[%c0_59, %c0_60, %c0_61] : memref<2x128x256xbf16, #tpu.memory_space<vmem>>, vector<1x128x256xbf16>
    %143 = vector.shape_cast %142 : vector<1x128x256xbf16> to vector<128x256xbf16>
    %cst_62 = arith.constant dense<0.000000e+00> : vector<9x256xf32>
    %144 = tpu.matmul %141, %143, %cst_62 {dimension_numbers = #tpu.dot_dimension_numbers<[1], [0], [0], [1], [0, 0, 1, 1], [], []>} : vector<9x128xbf16>, vector<128x256xbf16>, vector<9x256xf32> -> vector<9x256xf32>
    %c0_63 = arith.constant 0 : index
    %c0_64 = arith.constant 0 : index
    %c0_65 = arith.constant 0 : index
    %145 = vector.load %arg11[%c0_63, %c0_64, %c0_65] : memref<2x1x256xf32, #tpu.memory_space<vmem>>, vector<1x1x256xf32>
    %146 = vector.shape_cast %145 : vector<1x1x256xf32> to vector<1x256xf32>
    %147 = vector.broadcast %146 : vector<1x256xf32> to vector<9x256xf32>
    %148 = arith.addf %144, %147 : vector<9x256xf32>
    %cst_66 = arith.constant 0.000000e+00 : f32
    %149 = vector.broadcast %cst_66 : f32 to vector<9x256xf32>
    %150 = arith.maximumf %148, %149 : vector<9x256xf32>
    %151 = arith.truncf %150 : vector<9x256xf32> to vector<9x256xbf16>
    %c0_67 = arith.constant 0 : index
    %c0_68 = arith.constant 0 : index
    %c0_69 = arith.constant 0 : index
    %152 = vector.load %arg12[%c0_67, %c0_68, %c0_69] : memref<2x256x128xbf16, #tpu.memory_space<vmem>>, vector<1x256x128xbf16>
    %153 = vector.shape_cast %152 : vector<1x256x128xbf16> to vector<256x128xbf16>
    %cst_70 = arith.constant dense<0.000000e+00> : vector<9x128xf32>
    %154 = tpu.matmul %151, %153, %cst_70 {dimension_numbers = #tpu.dot_dimension_numbers<[1], [0], [0], [1], [0, 0, 1, 1], [], []>} : vector<9x256xbf16>, vector<256x128xbf16>, vector<9x128xf32> -> vector<9x128xf32>
    %c0_71 = arith.constant 0 : index
    %c0_72 = arith.constant 0 : index
    %c0_73 = arith.constant 0 : index
    %155 = vector.load %arg13[%c0_71, %c0_72, %c0_73] : memref<2x1x128xf32, #tpu.memory_space<vmem>>, vector<1x1x128xf32>
    %156 = vector.shape_cast %155 : vector<1x1x128xf32> to vector<1x128xf32>
    %157 = vector.broadcast %156 : vector<1x128xf32> to vector<9x128xf32>
    %158 = arith.addf %154, %157 : vector<9x128xf32>
    %159 = arith.addf %140, %158 : vector<9x128xf32>
    %cst_74 = arith.constant dense<0.000000e+00> : vector<9xf32>
    %160 = vector.multi_reduction <add>, %159, %cst_74 [1] : vector<9x128xf32> to vector<9xf32>
    %161 = vector.shape_cast %160 : vector<9xf32> to vector<9x1xf32>
    %cst_75 = arith.constant 1.280000e+02 : f32
    %162 = vector.broadcast %cst_75 : f32 to vector<9x1xf32>
    %163 = arith.divf %161, %162 : vector<9x1xf32>
    %164 = vector.broadcast %163 : vector<9x1xf32> to vector<9x128xf32>
    %165 = arith.subf %159, %164 : vector<9x128xf32>
    %166 = arith.mulf %165, %165 : vector<9x128xf32>
    %cst_76 = arith.constant dense<0.000000e+00> : vector<9xf32>
    %167 = vector.multi_reduction <add>, %166, %cst_76 [1] : vector<9x128xf32> to vector<9xf32>
    %168 = vector.shape_cast %167 : vector<9xf32> to vector<9x1xf32>
    %cst_77 = arith.constant 1.280000e+02 : f32
    %169 = vector.broadcast %cst_77 : f32 to vector<9x1xf32>
    %170 = arith.divf %168, %169 : vector<9x1xf32>
    %171 = vector.broadcast %163 : vector<9x1xf32> to vector<9x128xf32>
    %172 = arith.subf %159, %171 : vector<9x128xf32>
    %cst_78 = arith.constant 9.99999974E-6 : f32
    %173 = vector.broadcast %cst_78 : f32 to vector<9x1xf32>
    %174 = arith.addf %170, %173 : vector<9x1xf32>
    %175 = math.rsqrt %174 : vector<9x1xf32>
    %176 = vector.broadcast %175 : vector<9x1xf32> to vector<9x128xf32>
    %177 = arith.mulf %172, %176 : vector<9x128xf32>
    %c0_79 = arith.constant 0 : index
    %c0_80 = arith.constant 0 : index
    %c0_81 = arith.constant 0 : index
    %178 = vector.load %arg16[%c0_79, %c0_80, %c0_81] : memref<2x1x128xf32, #tpu.memory_space<vmem>>, vector<1x1x128xf32>
    %179 = vector.shape_cast %178 : vector<1x1x128xf32> to vector<1x128xf32>
    %180 = vector.broadcast %179 : vector<1x128xf32> to vector<9x128xf32>
    %181 = arith.mulf %177, %180 : vector<9x128xf32>
    %c0_82 = arith.constant 0 : index
    %c0_83 = arith.constant 0 : index
    %c0_84 = arith.constant 0 : index
    %182 = vector.load %arg17[%c0_82, %c0_83, %c0_84] : memref<2x1x128xf32, #tpu.memory_space<vmem>>, vector<1x1x128xf32>
    %183 = vector.shape_cast %182 : vector<1x1x128xf32> to vector<1x128xf32>
    %184 = vector.broadcast %183 : vector<1x128xf32> to vector<9x128xf32>
    %185 = arith.addf %181, %184 : vector<9x128xf32>
    %c1 = arith.constant 1 : index
    %c0_85 = arith.constant 0 : index
    %c0_86 = arith.constant 0 : index
    %186 = vector.load %arg6[%c1, %c0_85, %c0_86] : memref<2x128x384xbf16, #tpu.memory_space<vmem>>, vector<1x128x384xbf16>
    %187 = vector.shape_cast %186 : vector<1x128x384xbf16> to vector<128x384xbf16>
    %c1_87 = arith.constant 1 : index
    %c0_88 = arith.constant 0 : index
    %c0_89 = arith.constant 0 : index
    %188 = vector.load %arg8[%c1_87, %c0_88, %c0_89] : memref<2x128x128xbf16, #tpu.memory_space<vmem>>, vector<1x128x128xbf16>
    %189 = vector.shape_cast %188 : vector<1x128x128xbf16> to vector<128x128xbf16>
    %190 = arith.truncf %185 : vector<9x128xf32> to vector<9x128xbf16>
    %cst_90 = arith.constant dense<0.000000e+00> : vector<9x384xf32>
    %191 = tpu.matmul %190, %187, %cst_90 {dimension_numbers = #tpu.dot_dimension_numbers<[1], [0], [0], [1], [0, 0, 1, 1], [], []>} : vector<9x128xbf16>, vector<128x384xbf16>, vector<9x384xf32> -> vector<9x384xf32>
    %c1_91 = arith.constant 1 : index
    %c0_92 = arith.constant 0 : index
    %c0_93 = arith.constant 0 : index
    %192 = vector.load %arg7[%c1_91, %c0_92, %c0_93] : memref<2x1x384xf32, #tpu.memory_space<vmem>>, vector<1x1x384xf32>
    %193 = vector.shape_cast %192 : vector<1x1x384xf32> to vector<1x384xf32>
    %194 = vector.broadcast %193 : vector<1x384xf32> to vector<9x384xf32>
    %195 = arith.addf %191, %194 : vector<9x384xf32>
    %196 = vector.extract_strided_slice %195 {offsets = [0, 0], sizes = [9, 32], strides = [1, 1]} : vector<9x384xf32> to vector<9x32xf32>
    %197 = vector.extract_strided_slice %195 {offsets = [0, 128], sizes = [9, 32], strides = [1, 1]} : vector<9x384xf32> to vector<9x32xf32>
    %198 = vector.extract_strided_slice %195 {offsets = [0, 256], sizes = [9, 32], strides = [1, 1]} : vector<9x384xf32> to vector<9x32xf32>
    %cst_94 = arith.constant dense<0.000000e+00> : vector<9x9xf32>
    %199 = tpu.matmul %196, %197, %cst_94 {dimension_numbers = #tpu.dot_dimension_numbers<[1], [1], [0], [0], [0, 0, 1, 0], [], []>} : vector<9x32xf32>, vector<9x32xf32>, vector<9x9xf32> -> vector<9x9xf32>
    %cst_95 = arith.constant 0.176776692 : f32
    %200 = vector.broadcast %cst_95 : f32 to vector<9x9xf32>
    %201 = arith.mulf %199, %200 : vector<9x9xf32>
    %202 = arith.addf %201, %12 : vector<9x9xf32>
    %cst_96 = arith.constant dense<0xFF800000> : vector<9xf32>
    %203 = vector.multi_reduction <maximumf>, %202, %cst_96 [1] : vector<9x9xf32> to vector<9xf32>
    %204 = vector.shape_cast %203 : vector<9xf32> to vector<9x1xf32>
    %205 = vector.broadcast %204 : vector<9x1xf32> to vector<9x9xf32>
    %206 = arith.subf %202, %205 : vector<9x9xf32>
    %207 = math.exp %206 : vector<9x9xf32>
    %cst_97 = arith.constant dense<0.000000e+00> : vector<9xf32>
    %208 = vector.multi_reduction <add>, %207, %cst_97 [1] : vector<9x9xf32> to vector<9xf32>
    %209 = vector.shape_cast %208 : vector<9xf32> to vector<9x1xf32>
    %210 = tpu.reciprocal %209 {approx = true} : vector<9x1xf32> -> vector<9x1xf32>
    %211 = vector.broadcast %210 : vector<9x1xf32> to vector<9x9xf32>
    %212 = arith.mulf %207, %211 : vector<9x9xf32>
    %cst_98 = arith.constant dense<0.000000e+00> : vector<9x32xf32>
    %213 = tpu.matmul %212, %198, %cst_98 {dimension_numbers = #tpu.dot_dimension_numbers<[1], [0], [0], [1], [0, 0, 1, 1], [], []>} : vector<9x9xf32>, vector<9x32xf32>, vector<9x32xf32> -> vector<9x32xf32>
    %214 = arith.truncf %213 : vector<9x32xf32> to vector<9x32xbf16>
    %215 = vector.extract_strided_slice %189 {offsets = [0, 0], sizes = [32, 128], strides = [1, 1]} : vector<128x128xbf16> to vector<32x128xbf16>
    %cst_99 = arith.constant dense<0.000000e+00> : vector<9x128xf32>
    %216 = tpu.matmul %214, %215, %cst_99 {dimension_numbers = #tpu.dot_dimension_numbers<[1], [0], [0], [1], [0, 0, 1, 1], [], []>} : vector<9x32xbf16>, vector<32x128xbf16>, vector<9x128xf32> -> vector<9x128xf32>
    %217 = vector.extract_strided_slice %195 {offsets = [0, 32], sizes = [9, 32], strides = [1, 1]} : vector<9x384xf32> to vector<9x32xf32>
    %218 = vector.extract_strided_slice %195 {offsets = [0, 160], sizes = [9, 32], strides = [1, 1]} : vector<9x384xf32> to vector<9x32xf32>
    %219 = vector.extract_strided_slice %195 {offsets = [0, 288], sizes = [9, 32], strides = [1, 1]} : vector<9x384xf32> to vector<9x32xf32>
    %cst_100 = arith.constant dense<0.000000e+00> : vector<9x9xf32>
    %220 = tpu.matmul %217, %218, %cst_100 {dimension_numbers = #tpu.dot_dimension_numbers<[1], [1], [0], [0], [0, 0, 1, 0], [], []>} : vector<9x32xf32>, vector<9x32xf32>, vector<9x9xf32> -> vector<9x9xf32>
    %cst_101 = arith.constant 0.176776692 : f32
    %221 = vector.broadcast %cst_101 : f32 to vector<9x9xf32>
    %222 = arith.mulf %220, %221 : vector<9x9xf32>
    %223 = arith.addf %222, %12 : vector<9x9xf32>
    %cst_102 = arith.constant dense<0xFF800000> : vector<9xf32>
    %224 = vector.multi_reduction <maximumf>, %223, %cst_102 [1] : vector<9x9xf32> to vector<9xf32>
    %225 = vector.shape_cast %224 : vector<9xf32> to vector<9x1xf32>
    %226 = vector.broadcast %225 : vector<9x1xf32> to vector<9x9xf32>
    %227 = arith.subf %223, %226 : vector<9x9xf32>
    %228 = math.exp %227 : vector<9x9xf32>
    %cst_103 = arith.constant dense<0.000000e+00> : vector<9xf32>
    %229 = vector.multi_reduction <add>, %228, %cst_103 [1] : vector<9x9xf32> to vector<9xf32>
    %230 = vector.shape_cast %229 : vector<9xf32> to vector<9x1xf32>
    %231 = tpu.reciprocal %230 {approx = true} : vector<9x1xf32> -> vector<9x1xf32>
    %232 = vector.broadcast %231 : vector<9x1xf32> to vector<9x9xf32>
    %233 = arith.mulf %228, %232 : vector<9x9xf32>
    %cst_104 = arith.constant dense<0.000000e+00> : vector<9x32xf32>
    %234 = tpu.matmul %233, %219, %cst_104 {dimension_numbers = #tpu.dot_dimension_numbers<[1], [0], [0], [1], [0, 0, 1, 1], [], []>} : vector<9x9xf32>, vector<9x32xf32>, vector<9x32xf32> -> vector<9x32xf32>
    %235 = arith.truncf %234 : vector<9x32xf32> to vector<9x32xbf16>
    %236 = vector.extract_strided_slice %189 {offsets = [32, 0], sizes = [32, 128], strides = [1, 1]} : vector<128x128xbf16> to vector<32x128xbf16>
    %cst_105 = arith.constant dense<0.000000e+00> : vector<9x128xf32>
    %237 = tpu.matmul %235, %236, %cst_105 {dimension_numbers = #tpu.dot_dimension_numbers<[1], [0], [0], [1], [0, 0, 1, 1], [], []>} : vector<9x32xbf16>, vector<32x128xbf16>, vector<9x128xf32> -> vector<9x128xf32>
    %238 = arith.addf %216, %237 : vector<9x128xf32>
    %239 = vector.extract_strided_slice %195 {offsets = [0, 64], sizes = [9, 32], strides = [1, 1]} : vector<9x384xf32> to vector<9x32xf32>
    %240 = vector.extract_strided_slice %195 {offsets = [0, 192], sizes = [9, 32], strides = [1, 1]} : vector<9x384xf32> to vector<9x32xf32>
    %241 = vector.extract_strided_slice %195 {offsets = [0, 320], sizes = [9, 32], strides = [1, 1]} : vector<9x384xf32> to vector<9x32xf32>
    %cst_106 = arith.constant dense<0.000000e+00> : vector<9x9xf32>
    %242 = tpu.matmul %239, %240, %cst_106 {dimension_numbers = #tpu.dot_dimension_numbers<[1], [1], [0], [0], [0, 0, 1, 0], [], []>} : vector<9x32xf32>, vector<9x32xf32>, vector<9x9xf32> -> vector<9x9xf32>
    %cst_107 = arith.constant 0.176776692 : f32
    %243 = vector.broadcast %cst_107 : f32 to vector<9x9xf32>
    %244 = arith.mulf %242, %243 : vector<9x9xf32>
    %245 = arith.addf %244, %12 : vector<9x9xf32>
    %cst_108 = arith.constant dense<0xFF800000> : vector<9xf32>
    %246 = vector.multi_reduction <maximumf>, %245, %cst_108 [1] : vector<9x9xf32> to vector<9xf32>
    %247 = vector.shape_cast %246 : vector<9xf32> to vector<9x1xf32>
    %248 = vector.broadcast %247 : vector<9x1xf32> to vector<9x9xf32>
    %249 = arith.subf %245, %248 : vector<9x9xf32>
    %250 = math.exp %249 : vector<9x9xf32>
    %cst_109 = arith.constant dense<0.000000e+00> : vector<9xf32>
    %251 = vector.multi_reduction <add>, %250, %cst_109 [1] : vector<9x9xf32> to vector<9xf32>
    %252 = vector.shape_cast %251 : vector<9xf32> to vector<9x1xf32>
    %253 = tpu.reciprocal %252 {approx = true} : vector<9x1xf32> -> vector<9x1xf32>
    %254 = vector.broadcast %253 : vector<9x1xf32> to vector<9x9xf32>
    %255 = arith.mulf %250, %254 : vector<9x9xf32>
    %cst_110 = arith.constant dense<0.000000e+00> : vector<9x32xf32>
    %256 = tpu.matmul %255, %241, %cst_110 {dimension_numbers = #tpu.dot_dimension_numbers<[1], [0], [0], [1], [0, 0, 1, 1], [], []>} : vector<9x9xf32>, vector<9x32xf32>, vector<9x32xf32> -> vector<9x32xf32>
    %257 = arith.truncf %256 : vector<9x32xf32> to vector<9x32xbf16>
    %258 = vector.extract_strided_slice %189 {offsets = [64, 0], sizes = [32, 128], strides = [1, 1]} : vector<128x128xbf16> to vector<32x128xbf16>
    %cst_111 = arith.constant dense<0.000000e+00> : vector<9x128xf32>
    %259 = tpu.matmul %257, %258, %cst_111 {dimension_numbers = #tpu.dot_dimension_numbers<[1], [0], [0], [1], [0, 0, 1, 1], [], []>} : vector<9x32xbf16>, vector<32x128xbf16>, vector<9x128xf32> -> vector<9x128xf32>
    %260 = arith.addf %238, %259 : vector<9x128xf32>
    %261 = vector.extract_strided_slice %195 {offsets = [0, 96], sizes = [9, 32], strides = [1, 1]} : vector<9x384xf32> to vector<9x32xf32>
    %262 = vector.extract_strided_slice %195 {offsets = [0, 224], sizes = [9, 32], strides = [1, 1]} : vector<9x384xf32> to vector<9x32xf32>
    %263 = vector.extract_strided_slice %195 {offsets = [0, 352], sizes = [9, 32], strides = [1, 1]} : vector<9x384xf32> to vector<9x32xf32>
    %cst_112 = arith.constant dense<0.000000e+00> : vector<9x9xf32>
    %264 = tpu.matmul %261, %262, %cst_112 {dimension_numbers = #tpu.dot_dimension_numbers<[1], [1], [0], [0], [0, 0, 1, 0], [], []>} : vector<9x32xf32>, vector<9x32xf32>, vector<9x9xf32> -> vector<9x9xf32>
    %cst_113 = arith.constant 0.176776692 : f32
    %265 = vector.broadcast %cst_113 : f32 to vector<9x9xf32>
    %266 = arith.mulf %264, %265 : vector<9x9xf32>
    %267 = arith.addf %266, %12 : vector<9x9xf32>
    %cst_114 = arith.constant dense<0xFF800000> : vector<9xf32>
    %268 = vector.multi_reduction <maximumf>, %267, %cst_114 [1] : vector<9x9xf32> to vector<9xf32>
    %269 = vector.shape_cast %268 : vector<9xf32> to vector<9x1xf32>
    %270 = vector.broadcast %269 : vector<9x1xf32> to vector<9x9xf32>
    %271 = arith.subf %267, %270 : vector<9x9xf32>
    %272 = math.exp %271 : vector<9x9xf32>
    %cst_115 = arith.constant dense<0.000000e+00> : vector<9xf32>
    %273 = vector.multi_reduction <add>, %272, %cst_115 [1] : vector<9x9xf32> to vector<9xf32>
    %274 = vector.shape_cast %273 : vector<9xf32> to vector<9x1xf32>
    %275 = tpu.reciprocal %274 {approx = true} : vector<9x1xf32> -> vector<9x1xf32>
    %276 = vector.broadcast %275 : vector<9x1xf32> to vector<9x9xf32>
    %277 = arith.mulf %272, %276 : vector<9x9xf32>
    %cst_116 = arith.constant dense<0.000000e+00> : vector<9x32xf32>
    %278 = tpu.matmul %277, %263, %cst_116 {dimension_numbers = #tpu.dot_dimension_numbers<[1], [0], [0], [1], [0, 0, 1, 1], [], []>} : vector<9x9xf32>, vector<9x32xf32>, vector<9x32xf32> -> vector<9x32xf32>
    %279 = arith.truncf %278 : vector<9x32xf32> to vector<9x32xbf16>
    %280 = vector.extract_strided_slice %189 {offsets = [96, 0], sizes = [32, 128], strides = [1, 1]} : vector<128x128xbf16> to vector<32x128xbf16>
    %cst_117 = arith.constant dense<0.000000e+00> : vector<9x128xf32>
    %281 = tpu.matmul %279, %280, %cst_117 {dimension_numbers = #tpu.dot_dimension_numbers<[1], [0], [0], [1], [0, 0, 1, 1], [], []>} : vector<9x32xbf16>, vector<32x128xbf16>, vector<9x128xf32> -> vector<9x128xf32>
    %282 = arith.addf %260, %281 : vector<9x128xf32>
    %c1_118 = arith.constant 1 : index
    %c0_119 = arith.constant 0 : index
    %c0_120 = arith.constant 0 : index
    %283 = vector.load %arg9[%c1_118, %c0_119, %c0_120] : memref<2x1x128xf32, #tpu.memory_space<vmem>>, vector<1x1x128xf32>
    %284 = vector.shape_cast %283 : vector<1x1x128xf32> to vector<1x128xf32>
    %285 = vector.broadcast %284 : vector<1x128xf32> to vector<9x128xf32>
    %286 = arith.addf %282, %285 : vector<9x128xf32>
    %287 = arith.addf %185, %286 : vector<9x128xf32>
    %cst_121 = arith.constant dense<0.000000e+00> : vector<9xf32>
    %288 = vector.multi_reduction <add>, %287, %cst_121 [1] : vector<9x128xf32> to vector<9xf32>
    %289 = vector.shape_cast %288 : vector<9xf32> to vector<9x1xf32>
    %cst_122 = arith.constant 1.280000e+02 : f32
    %290 = vector.broadcast %cst_122 : f32 to vector<9x1xf32>
    %291 = arith.divf %289, %290 : vector<9x1xf32>
    %292 = vector.broadcast %291 : vector<9x1xf32> to vector<9x128xf32>
    %293 = arith.subf %287, %292 : vector<9x128xf32>
    %294 = arith.mulf %293, %293 : vector<9x128xf32>
    %cst_123 = arith.constant dense<0.000000e+00> : vector<9xf32>
    %295 = vector.multi_reduction <add>, %294, %cst_123 [1] : vector<9x128xf32> to vector<9xf32>
    %296 = vector.shape_cast %295 : vector<9xf32> to vector<9x1xf32>
    %cst_124 = arith.constant 1.280000e+02 : f32
    %297 = vector.broadcast %cst_124 : f32 to vector<9x1xf32>
    %298 = arith.divf %296, %297 : vector<9x1xf32>
    %299 = vector.broadcast %291 : vector<9x1xf32> to vector<9x128xf32>
    %300 = arith.subf %287, %299 : vector<9x128xf32>
    %cst_125 = arith.constant 9.99999974E-6 : f32
    %301 = vector.broadcast %cst_125 : f32 to vector<9x1xf32>
    %302 = arith.addf %298, %301 : vector<9x1xf32>
    %303 = math.rsqrt %302 : vector<9x1xf32>
    %304 = vector.broadcast %303 : vector<9x1xf32> to vector<9x128xf32>
    %305 = arith.mulf %300, %304 : vector<9x128xf32>
    %c1_126 = arith.constant 1 : index
    %c0_127 = arith.constant 0 : index
    %c0_128 = arith.constant 0 : index
    %306 = vector.load %arg14[%c1_126, %c0_127, %c0_128] : memref<2x1x128xf32, #tpu.memory_space<vmem>>, vector<1x1x128xf32>
    %307 = vector.shape_cast %306 : vector<1x1x128xf32> to vector<1x128xf32>
    %308 = vector.broadcast %307 : vector<1x128xf32> to vector<9x128xf32>
    %309 = arith.mulf %305, %308 : vector<9x128xf32>
    %c1_129 = arith.constant 1 : index
    %c0_130 = arith.constant 0 : index
    %c0_131 = arith.constant 0 : index
    %310 = vector.load %arg15[%c1_129, %c0_130, %c0_131] : memref<2x1x128xf32, #tpu.memory_space<vmem>>, vector<1x1x128xf32>
    %311 = vector.shape_cast %310 : vector<1x1x128xf32> to vector<1x128xf32>
    %312 = vector.broadcast %311 : vector<1x128xf32> to vector<9x128xf32>
    %313 = arith.addf %309, %312 : vector<9x128xf32>
    %314 = arith.truncf %313 : vector<9x128xf32> to vector<9x128xbf16>
    %c1_132 = arith.constant 1 : index
    %c0_133 = arith.constant 0 : index
    %c0_134 = arith.constant 0 : index
    %315 = vector.load %arg10[%c1_132, %c0_133, %c0_134] : memref<2x128x256xbf16, #tpu.memory_space<vmem>>, vector<1x128x256xbf16>
    %316 = vector.shape_cast %315 : vector<1x128x256xbf16> to vector<128x256xbf16>
    %cst_135 = arith.constant dense<0.000000e+00> : vector<9x256xf32>
    %317 = tpu.matmul %314, %316, %cst_135 {dimension_numbers = #tpu.dot_dimension_numbers<[1], [0], [0], [1], [0, 0, 1, 1], [], []>} : vector<9x128xbf16>, vector<128x256xbf16>, vector<9x256xf32> -> vector<9x256xf32>
    %c1_136 = arith.constant 1 : index
    %c0_137 = arith.constant 0 : index
    %c0_138 = arith.constant 0 : index
    %318 = vector.load %arg11[%c1_136, %c0_137, %c0_138] : memref<2x1x256xf32, #tpu.memory_space<vmem>>, vector<1x1x256xf32>
    %319 = vector.shape_cast %318 : vector<1x1x256xf32> to vector<1x256xf32>
    %320 = vector.broadcast %319 : vector<1x256xf32> to vector<9x256xf32>
    %321 = arith.addf %317, %320 : vector<9x256xf32>
    %cst_139 = arith.constant 0.000000e+00 : f32
    %322 = vector.broadcast %cst_139 : f32 to vector<9x256xf32>
    %323 = arith.maximumf %321, %322 : vector<9x256xf32>
    %324 = arith.truncf %323 : vector<9x256xf32> to vector<9x256xbf16>
    %c1_140 = arith.constant 1 : index
    %c0_141 = arith.constant 0 : index
    %c0_142 = arith.constant 0 : index
    %325 = vector.load %arg12[%c1_140, %c0_141, %c0_142] : memref<2x256x128xbf16, #tpu.memory_space<vmem>>, vector<1x256x128xbf16>
    %326 = vector.shape_cast %325 : vector<1x256x128xbf16> to vector<256x128xbf16>
    %cst_143 = arith.constant dense<0.000000e+00> : vector<9x128xf32>
    %327 = tpu.matmul %324, %326, %cst_143 {dimension_numbers = #tpu.dot_dimension_numbers<[1], [0], [0], [1], [0, 0, 1, 1], [], []>} : vector<9x256xbf16>, vector<256x128xbf16>, vector<9x128xf32> -> vector<9x128xf32>
    %c1_144 = arith.constant 1 : index
    %c0_145 = arith.constant 0 : index
    %c0_146 = arith.constant 0 : index
    %328 = vector.load %arg13[%c1_144, %c0_145, %c0_146] : memref<2x1x128xf32, #tpu.memory_space<vmem>>, vector<1x1x128xf32>
    %329 = vector.shape_cast %328 : vector<1x1x128xf32> to vector<1x128xf32>
    %330 = vector.broadcast %329 : vector<1x128xf32> to vector<9x128xf32>
    %331 = arith.addf %327, %330 : vector<9x128xf32>
    %332 = arith.addf %313, %331 : vector<9x128xf32>
    %cst_147 = arith.constant dense<0.000000e+00> : vector<9xf32>
    %333 = vector.multi_reduction <add>, %332, %cst_147 [1] : vector<9x128xf32> to vector<9xf32>
    %334 = vector.shape_cast %333 : vector<9xf32> to vector<9x1xf32>
    %cst_148 = arith.constant 1.280000e+02 : f32
    %335 = vector.broadcast %cst_148 : f32 to vector<9x1xf32>
    %336 = arith.divf %334, %335 : vector<9x1xf32>
    %337 = vector.broadcast %336 : vector<9x1xf32> to vector<9x128xf32>
    %338 = arith.subf %332, %337 : vector<9x128xf32>
    %339 = arith.mulf %338, %338 : vector<9x128xf32>
    %cst_149 = arith.constant dense<0.000000e+00> : vector<9xf32>
    %340 = vector.multi_reduction <add>, %339, %cst_149 [1] : vector<9x128xf32> to vector<9xf32>
    %341 = vector.shape_cast %340 : vector<9xf32> to vector<9x1xf32>
    %cst_150 = arith.constant 1.280000e+02 : f32
    %342 = vector.broadcast %cst_150 : f32 to vector<9x1xf32>
    %343 = arith.divf %341, %342 : vector<9x1xf32>
    %344 = vector.broadcast %336 : vector<9x1xf32> to vector<9x128xf32>
    %345 = arith.subf %332, %344 : vector<9x128xf32>
    %cst_151 = arith.constant 9.99999974E-6 : f32
    %346 = vector.broadcast %cst_151 : f32 to vector<9x1xf32>
    %347 = arith.addf %343, %346 : vector<9x1xf32>
    %348 = math.rsqrt %347 : vector<9x1xf32>
    %349 = vector.broadcast %348 : vector<9x1xf32> to vector<9x128xf32>
    %350 = arith.mulf %345, %349 : vector<9x128xf32>
    %c1_152 = arith.constant 1 : index
    %c0_153 = arith.constant 0 : index
    %c0_154 = arith.constant 0 : index
    %351 = vector.load %arg16[%c1_152, %c0_153, %c0_154] : memref<2x1x128xf32, #tpu.memory_space<vmem>>, vector<1x1x128xf32>
    %352 = vector.shape_cast %351 : vector<1x1x128xf32> to vector<1x128xf32>
    %353 = vector.broadcast %352 : vector<1x128xf32> to vector<9x128xf32>
    %354 = arith.mulf %350, %353 : vector<9x128xf32>
    %c1_155 = arith.constant 1 : index
    %c0_156 = arith.constant 0 : index
    %c0_157 = arith.constant 0 : index
    %355 = vector.load %arg17[%c1_155, %c0_156, %c0_157] : memref<2x1x128xf32, #tpu.memory_space<vmem>>, vector<1x1x128xf32>
    %356 = vector.shape_cast %355 : vector<1x1x128xf32> to vector<1x128xf32>
    %357 = vector.broadcast %356 : vector<1x128xf32> to vector<9x128xf32>
    %358 = arith.addf %354, %357 : vector<9x128xf32>
    %359 = vector.extract_strided_slice %358 {offsets = [8, 0], sizes = [1, 128], strides = [1, 1]} : vector<9x128xf32> to vector<1x128xf32>
    %c0_158 = arith.constant 0 : index
    %c0_159 = arith.constant 0 : index
    %c0_160 = arith.constant 0 : index
    %360 = vector.load %arg18[%c0_158, %c0_159, %c0_160] : memref<1x1x128xf32, #tpu.memory_space<vmem>>, vector<1x1x128xf32>
    %361 = vector.shape_cast %360 : vector<1x1x128xf32> to vector<1x128xf32>
    %362 = vector.shape_cast %359 : vector<1x128xf32> to vector<1x1x128xf32>
    tpu.vector_store %arg18[%c0_158, %c0_159, %c0_160], %362 {strides = array<i32>} : memref<1x1x128xf32, #tpu.memory_space<vmem>>, vector<1x1x128xf32>,
    return
  }
  func.func @transform_0(%arg0: i32) -> (i32, i32, i32) {
    %c0_i32 = arith.constant 0 : i32
    %c0_i32_0 = arith.constant 0 : i32
    %c0_i32_1 = arith.constant 0 : i32
    return %arg0, %c0_i32, %c0_i32_0 : i32, i32, i32
  }
  func.func @transform_1(%arg0: i32) -> (i32, i32) {
    %c0_i32 = arith.constant 0 : i32
    %c0_i32_0 = arith.constant 0 : i32
    %c0_i32_1 = arith.constant 0 : i32
    return %c0_i32, %c0_i32_0 : i32, i32
  }
  func.func @transform_2(%arg0: i32) -> (i32, i32) {
    %c0_i32 = arith.constant 0 : i32
    %c0_i32_0 = arith.constant 0 : i32
    %c0_i32_1 = arith.constant 0 : i32
    return %c0_i32, %c0_i32_0 : i32, i32
  }
  func.func @transform_3(%arg0: i32) -> (i32, i32) {
    %c0_i32 = arith.constant 0 : i32
    %c0_i32_0 = arith.constant 0 : i32
    %c0_i32_1 = arith.constant 0 : i32
    return %c0_i32, %c0_i32_0 : i32, i32
  }
  func.func @transform_4(%arg0: i32) -> (i32, i32) {
    %c0_i32 = arith.constant 0 : i32
    %c0_i32_0 = arith.constant 0 : i32
    %c0_i32_1 = arith.constant 0 : i32
    return %c0_i32, %c0_i32_0 : i32, i32
  }
  func.func @transform_5(%arg0: i32) -> (i32, i32, i32) {
    %c0_i32 = arith.constant 0 : i32
    %c0_i32_0 = arith.constant 0 : i32
    %c0_i32_1 = arith.constant 0 : i32
    %c0_i32_2 = arith.constant 0 : i32
    return %c0_i32, %c0_i32_0, %c0_i32_1 : i32, i32, i32
  }
  func.func @transform_6(%arg0: i32) -> (i32, i32, i32) {
    %c0_i32 = arith.constant 0 : i32
    %c0_i32_0 = arith.constant 0 : i32
    %c0_i32_1 = arith.constant 0 : i32
    %c0_i32_2 = arith.constant 0 : i32
    return %c0_i32, %c0_i32_0, %c0_i32_1 : i32, i32, i32
  }
  func.func @transform_7(%arg0: i32) -> (i32, i32, i32) {
    %c0_i32 = arith.constant 0 : i32
    %c0_i32_0 = arith.constant 0 : i32
    %c0_i32_1 = arith.constant 0 : i32
    %c0_i32_2 = arith.constant 0 : i32
    return %c0_i32, %c0_i32_0, %c0_i32_1 : i32, i32, i32
  }
  func.func @transform_8(%arg0: i32) -> (i32, i32, i32) {
    %c0_i32 = arith.constant 0 : i32
    %c0_i32_0 = arith.constant 0 : i32
    %c0_i32_1 = arith.constant 0 : i32
    %c0_i32_2 = arith.constant 0 : i32
    return %c0_i32, %c0_i32_0, %c0_i32_1 : i32, i32, i32
  }
  func.func @transform_9(%arg0: i32) -> (i32, i32, i32) {
    %c0_i32 = arith.constant 0 : i32
    %c0_i32_0 = arith.constant 0 : i32
    %c0_i32_1 = arith.constant 0 : i32
    %c0_i32_2 = arith.constant 0 : i32
    return %c0_i32, %c0_i32_0, %c0_i32_1 : i32, i32, i32
  }
  func.func @transform_10(%arg0: i32) -> (i32, i32, i32) {
    %c0_i32 = arith.constant 0 : i32
    %c0_i32_0 = arith.constant 0 : i32
    %c0_i32_1 = arith.constant 0 : i32
    %c0_i32_2 = arith.constant 0 : i32
    return %c0_i32, %c0_i32_0, %c0_i32_1 : i32, i32, i32
  }
  func.func @transform_11(%arg0: i32) -> (i32, i32, i32) {
    %c0_i32 = arith.constant 0 : i32
    %c0_i32_0 = arith.constant 0 : i32
    %c0_i32_1 = arith.constant 0 : i32
    %c0_i32_2 = arith.constant 0 : i32
    return %c0_i32, %c0_i32_0, %c0_i32_1 : i32, i32, i32
  }
  func.func @transform_12(%arg0: i32) -> (i32, i32, i32) {
    %c0_i32 = arith.constant 0 : i32
    %c0_i32_0 = arith.constant 0 : i32
    %c0_i32_1 = arith.constant 0 : i32
    %c0_i32_2 = arith.constant 0 : i32
    return %c0_i32, %c0_i32_0, %c0_i32_1 : i32, i32, i32
  }
  func.func @transform_13(%arg0: i32) -> (i32, i32, i32) {
    %c0_i32 = arith.constant 0 : i32
    %c0_i32_0 = arith.constant 0 : i32
    %c0_i32_1 = arith.constant 0 : i32
    %c0_i32_2 = arith.constant 0 : i32
    return %c0_i32, %c0_i32_0, %c0_i32_1 : i32, i32, i32
  }
  func.func @transform_14(%arg0: i32) -> (i32, i32, i32) {
    %c0_i32 = arith.constant 0 : i32
    %c0_i32_0 = arith.constant 0 : i32
    %c0_i32_1 = arith.constant 0 : i32
    %c0_i32_2 = arith.constant 0 : i32
    return %c0_i32, %c0_i32_0, %c0_i32_1 : i32, i32, i32
  }
  func.func @transform_15(%arg0: i32) -> (i32, i32, i32) {
    %c0_i32 = arith.constant 0 : i32
    %c0_i32_0 = arith.constant 0 : i32
    %c0_i32_1 = arith.constant 0 : i32
    %c0_i32_2 = arith.constant 0 : i32
    return %c0_i32, %c0_i32_0, %c0_i32_1 : i32, i32, i32
  }
  func.func @transform_16(%arg0: i32) -> (i32, i32, i32) {
    %c0_i32 = arith.constant 0 : i32
    %c0_i32_0 = arith.constant 0 : i32
    %c0_i32_1 = arith.constant 0 : i32
    %c0_i32_2 = arith.constant 0 : i32
    return %c0_i32, %c0_i32_0, %c0_i32_1 : i32, i32, i32
  }
  func.func @transform_17(%arg0: i32) -> (i32, i32, i32) {
    %c0_i32 = arith.constant 0 : i32
    %c0_i32_0 = arith.constant 0 : i32
    %c0_i32_1 = arith.constant 0 : i32
    return %arg0, %c0_i32, %c0_i32_0 : i32, i32, i32
  }
}

</mosaic_0001>

<llo_original>
// kernel: tpu_custom_call.1
$region0: #{tpu_custom_call.1}
  #allocation0 [shape = 'u32[]', space=smem, size = 0x4, offset = 0x4, fixed_abs, tag = 'smem constant byte address 0x4 - core index']
  #allocation1 [shape = 'u32[144,128]{1,0:T(1,128)}', space=vmem, size = 0x12000, scoped, tag = 'internal scratch']
  %s0 = inlined_call_operand.vmem [shape: f32[2,9,32], index: 0, kind: input, shape index: {}]
  %s1 = inlined_call_operand.vmem [shape: bf16[32,128], index: 1, kind: input, shape index: {}]
  %s2 = inlined_call_operand.hbm [shape: f32[1,128], index: 2, kind: input, shape index: {}]
  %s3 = inlined_call_operand.vmem [shape: f32[9,128], index: 3, kind: input, shape index: {}]
  %s4 = inlined_call_operand.vmem [shape: f32[9,9], index: 4, kind: input, shape index: {}]
  %s5 = inlined_call_operand.hbm [shape: bf16[2,128,384], index: 5, kind: input, shape index: {}]
  %s6 = inlined_call_operand.vmem [shape: f32[2,1,384], index: 6, kind: input, shape index: {}]
  %s7 = inlined_call_operand.hbm [shape: bf16[2,128,128], index: 7, kind: input, shape index: {}]
  %s8 = inlined_call_operand.vmem [shape: f32[2,1,128], index: 8, kind: input, shape index: {}]
  %s9 = inlined_call_operand.hbm [shape: bf16[2,128,256], index: 9, kind: input, shape index: {}]
  %s10 = inlined_call_operand.vmem [shape: f32[2,1,256], index: 10, kind: input, shape index: {}]
  %s11 = inlined_call_operand.hbm [shape: bf16[2,256,128], index: 11, kind: input, shape index: {}]
  %s12 = inlined_call_operand.vmem [shape: f32[2,1,128], index: 12, kind: input, shape index: {}]
  %s13 = inlined_call_operand.vmem [shape: f32[2,1,128], index: 13, kind: input, shape index: {}]
  %s14 = inlined_call_operand.vmem [shape: f32[2,1,128], index: 14, kind: input, shape index: {}]
  %s15 = inlined_call_operand.vmem [shape: f32[2,1,128], index: 15, kind: input, shape index: {}]
  %s16 = inlined_call_operand.vmem [shape: f32[2,1,128], index: 16, kind: input, shape index: {}]
  %s17 = inlined_call_operand.hbm [shape: f32[2,1,128], index: 17, kind: output, shape index: {}]
  %s18 = sld [smem:[#allocation0]]
  $region121: #{tpu_custom_call.1} parent=0
    _
  %s20 = ssub.s32 1, %s18
  %s21 = scalar_select 0, %s20, %s18
  $region1: #{tpu_custom_call.1} parent=0
    #allocation2 [shape = 'u8[512]{0}', space=vmem, size = 0x400, scoped, tag = 'input window, operand 2, single buffered']
    #allocation3 [shape = 's32[2]{0}', space=sflag, size = 0x8, scoped, tag = 'scoped memory for tpu_custom_call.1']
    #allocation4 [shape = 's32[2]{0}', space=sflag, size = 0x8, scoped, tag = 'scoped memory for tpu_custom_call.1']
    #allocation5 [shape = 'u8[196608]{0}', space=vmem, size = 0x30000, scoped, tag = 'input window, operand 5, single buffered']
    #allocation6 [shape = 's32[1]{0}', space=sflag, size = 0x4, scoped, tag = 'scoped memory for tpu_custom_call.1']
    #allocation7 [shape = 'u8[65536]{0}', space=vmem, size = 0x10000, scoped, tag = 'input window, operand 7, single buffered']
    #allocation8 [shape = 'u8[131072]{0}', space=vmem, size = 0x20000, scoped, tag = 'input window, operand 9, single buffered']
    #allocation9 [shape = 's32[1]{0}', space=sflag, size = 0x4, scoped, tag = 'scoped memory for tpu_custom_call.1']
    #allocation10 [shape = 'u8[131072]{0}', space=vmem, size = 0x20000, scoped, tag = 'input window, operand 11, single buffered']
    #allocation11 [shape = 'u8[1024]{0}', space=vmem, size = 0x400, scoped, tag = 'output window, operand 0']
    %22 = vsyncpa [#allocation3], 0
    %23 = vsyncpa [#allocation6], 0
    %24 = vsyncpa [#allocation9], 0
    %25 = vsyncpa [#allocation4], 0
    %s26 = scalar_lea.sflag [#allocation4], 1
    %27 = vsyncpa %s26, 0
    loop: start=0, step=1, limit=4
    $region2: #{tpu_custom_call.1} parent=1 // loop_pre_header
      _
    $region3: #{tpu_custom_call.1} parent=1 // loop_header
      %s29 = sphi 0, %s33
      %p30 = scmp.ge.s32.totalorder %s29, 4
      %s39 = sphi 0, %s41
      %s42 = sphi 0, %s39
      %s43 = sphi 0, %s42
      %s59 = sphi 0, %s43
      %s63 = sphi 0, %s63
      %s65 = sphi 0, %s63
      %s66 = sphi 0, %s65
      %s80 = sphi 0, %s66
      %s84 = sphi 0, %s84
      %s86 = sphi 0, %s84
      %s87 = sphi 0, %s86
      %s101 = sphi 0, %s87
      %s105 = sphi 0, %s105
      %s107 = sphi 0, %s105
      %s108 = sphi 0, %s107
      %s122 = sphi 0, %s108
      %s126 = sphi 0, %s126
      %s128 = sphi 0, %s126
      %s129 = sphi 0, %s128
      %s143 = sphi 0, %s129
      %s147 = sphi 0, %s147
      %s149 = sphi 0, %s147
      %s150 = sphi 0, %s149
      %s164 = sphi 0, %s150
      %s168 = sphi 0, %s168
      %s170 = sphi 0, %s168
      %s171 = sphi 0, %s170
      %s185 = sphi 0, %s171
      %s189 = sphi 0, %s189
      %s191 = sphi 0, %s189
      %s192 = sphi 0, %s191
      %s206 = sphi 0, %s192
      %s210 = sphi 0, %s210
      %s212 = sphi 0, %s210
      %s213 = sphi 0, %s212
      %s227 = sphi 0, %s213
      %s231 = sphi 0, %s231
      %s233 = sphi 0, %s231
      %s234 = sphi 0, %s233
      %s248 = sphi 0, %s234
      %s252 = sphi 0, %s252
      %s254 = sphi 0, %s252
      %s255 = sphi 0, %s254
      %s269 = sphi 0, %s255
      %s273 = sphi 0, %s273
      %s275 = sphi 0, %s273
      %s276 = sphi 0, %s275
      %s290 = sphi 0, %s276
      %s294 = sphi 0, %s294
      %s296 = sphi 0, %s294
      %s297 = sphi 0, %s296
      %s311 = sphi 0, %s297
      %s315 = sphi 0, %s315
      %s317 = sphi 0, %s315
      %s318 = sphi 0, %s317
      %s332 = sphi 0, %s318
      %s336 = sphi 0, %s336
      %s338 = sphi 0, %s336
      %s339 = sphi 0, %s338
      %s353 = sphi 0, %s339
      %s357 = sphi 0, %s357
      %s359 = sphi 0, %s357
      %s360 = sphi 0, %s359
      %s374 = sphi 0, %s360
      %s378 = sphi 0, %s378
      %s380 = sphi 0, %s378
      %s381 = sphi 0, %s380
      %s395 = sphi 0, %s381
      %s401 = sphi 0, %s403
      %s404 = sphi 0, %s401
      %s405 = sphi 0, %s404
      %s421 = sphi 0, %s405
    $region4: #{tpu_custom_call.1} parent=1 // loop_header_branch
      %32 = sbr.rel (%p30) target = $region8
    $region5: #{tpu_custom_call.1} parent=1 // loop_body
      %s34 = ssub.s32 %s29, 1
      %s35 = ssub.s32 %s29, 2
      %s36 = sadd.s32 %s29, 1
      %s37 = ssub.s32 %s29, %s36
      %p38 = scmp.eq.s32.totalorder %s37, 0
      %s40 = sadd.s32 %s39, 1
      %s41 = scalar_select %p38, %s39, %s40
      %p44 = pneg %p38
      %p45 = scmp.eq.s32.totalorder %s29, 1
      %p46 = por %p44, %p45
      %p47 = scmp.ne.s32.totalorder %s39, %s42
      %p48 = scmp.eq.s32.totalorder %s29, 0
      %p49 = por %p47, %p48
      %p50 = scmp.ne.s32.totalorder %s39, %s42
      %p51 = scmp.eq.s32.totalorder %s34, 1
      %p52 = por %p50, %p51
      %p53 = scmp.ne.s32.totalorder %s42, %s43
      %p54 = scmp.eq.s32.totalorder %s34, 0
      %p55 = por %p53, %p54
      %p56 = scmp.ne.s32.totalorder %s42, %s43
      %p57 = scmp.eq.s32.totalorder %s35, 1
      %p58 = por %p56, %p57
      %p60 = scmp.ne.s32.totalorder %s43, %s59
      %p61 = scmp.eq.s32.totalorder %s35, 0
      %p62 = por %p60, %p61
      %s64 = sadd.s32 %s63, 1
      %p67 = scmp.eq.s32.totalorder %s29, 1
      %p68 = scmp.ne.s32.totalorder %s63, %s65
      %p69 = scmp.eq.s32.totalorder %s29, 0
      %p70 = por %p68, %p69
      %p71 = scmp.ne.s32.totalorder %s63, %s65
      %p72 = scmp.eq.s32.totalorder %s34, 1
      %p73 = por %p71, %p72
      %p74 = scmp.ne.s32.totalorder %s65, %s66
      %p75 = scmp.eq.s32.totalorder %s34, 0
      %p76 = por %p74, %p75
      %p77 = scmp.ne.s32.totalorder %s65, %s66
      %p78 = scmp.eq.s32.totalorder %s35, 1
      %p79 = por %p77, %p78
      %p81 = scmp.ne.s32.totalorder %s66, %s80
      %p82 = scmp.eq.s32.totalorder %s35, 0
      %p83 = por %p81, %p82
      %s85 = sadd.s32 %s84, 1
      %p88 = scmp.eq.s32.totalorder %s29, 1
      %p89 = scmp.ne.s32.totalorder %s84, %s86
      %p90 = scmp.eq.s32.totalorder %s29, 0
      %p91 = por %p89, %p90
      %p92 = scmp.ne.s32.totalorder %s84, %s86
      %p93 = scmp.eq.s32.totalorder %s34, 1
      %p94 = por %p92, %p93
      %p95 = scmp.ne.s32.totalorder %s86, %s87
      %p96 = scmp.eq.s32.totalorder %s34, 0
      %p97 = por %p95, %p96
      %p98 = scmp.ne.s32.totalorder %s86, %s87
      %p99 = scmp.eq.s32.totalorder %s35, 1
      %p100 = por %p98, %p99
      %p102 = scmp.ne.s32.totalorder %s87, %s101
      %p103 = scmp.eq.s32.totalorder %s35, 0
      %p104 = por %p102, %p103
      %s106 = sadd.s32 %s105, 1
      %p109 = scmp.eq.s32.totalorder %s29, 1
      %p110 = scmp.ne.s32.totalorder %s105, %s107
      %p111 = scmp.eq.s32.totalorder %s29, 0
      %p112 = por %p110, %p111
      %p113 = scmp.ne.s32.totalorder %s105, %s107
      %p114 = scmp.eq.s32.totalorder %s34, 1
      %p115 = por %p113, %p114
      %p116 = scmp.ne.s32.totalorder %s107, %s108
      %p117 = scmp.eq.s32.totalorder %s34, 0
      %p118 = por %p116, %p117
      %p119 = scmp.ne.s32.totalorder %s107, %s108
      %p120 = scmp.eq.s32.totalorder %s35, 1
      %p121 = por %p119, %p120
      %p123 = scmp.ne.s32.totalorder %s108, %s122
      %p124 = scmp.eq.s32.totalorder %s35, 0
      %p125 = por %p123, %p124
      %s127 = sadd.s32 %s126, 1
      %p130 = scmp.eq.s32.totalorder %s29, 1
      %p131 = scmp.ne.s32.totalorder %s126, %s128
      %p132 = scmp.eq.s32.totalorder %s29, 0
      %p133 = por %p131, %p132
      %p134 = scmp.ne.s32.totalorder %s126, %s128
      %p135 = scmp.eq.s32.totalorder %s34, 1
      %p136 = por %p134, %p135
      %p137 = scmp.ne.s32.totalorder %s128, %s129
      %p138 = scmp.eq.s32.totalorder %s34, 0
      %p139 = por %p137, %p138
      %p140 = scmp.ne.s32.totalorder %s128, %s129
      %p141 = scmp.eq.s32.totalorder %s35, 1
      %p142 = por %p140, %p141
      %p144 = scmp.ne.s32.totalorder %s129, %s143
      %p145 = scmp.eq.s32.totalorder %s35, 0
      %p146 = por %p144, %p145
      %s148 = sadd.s32 %s147, 1
      %p151 = scmp.eq.s32.totalorder %s29, 1
      %p152 = scmp.ne.s32.totalorder %s147, %s149
      %p153 = scmp.eq.s32.totalorder %s29, 0
      %p154 = por %p152, %p153
      %p155 = scmp.ne.s32.totalorder %s147, %s149
      %p156 = scmp.eq.s32.totalorder %s34, 1
      %p157 = por %p155, %p156
      %p158 = scmp.ne.s32.totalorder %s149, %s150
      %p159 = scmp.eq.s32.totalorder %s34, 0
      %p160 = por %p158, %p159
      %p161 = scmp.ne.s32.totalorder %s149, %s150
      %p162 = scmp.eq.s32.totalorder %s35, 1
      %p163 = por %p161, %p162
      %p165 = scmp.ne.s32.totalorder %s150, %s164
      %p166 = scmp.eq.s32.totalorder %s35, 0
      %p167 = por %p165, %p166
      %s169 = sadd.s32 %s168, 1
      %p172 = scmp.eq.s32.totalorder %s29, 1
      %p173 = scmp.ne.s32.totalorder %s168, %s170
      %p174 = scmp.eq.s32.totalorder %s29, 0
      %p175 = por %p173, %p174
      %p176 = scmp.ne.s32.totalorder %s168, %s170
      %p177 = scmp.eq.s32.totalorder %s34, 1
      %p178 = por %p176, %p177
      %p179 = scmp.ne.s32.totalorder %s170, %s171
      %p180 = scmp.eq.s32.totalorder %s34, 0
      %p181 = por %p179, %p180
      %p182 = scmp.ne.s32.totalorder %s170, %s171
      %p183 = scmp.eq.s32.totalorder %s35, 1
      %p184 = por %p182, %p183
      %p186 = scmp.ne.s32.totalorder %s171, %s185
      %p187 = scmp.eq.s32.totalorder %s35, 0
      %p188 = por %p186, %p187
      %s190 = sadd.s32 %s189, 1
      %p193 = scmp.eq.s32.totalorder %s29, 1
      %p194 = scmp.ne.s32.totalorder %s189, %s191
      %p195 = scmp.eq.s32.totalorder %s29, 0
      %p196 = por %p194, %p195
      %p197 = scmp.ne.s32.totalorder %s189, %s191
      %p198 = scmp.eq.s32.totalorder %s34, 1
      %p199 = por %p197, %p198
      %p200 = scmp.ne.s32.totalorder %s191, %s192
      %p201 = scmp.eq.s32.totalorder %s34, 0
      %p202 = por %p200, %p201
      %p203 = scmp.ne.s32.totalorder %s191, %s192
      %p204 = scmp.eq.s32.totalorder %s35, 1
      %p205 = por %p203, %p204
      %p207 = scmp.ne.s32.totalorder %s192, %s206
      %p208 = scmp.eq.s32.totalorder %s35, 0
      %p209 = por %p207, %p208
      %s211 = sadd.s32 %s210, 1
      %p214 = scmp.eq.s32.totalorder %s29, 1
      %p215 = scmp.ne.s32.totalorder %s210, %s212
      %p216 = scmp.eq.s32.totalorder %s29, 0
      %p217 = por %p215, %p216
      %p218 = scmp.ne.s32.totalorder %s210, %s212
      %p219 = scmp.eq.s32.totalorder %s34, 1
      %p220 = por %p218, %p219
      %p221 = scmp.ne.s32.totalorder %s212, %s213
      %p222 = scmp.eq.s32.totalorder %s34, 0
      %p223 = por %p221, %p222
      %p224 = scmp.ne.s32.totalorder %s212, %s213
      %p225 = scmp.eq.s32.totalorder %s35, 1
      %p226 = por %p224, %p225
      %p228 = scmp.ne.s32.totalorder %s213, %s227
      %p229 = scmp.eq.s32.totalorder %s35, 0
      %p230 = por %p228, %p229
      %s232 = sadd.s32 %s231, 1
      %p235 = scmp.eq.s32.totalorder %s29, 1
      %p236 = scmp.ne.s32.totalorder %s231, %s233
      %p237 = scmp.eq.s32.totalorder %s29, 0
      %p238 = por %p236, %p237
      %p239 = scmp.ne.s32.totalorder %s231, %s233
      %p240 = scmp.eq.s32.totalorder %s34, 1
      %p241 = por %p239, %p240
      %p242 = scmp.ne.s32.totalorder %s233, %s234
      %p243 = scmp.eq.s32.totalorder %s34, 0
      %p244 = por %p242, %p243
      %p245 = scmp.ne.s32.totalorder %s233, %s234
      %p246 = scmp.eq.s32.totalorder %s35, 1
      %p247 = por %p245, %p246
      %p249 = scmp.ne.s32.totalorder %s234, %s248
      %p250 = scmp.eq.s32.totalorder %s35, 0
      %p251 = por %p249, %p250
      %s253 = sadd.s32 %s252, 1
      %p256 = scmp.eq.s32.totalorder %s29, 1
      %p257 = scmp.ne.s32.totalorder %s252, %s254
      %p258 = scmp.eq.s32.totalorder %s29, 0
      %p259 = por %p257, %p258
      %p260 = scmp.ne.s32.totalorder %s252, %s254
      %p261 = scmp.eq.s32.totalorder %s34, 1
      %p262 = por %p260, %p261
      %p263 = scmp.ne.s32.totalorder %s254, %s255
      %p264 = scmp.eq.s32.totalorder %s34, 0
      %p265 = por %p263, %p264
      %p266 = scmp.ne.s32.totalorder %s254, %s255
      %p267 = scmp.eq.s32.totalorder %s35, 1
      %p268 = por %p266, %p267
      %p270 = scmp.ne.s32.totalorder %s255, %s269
      %p271 = scmp.eq.s32.totalorder %s35, 0
      %p272 = por %p270, %p271
      %s274 = sadd.s32 %s273, 1
      %p277 = scmp.eq.s32.totalorder %s29, 1
      %p278 = scmp.ne.s32.totalorder %s273, %s275
      %p279 = scmp.eq.s32.totalorder %s29, 0
      %p280 = por %p278, %p279
      %p281 = scmp.ne.s32.totalorder %s273, %s275
      %p282 = scmp.eq.s32.totalorder %s34, 1
      %p283 = por %p281, %p282
      %p284 = scmp.ne.s32.totalorder %s275, %s276
      %p285 = scmp.eq.s32.totalorder %s34, 0
      %p286 = por %p284, %p285
      %p287 = scmp.ne.s32.totalorder %s275, %s276
      %p288 = scmp.eq.s32.totalorder %s35, 1
      %p289 = por %p287, %p288
      %p291 = scmp.ne.s32.totalorder %s276, %s290
      %p292 = scmp.eq.s32.totalorder %s35, 0
      %p293 = por %p291, %p292
      %s295 = sadd.s32 %s294, 1
      %p298 = scmp.eq.s32.totalorder %s29, 1
      %p299 = scmp.ne.s32.totalorder %s294, %s296
      %p300 = scmp.eq.s32.totalorder %s29, 0
      %p301 = por %p299, %p300
      %p302 = scmp.ne.s32.totalorder %s294, %s296
      %p303 = scmp.eq.s32.totalorder %s34, 1
      %p304 = por %p302, %p303
      %p305 = scmp.ne.s32.totalorder %s296, %s297
      %p306 = scmp.eq.s32.totalorder %s34, 0
      %p307 = por %p305, %p306
      %p308 = scmp.ne.s32.totalorder %s296, %s297
      %p309 = scmp.eq.s32.totalorder %s35, 1
      %p310 = por %p308, %p309
      %p312 = scmp.ne.s32.totalorder %s297, %s311
      %p313 = scmp.eq.s32.totalorder %s35, 0
      %p314 = por %p312, %p313
      %s316 = sadd.s32 %s315, 1
      %p319 = scmp.eq.s32.totalorder %s29, 1
      %p320 = scmp.ne.s32.totalorder %s315, %s317
      %p321 = scmp.eq.s32.totalorder %s29, 0
      %p322 = por %p320, %p321
      %p323 = scmp.ne.s32.totalorder %s315, %s317
      %p324 = scmp.eq.s32.totalorder %s34, 1
      %p325 = por %p323, %p324
      %p326 = scmp.ne.s32.totalorder %s317, %s318
      %p327 = scmp.eq.s32.totalorder %s34, 0
      %p328 = por %p326, %p327
      %p329 = scmp.ne.s32.totalorder %s317, %s318
      %p330 = scmp.eq.s32.totalorder %s35, 1
      %p331 = por %p329, %p330
      %p333 = scmp.ne.s32.totalorder %s318, %s332
      %p334 = scmp.eq.s32.totalorder %s35, 0
      %p335 = por %p333, %p334
      %s337 = sadd.s32 %s336, 1
      %p340 = scmp.eq.s32.totalorder %s29, 1
      %p341 = scmp.ne.s32.totalorder %s336, %s338
      %p342 = scmp.eq.s32.totalorder %s29, 0
      %p343 = por %p341, %p342
      %p344 = scmp.ne.s32.totalorder %s336, %s338
      %p345 = scmp.eq.s32.totalorder %s34, 1
      %p346 = por %p344, %p345
      %p347 = scmp.ne.s32.totalorder %s338, %s339
      %p348 = scmp.eq.s32.totalorder %s34, 0
      %p349 = por %p347, %p348
      %p350 = scmp.ne.s32.totalorder %s338, %s339
      %p351 = scmp.eq.s32.totalorder %s35, 1
      %p352 = por %p350, %p351
      %p354 = scmp.ne.s32.totalorder %s339, %s353
      %p355 = scmp.eq.s32.totalorder %s35, 0
      %p356 = por %p354, %p355
      %s358 = sadd.s32 %s357, 1
      %p361 = scmp.eq.s32.totalorder %s29, 1
      %p362 = scmp.ne.s32.totalorder %s357, %s359
      %p363 = scmp.eq.s32.totalorder %s29, 0
      %p364 = por %p362, %p363
      %p365 = scmp.ne.s32.totalorder %s357, %s359
      %p366 = scmp.eq.s32.totalorder %s34, 1
      %p367 = por %p365, %p366
      %p368 = scmp.ne.s32.totalorder %s359, %s360
      %p369 = scmp.eq.s32.totalorder %s34, 0
      %p370 = por %p368, %p369
      %p371 = scmp.ne.s32.totalorder %s359, %s360
      %p372 = scmp.eq.s32.totalorder %s35, 1
      %p373 = por %p371, %p372
      %p375 = scmp.ne.s32.totalorder %s360, %s374
      %p376 = scmp.eq.s32.totalorder %s35, 0
      %p377 = por %p375, %p376
      %s379 = sadd.s32 %s378, 1
      %p382 = scmp.eq.s32.totalorder %s29, 1
      %p383 = scmp.ne.s32.totalorder %s378, %s380
      %p384 = scmp.eq.s32.totalorder %s29, 0
      %p385 = por %p383, %p384
      %p386 = scmp.ne.s32.totalorder %s378, %s380
      %p387 = scmp.eq.s32.totalorder %s34, 1
      %p388 = por %p386, %p387
      %p389 = scmp.ne.s32.totalorder %s380, %s381
      %p390 = scmp.eq.s32.totalorder %s34, 0
      %p391 = por %p389, %p390
      %p392 = scmp.ne.s32.totalorder %s380, %s381
      %p393 = scmp.eq.s32.totalorder %s35, 1
      %p394 = por %p392, %p393
      %p396 = scmp.ne.s32.totalorder %s381, %s395
      %p397 = scmp.eq.s32.totalorder %s35, 0
      %p398 = por %p396, %p397
      %s399 = ssub.s32 %s29, %s36
      %p400 = scmp.eq.s32.totalorder %s399, 0
      %s402 = sadd.s32 %s401, 1
      %s403 = scalar_select %p400, %s401, %s402
      %p406 = pneg %p400
      %p407 = scmp.eq.s32.totalorder %s29, 1
      %p408 = por %p406, %p407
      %p409 = scmp.ne.s32.totalorder %s401, %s404
      %p410 = scmp.eq.s32.totalorder %s29, 0
      %p411 = por %p409, %p410
      %p412 = scmp.ne.s32.totalorder %s401, %s404
      %p413 = scmp.eq.s32.totalorder %s34, 1
      %p414 = por %p412, %p413
      %p415 = scmp.ne.s32.totalorder %s404, %s405
      %p416 = scmp.eq.s32.totalorder %s34, 0
      %p417 = por %p415, %p416
      %p418 = scmp.ne.s32.totalorder %s404, %s405
      %p419 = scmp.eq.s32.totalorder %s35, 1
      %p420 = por %p418, %p419
      %p422 = scmp.ne.s32.totalorder %s405, %s421
      %p423 = scmp.eq.s32.totalorder %s35, 0
      %p424 = por %p422, %p423
      %p425 = scmp.le.s32.totalorder 1, %s29
      %p426 = scmp.lt.s32.totalorder %s29, 3
      %p427 = pnand %p425, %p426
      %p428 = pneg %p427
      // Predicated region
      $region9: #{tpu_custom_call.1} parent=5 // pred_check
        _
      $region10: #{tpu_custom_call.1} parent=5 // pred_check_branch
        %430 = sbr.rel (%p427) target = $region12
      $region11: #{tpu_custom_call.1} parent=5 // pred_region
        %s431 = ssub.s32 %s29, 1
        // Predicated region
        $region13: #{tpu_custom_call.1} parent=11 // pred_check
          %p432 = pneg %p76
        $region14: #{tpu_custom_call.1} parent=11 // pred_check_branch
          %434 = sbr.rel (%p432) target = $region16
        $region15: #{tpu_custom_call.1} parent=11 // pred_region
          _
        $region16: #{tpu_custom_call.1} parent=11 // pred_fallthru
          _
        // Predicated region
        $region17: #{tpu_custom_call.1} parent=11 // pred_check
          %p435 = pneg %p97
        $region18: #{tpu_custom_call.1} parent=11 // pred_check_branch
          %437 = sbr.rel (%p435) target = $region20
        $region19: #{tpu_custom_call.1} parent=11 // pred_region
          %s439 = ssub.s32 16, 16
          %440 = vsyncadd [#allocation3], %s439
          %s442 = sshll.u32 [#allocation2], 4
          %s443 = int_to_ptr.vmem [resolvable:$true] %s442
          %445 = dma.hbm_to_vmem [thread:$0]  %s2, 16, %s443, [#allocation3]
        $region20: #{tpu_custom_call.1} parent=11 // pred_fallthru
          _
        // Predicated region
        $region21: #{tpu_custom_call.1} parent=11 // pred_check
          %p446 = pneg %p118
        $region22: #{tpu_custom_call.1} parent=11 // pred_check_branch
          %448 = sbr.rel (%p446) target = $region24
        $region23: #{tpu_custom_call.1} parent=11 // pred_region
          _
        $region24: #{tpu_custom_call.1} parent=11 // pred_fallthru
          _
        // Predicated region
        $region25: #{tpu_custom_call.1} parent=11 // pred_check
          %p449 = pneg %p139
        $region26: #{tpu_custom_call.1} parent=11 // pred_check_branch
          %451 = sbr.rel (%p449) target = $region28
        $region27: #{tpu_custom_call.1} parent=11 // pred_region
          _
        $region28: #{tpu_custom_call.1} parent=11 // pred_fallthru
          _
        // Predicated region
        $region29: #{tpu_custom_call.1} parent=11 // pred_check
          %p452 = pneg %p160
        $region30: #{tpu_custom_call.1} parent=11 // pred_check_branch
          %454 = sbr.rel (%p452) target = $region32
        $region31: #{tpu_custom_call.1} parent=11 // pred_region
          %s456 = ssub.s32 6144, 6144
          %457 = vsyncadd [#allocation6], %s456
          %s458 = sshll.u32 [#allocation5], 4
          %s459 = int_to_ptr.vmem [resolvable:$true] %s458
          %464 = dma.hbm_to_vmem [thread:$0]  %s5, 6144, %s459, [#allocation6], 192, 192, 12
        $region32: #{tpu_custom_call.1} parent=11 // pred_fallthru
          _
        // Predicated region
        $region33: #{tpu_custom_call.1} parent=11 // pred_check
          %p465 = pneg %p181
        $region34: #{tpu_custom_call.1} parent=11 // pred_check_branch
          %467 = sbr.rel (%p465) target = $region36
        $region35: #{tpu_custom_call.1} parent=11 // pred_region
          _
        $region36: #{tpu_custom_call.1} parent=11 // pred_fallthru
          _
        // Predicated region
        $region37: #{tpu_custom_call.1} parent=11 // pred_check
          %p468 = pneg %p202
        $region38: #{tpu_custom_call.1} parent=11 // pred_check_branch
          %470 = sbr.rel (%p468) target = $region40
        $region39: #{tpu_custom_call.1} parent=11 // pred_region
          %s472 = ssub.s32 2048, 2048
          %473 = vsyncadd [#allocation6], %s472
          %s474 = sshll.u32 [#allocation7], 4
          %s475 = int_to_ptr.vmem [resolvable:$true] %s474
          %480 = dma.hbm_to_vmem [thread:$0]  %s7, 2048, %s475, [#allocation6], 64, 64, 4
        $region40: #{tpu_custom_call.1} parent=11 // pred_fallthru
          _
        // Predicated region
        $region41: #{tpu_custom_call.1} parent=11 // pred_check
          %p481 = pneg %p223
        $region42: #{tpu_custom_call.1} parent=11 // pred_check_branch
          %483 = sbr.rel (%p481) target = $region44
        $region43: #{tpu_custom_call.1} parent=11 // pred_region
          _
        $region44: #{tpu_custom_call.1} parent=11 // pred_fallthru
          _
        // Predicated region
        $region45: #{tpu_custom_call.1} parent=11 // pred_check
          %p484 = pneg %p244
        $region46: #{tpu_custom_call.1} parent=11 // pred_check_branch
          %486 = sbr.rel (%p484) target = $region48
        $region47: #{tpu_custom_call.1} parent=11 // pred_region
          %s488 = ssub.s32 4096, 4096
          %489 = vsyncadd [#allocation9], %s488
          %s490 = sshll.u32 [#allocation8], 4
          %s491 = int_to_ptr.vmem [resolvable:$true] %s490
          %496 = dma.hbm_to_vmem [thread:$0]  %s9, 4096, %s491, [#allocation9], 128, 128, 8
        $region48: #{tpu_custom_call.1} parent=11 // pred_fallthru
          _
        // Predicated region
        $region49: #{tpu_custom_call.1} parent=11 // pred_check
          %p497 = pneg %p265
        $region50: #{tpu_custom_call.1} parent=11 // pred_check_branch
          %499 = sbr.rel (%p497) target = $region52
        $region51: #{tpu_custom_call.1} parent=11 // pred_region
          _
        $region52: #{tpu_custom_call.1} parent=11 // pred_fallthru
          _
        // Predicated region
        $region53: #{tpu_custom_call.1} parent=11 // pred_check
          %p500 = pneg %p286
        $region54: #{tpu_custom_call.1} parent=11 // pred_check_branch
          %502 = sbr.rel (%p500) target = $region56
        $region55: #{tpu_custom_call.1} parent=11 // pred_region
          %s504 = ssub.s32 4096, 4096
          %505 = vsyncadd [#allocation9], %s504
          %s506 = sshll.u32 [#allocation10], 4
          %s507 = int_to_ptr.vmem [resolvable:$true] %s506
          %512 = dma.hbm_to_vmem [thread:$0]  %s11, 4096, %s507, [#allocation9], 64, 64, 4
        $region56: #{tpu_custom_call.1} parent=11 // pred_fallthru
          _
        // Predicated region
        $region57: #{tpu_custom_call.1} parent=11 // pred_check
          %p513 = pneg %p307
        $region58: #{tpu_custom_call.1} parent=11 // pred_check_branch
          %515 = sbr.rel (%p513) target = $region60
        $region59: #{tpu_custom_call.1} parent=11 // pred_region
          _
        $region60: #{tpu_custom_call.1} parent=11 // pred_fallthru
          _
        // Predicated region
        $region61: #{tpu_custom_call.1} parent=11 // pred_check
          %p516 = pneg %p328
        $region62: #{tpu_custom_call.1} parent=11 // pred_check_branch
          %518 = sbr.rel (%p516) target = $region64
        $region63: #{tpu_custom_call.1} parent=11 // pred_region
          _
        $region64: #{tpu_custom_call.1} parent=11 // pred_fallthru
          _
        // Predicated region
        $region65: #{tpu_custom_call.1} parent=11 // pred_check
          %p519 = pneg %p349
        $region66: #{tpu_custom_call.1} parent=11 // pred_check_branch
          %521 = sbr.rel (%p519) target = $region68
        $region67: #{tpu_custom_call.1} parent=11 // pred_region
          _
        $region68: #{tpu_custom_call.1} parent=11 // pred_fallthru
          _
        // Predicated region
        $region69: #{tpu_custom_call.1} parent=11 // pred_check
          %p522 = pneg %p370
        $region70: #{tpu_custom_call.1} parent=11 // pred_check_branch
          %524 = sbr.rel (%p522) target = $region72
        $region71: #{tpu_custom_call.1} parent=11 // pred_region
          _
        $region72: #{tpu_custom_call.1} parent=11 // pred_fallthru
          _
        // Predicated region
        $region73: #{tpu_custom_call.1} parent=11 // pred_check
          %p525 = pneg %p391
        $region74: #{tpu_custom_call.1} parent=11 // pred_check_branch
          %527 = sbr.rel (%p525) target = $region76
        $region75: #{tpu_custom_call.1} parent=11 // pred_region
          _
        $region76: #{tpu_custom_call.1} parent=11 // pred_fallthru
          _
      $region12: #{tpu_custom_call.1} parent=5 // pred_fallthru
        _
      %p528 = scmp.lt.s32.totalorder %s29, 2
      // Predicated region
      $region77: #{tpu_custom_call.1} parent=5 // pred_check
        %p529 = pneg %p528
      $region78: #{tpu_custom_call.1} parent=5 // pred_check_branch
        %531 = sbr.rel (%p529) target = $region80
      $region79: #{tpu_custom_call.1} parent=5 // pred_region
        // Predicated region
        $region81: #{tpu_custom_call.1} parent=79 // pred_check
          %p532 = pneg %p49
        $region82: #{tpu_custom_call.1} parent=79 // pred_check_branch
          %534 = sbr.rel (%p532) target = $region84
        $region83: #{tpu_custom_call.1} parent=79 // pred_region
          %p535 = scmp.lt.s32.totalorder %s29, 1
          %s536 = scalar_select %p535, %s29, 1
          %s537 = smul.addr %s536, 2
          %s538 = smul.addr %s537, 8
          %s539 = scalar_lea.vmem %s0, %s538
        $region84: #{tpu_custom_call.1} parent=79 // pred_fallthru
          _
      $region80: #{tpu_custom_call.1} parent=5 // pred_fallthru
        _
      %p540 = scmp.le.s32.totalorder 1, %s29
      %p541 = scmp.lt.s32.totalorder %s29, 3
      %p542 = pnand %p540, %p541
      %p543 = pneg %p542
      // Predicated region
      $region85: #{tpu_custom_call.1} parent=5 // pred_check
        _
      $region86: #{tpu_custom_call.1} parent=5 // pred_check_branch
        %545 = sbr.rel (%p542) target = $region88
      $region87: #{tpu_custom_call.1} parent=5 // pred_region
        %s546 = ssub.s32 %s29, 1
        // Predicated region
        $region89: #{tpu_custom_call.1} parent=87 // pred_check
          %p547 = pneg %p97
        $region90: #{tpu_custom_call.1} parent=87 // pred_check_branch
          %549 = sbr.rel (%p547) target = $region92
        $region91: #{tpu_custom_call.1} parent=87 // pred_region
          %550 = dma.done [#allocation3], 16
        $region92: #{tpu_custom_call.1} parent=87 // pred_fallthru
          _
        // Predicated region
        $region93: #{tpu_custom_call.1} parent=87 // pred_check
          %p551 = pneg %p160
        $region94: #{tpu_custom_call.1} parent=87 // pred_check_branch
          %553 = sbr.rel (%p551) target = $region96
        $region95: #{tpu_custom_call.1} parent=87 // pred_region
          %554 = dma.done [#allocation6], 6144
        $region96: #{tpu_custom_call.1} parent=87 // pred_fallthru
          _
        // Predicated region
        $region97: #{tpu_custom_call.1} parent=87 // pred_check
          %p555 = pneg %p202
        $region98: #{tpu_custom_call.1} parent=87 // pred_check_branch
          %557 = sbr.rel (%p555) target = $region100
        $region99: #{tpu_custom_call.1} parent=87 // pred_region
          %558 = dma.done [#allocation6], 2048
        $region100: #{tpu_custom_call.1} parent=87 // pred_fallthru
          _
        // Predicated region
        $region101: #{tpu_custom_call.1} parent=87 // pred_check
          %p559 = pneg %p244
        $region102: #{tpu_custom_call.1} parent=87 // pred_check_branch
          %561 = sbr.rel (%p559) target = $region104
        $region103: #{tpu_custom_call.1} parent=87 // pred_region
          %562 = dma.done [#allocation9], 4096
        $region104: #{tpu_custom_call.1} parent=87 // pred_fallthru
          _
        // Predicated region
        $region105: #{tpu_custom_call.1} parent=87 // pred_check
          %p563 = pneg %p286
        $region106: #{tpu_custom_call.1} parent=87 // pred_check_branch
          %565 = sbr.rel (%p563) target = $region108
        $region107: #{tpu_custom_call.1} parent=87 // pred_region
          %566 = dma.done [#allocation9], 4096
        $region108: #{tpu_custom_call.1} parent=87 // pred_fallthru
          _
        %p567 = scmp.lt.s32.totalorder %s34, 1
        %s568 = scalar_select %p567, %s34, 1
        %s569 = smul.addr %s568, 2
        %s570 = smul.addr %s569, 8
        %s571 = scalar_lea.vmem %s0, %s570
        %p572 = pneg %p55
        %p573 = pneg %p52
        %p574 = pneg %p76
        %p575 = pneg %p73
        %p576 = pneg %p97
        %p577 = pneg %p94
        %p578 = pneg %p118
        %p579 = pneg %p115
        %p580 = pneg %p139
        %p581 = pneg %p136
        %p582 = pneg %p160
        %p583 = pneg %p157
        %p584 = pneg %p181
        %p585 = pneg %p178
        %p586 = pneg %p202
        %p587 = pneg %p199
        %p588 = pneg %p223
        %p589 = pneg %p220
        %p590 = pneg %p244
        %p591 = pneg %p241
        %p592 = pneg %p265
        %p593 = pneg %p262
        %p594 = pneg %p286
        %p595 = pneg %p283
        %p596 = pneg %p307
        %p597 = pneg %p304
        %p598 = pneg %p328
        %p599 = pneg %p325
        %p600 = pneg %p349
        %p601 = pneg %p346
        %p602 = pneg %p370
        %p603 = pneg %p367
        %p604 = pneg %p391
        %p605 = pneg %p388
        %p606 = pneg %p417
        %p607 = pneg %p414
        %s608 = sand.u32 %s404, 1
        %s609 = scalar_lea.sflag [#allocation4], %s608
        %s610 = sand.u32 %s404, 1
        %s611 = scalar_lea.vmem [#allocation11], %s610
        %p612 = scmp.lt.s32.totalorder %s34, 1
        %s613 = scalar_select %p612, %s34, 1
        %s614 = smul.addr %s613, 2
        %s615 = smul.addr %s614, 8
        %s616 = scalar_lea.vmem %s0, %s615
        %v618 = vld [vmem:[%s616] sm:$0xff]
        %v619 = vld [vmem:[%s616 + $0x8] sm:$0x1]
        %v620 = vpack.c.bf16 %v619, %v618
        %v621 = vld [vmem:[%s1] sm:$0xf]
        %v622 = vld [vmem:[%s1 + $0x4] sm:$0xf]
        %v623 = vld [vmem:[%s1 + $0x8] sm:$0xf]
        %v624 = vld [vmem:[%s1 + $0xc] sm:$0xf]
        %v625 = vld [vmem:[#allocation2] sm:$0x1]
        %v627 = vlaneseq
        %v628 = vshrl.u32 %v627, 7
        %v629 = vsub.s32 0, %v628
        %v630 = vrot.slane %v625, %v629
        %v636 = vunpack.c.l.b16 %v621
        %v637 = vunpack.c.l.b16 %v622
        %v638 = vunpack.c.l.b16 %v623
        %v639 = vunpack.c.l.b16 %v624
        %v640 = vpack.c.b16 %v637, %v636
        %v641 = vpack.c.b16 %v639, %v638
        %vm644 = vcmask 261120
        %v646 = vsel %vm644, %v620, 0
        %648 = vmatprep.subr.bf16.mxu0 0
        %649 = vmatpush1.bf16.msra.mxu0 %v640
        %650 = vmatprep.subr.bf16.mxu0 0
        %651 = vmatpush1.bf16.msra.mxu0 %v641
        %652 = vmatprep.subr.bf16.mxu0 0
        %653 = vmatpush1.bf16.msra.mxu0 0
        %654 = vmatprep.subr.bf16.mxu0 0
        %655 = vmatpush1.bf16.msra.mxu0 0
        %656 = vmatprep.subr.bf16.mxu0 0
        %657 = vmatpush1.bf16.msra.mxu0 0
        %658 = vmatprep.subr.bf16.mxu0 0
        %659 = vmatpush1.bf16.msra.mxu0 0
        %660 = vmatprep.subr.bf16.mxu0 0
        %661 = vmatpush1.bf16.msra.mxu0 0
        %662 = vmatprep.subr.bf16.mxu0 0
        %663 = vmatpush1.bf16.msra.mxu0 0
        %664 = vmatprep.subr.bf16.mxu0 0
        %665 = vmatpush1.bf16.msra.mxu0 0
        %666 = vmatprep.subr.bf16.mxu0 0
        %667 = vmatpush1.bf16.msra.mxu0 0
        %668 = vmatprep.subr.bf16.mxu0 0
        %669 = vmatpush1.bf16.msra.mxu0 0
        %670 = vmatprep.subr.bf16.mxu0 0
        %671 = vmatpush1.bf16.msra.mxu0 0
        %672 = vmatprep.subr.bf16.mxu0 0
        %673 = vmatpush1.bf16.msra.mxu0 0
        %674 = vmatprep.subr.bf16.mxu0 0
        %675 = vmatpush1.bf16.msra.mxu0 0
        %676 = vmatprep.subr.bf16.mxu0 0
        %677 = vmatpush1.bf16.msra.mxu0 0
        %678 = vmatprep.subr.bf16.mxu0 0
        %679 = vmatpush1.bf16.msra.mxu0 0
        %680 = vmatprep.mubr.bf16.mxu0 0
        %681 = vmatmul.mubr.bf16.gmra.mrb[0].mxu0 %v646
        %v682 = vpop.f32.mrb[0].mxu0
        %v683 = vadd.f32 %v630, %v682
        %v684 = vpop.f32.mrb[0].mxu0
        %v685 = vpop.f32.mrb[0].mxu0
        %v686 = vadd.f32 %v630, %v685
        %v687 = vpop.f32.mrb[0].mxu0
        %688 = vdwg.mxu0
        %v689 = vmax.f32 %v683, 0.0
        %v690 = vmax.f32 %v686, 0.0
        %v691 = vld [vmem:[%s3] sm:$0xff]
        %v692 = vld [vmem:[%s3 + $0x8] sm:$0x1]
        %v693 = vadd.f32 %v689, %v691
        %v694 = vadd.f32 %v690, %v692
        %v695 = vld [vmem:[%s4] sm:$0xff]
        %v696 = vld [vmem:[%s4 + $0x8] sm:$0x1]
        %v697 = vld [vmem:[#allocation5] sm:$0xff]
        %v698 = vld [vmem:[#allocation5 + $0x8] sm:$0xf]
        %v699 = vld [vmem:[#allocation5 + $0xc] sm:$0xff]
        %v700 = vld [vmem:[#allocation5 + $0x14] sm:$0xf]
        %v701 = vld [vmem:[#allocation5 + $0x18] sm:$0xff]
        %v702 = vld [vmem:[#allocation5 + $0x20] sm:$0xf]
        %v703 = vld [vmem:[#allocation5 + $0x24] sm:$0xff]
        %v704 = vld [vmem:[#allocation5 + $0x2c] sm:$0xf]
        %v705 = vld [vmem:[#allocation5 + $0x30] sm:$0xff]
        %v706 = vld [vmem:[#allocation5 + $0x38] sm:$0xf]
        %v707 = vld [vmem:[#allocation5 + $0x3c] sm:$0xff]
        %v708 = vld [vmem:[#allocation5 + $0x44] sm:$0xf]
        %v709 = vld [vmem:[#allocation5 + $0x48] sm:$0xff]
        %v710 = vld [vmem:[#allocation5 + $0x50] sm:$0xf]
        %v711 = vld [vmem:[#allocation5 + $0x54] sm:$0xff]
        %v712 = vld [vmem:[#allocation5 + $0x5c] sm:$0xf]
        %v713 = vld [vmem:[#allocation5 + $0x60] sm:$0xff]
        %v714 = vld [vmem:[#allocation5 + $0x68] sm:$0xf]
        %v715 = vld [vmem:[#allocation5 + $0x6c] sm:$0xff]
        %v716 = vld [vmem:[#allocation5 + $0x74] sm:$0xf]
        %v717 = vld [vmem:[#allocation5 + $0x78] sm:$0xff]
        %v718 = vld [vmem:[#allocation5 + $0x80] sm:$0xf]
        %v719 = vld [vmem:[#allocation5 + $0x84] sm:$0xff]
        %v720 = vld [vmem:[#allocation5 + $0x8c] sm:$0xf]
        %v721 = vld [vmem:[#allocation5 + $0x90] sm:$0xff]
        %v722 = vld [vmem:[#allocation5 + $0x98] sm:$0xf]
        %v723 = vld [vmem:[#allocation5 + $0x9c] sm:$0xff]
        %v724 = vld [vmem:[#allocation5 + $0xa4] sm:$0xf]
        %v725 = vld [vmem:[#allocation5 + $0xa8] sm:$0xff]
        %v726 = vld [vmem:[#allocation5 + $0xb0] sm:$0xf]
        %v727 = vld [vmem:[#allocation5 + $0xb4] sm:$0xff]
        %v728 = vld [vmem:[#allocation5 + $0xbc] sm:$0xf]
        %v729 = vld [vmem:[#allocation7] sm:$0xf]
        %v730 = vld [vmem:[#allocation7 + $0x4] sm:$0xf]
        %v731 = vld [vmem:[#allocation7 + $0x8] sm:$0xf]
        %v732 = vld [vmem:[#allocation7 + $0xc] sm:$0xf]
        %v733 = vld [vmem:[#allocation7 + $0x10] sm:$0xf]
        %v734 = vld [vmem:[#allocation7 + $0x14] sm:$0xf]
        %v735 = vld [vmem:[#allocation7 + $0x18] sm:$0xf]
        %v736 = vld [vmem:[#allocation7 + $0x1c] sm:$0xf]
        %v737 = vld [vmem:[#allocation7 + $0x20] sm:$0xf]
        %v738 = vld [vmem:[#allocation7 + $0x24] sm:$0xf]
        %v739 = vld [vmem:[#allocation7 + $0x28] sm:$0xf]
        %v740 = vld [vmem:[#allocation7 + $0x2c] sm:$0xf]
        %v741 = vld [vmem:[#allocation7 + $0x30] sm:$0xf]
        %v742 = vld [vmem:[#allocation7 + $0x34] sm:$0xf]
        %v743 = vld [vmem:[#allocation7 + $0x38] sm:$0xf]
        %v744 = vld [vmem:[#allocation7 + $0x3c] sm:$0xf]
        %v745 = vpack.c.bf16 %v694, %v693
        %v746 = vld [vmem:[%s6] sm:$0x7]
        %v748 = vlaneseq
        %v749 = vshrl.u32 %v748, 7
        %v750 = vsub.s32 0, %v749
        %v751 = vrot.slane %v746, %v750
        %v752 = vlaneseq
        %v753 = vshrl.u32 %v752, 7
        %v754 = vsub.s32 1, %v753
        %v755 = vrot.slane %v746, %v754
        %v756 = vlaneseq
        %v757 = vshrl.u32 %v756, 7
        %v758 = vsub.s32 2, %v757
        %v759 = vrot.slane %v746, %v758
        %v795 = vunpack.c.l.b16 %v697
        %v796 = vunpack.c.h.b16 %v697
        %v797 = vunpack.c.l.b16 %v698
        %v798 = vunpack.c.l.b16 %v699
        %v799 = vunpack.c.h.b16 %v699
        %v800 = vunpack.c.l.b16 %v700
        %v801 = vunpack.c.l.b16 %v701
        %v802 = vunpack.c.h.b16 %v701
        %v803 = vunpack.c.l.b16 %v702
        %v804 = vunpack.c.l.b16 %v703
        %v805 = vunpack.c.h.b16 %v703
        %v806 = vunpack.c.l.b16 %v704
        %v807 = vunpack.c.l.b16 %v705
        %v808 = vunpack.c.h.b16 %v705
        %v809 = vunpack.c.l.b16 %v706
        %v810 = vunpack.c.l.b16 %v707
        %v811 = vunpack.c.h.b16 %v707
        %v812 = vunpack.c.l.b16 %v708
        %v813 = vunpack.c.l.b16 %v709
        %v814 = vunpack.c.h.b16 %v709
        %v815 = vunpack.c.l.b16 %v710
        %v816 = vunpack.c.l.b16 %v711
        %v817 = vunpack.c.h.b16 %v711
        %v818 = vunpack.c.l.b16 %v712
        %v819 = vunpack.c.l.b16 %v713
        %v820 = vunpack.c.h.b16 %v713
        %v821 = vunpack.c.l.b16 %v714
        %v822 = vunpack.c.l.b16 %v715
        %v823 = vunpack.c.h.b16 %v715
        %v824 = vunpack.c.l.b16 %v716
        %v825 = vunpack.c.l.b16 %v717
        %v826 = vunpack.c.h.b16 %v717
        %v827 = vunpack.c.l.b16 %v718
        %v828 = vunpack.c.l.b16 %v719
        %v829 = vunpack.c.h.b16 %v719
        %v830 = vunpack.c.l.b16 %v720
        %v831 = vunpack.c.l.b16 %v721
        %v832 = vunpack.c.h.b16 %v721
        %v833 = vunpack.c.l.b16 %v722
        %v834 = vunpack.c.l.b16 %v723
        %v835 = vunpack.c.h.b16 %v723
        %v836 = vunpack.c.l.b16 %v724
        %v837 = vunpack.c.l.b16 %v725
        %v838 = vunpack.c.h.b16 %v725
        %v839 = vunpack.c.l.b16 %v726
        %v840 = vunpack.c.l.b16 %v727
        %v841 = vunpack.c.h.b16 %v727
        %v842 = vunpack.c.l.b16 %v728
        %v843 = vpack.c.b16 %v798, %v795
        %v844 = vpack.c.b16 %v799, %v796
        %v845 = vpack.c.b16 %v800, %v797
        %v846 = vpack.c.b16 %v804, %v801
        %v847 = vpack.c.b16 %v805, %v802
        %v848 = vpack.c.b16 %v806, %v803
        %v849 = vpack.c.b16 %v810, %v807
        %v850 = vpack.c.b16 %v811, %v808
        %v851 = vpack.c.b16 %v812, %v809
        %v852 = vpack.c.b16 %v816, %v813
        %v853 = vpack.c.b16 %v817, %v814
        %v854 = vpack.c.b16 %v818, %v815
        %v855 = vpack.c.b16 %v822, %v819
        %v856 = vpack.c.b16 %v823, %v820
        %v857 = vpack.c.b16 %v824, %v821
        %v858 = vpack.c.b16 %v828, %v825
        %v859 = vpack.c.b16 %v829, %v826
        %v860 = vpack.c.b16 %v830, %v827
        %v861 = vpack.c.b16 %v834, %v831
        %v862 = vpack.c.b16 %v835, %v832
        %v863 = vpack.c.b16 %v836, %v833
        %v864 = vpack.c.b16 %v840, %v837
        %v865 = vpack.c.b16 %v841, %v838
        %v866 = vpack.c.b16 %v842, %v839
        %891 = vmatprep.subr.bf16.mxu0 %v844
        %892 = vmatpush1.bf16.msra.mxu0 %v843
        %893 = vmatprep.subr.bf16.mxu0 %v847
        %894 = vmatpush1.bf16.msra.mxu0 %v846
        %895 = vmatprep.subr.bf16.mxu0 %v850
        %896 = vmatpush1.bf16.msra.mxu0 %v849
        %897 = vmatprep.subr.bf16.mxu0 %v853
        %898 = vmatpush1.bf16.msra.mxu0 %v852
        %899 = vmatprep.subr.bf16.mxu0 %v856
        %900 = vmatpush1.bf16.msra.mxu0 %v855
        %901 = vmatprep.subr.bf16.mxu0 %v859
        %902 = vmatpush1.bf16.msra.mxu0 %v858
        %903 = vmatprep.subr.bf16.mxu0 %v862
        %904 = vmatpush1.bf16.msra.mxu0 %v861
        %905 = vmatprep.subr.bf16.mxu0 %v865
        %906 = vmatpush1.bf16.msra.mxu0 %v864
        %907 = vmatprep.subr.bf16.mxu0 0
        %908 = vmatpush1.bf16.msra.mxu0 0
        %909 = vmatprep.subr.bf16.mxu0 0
        %910 = vmatpush1.bf16.msra.mxu0 0
        %911 = vmatprep.subr.bf16.mxu0 0
        %912 = vmatpush1.bf16.msra.mxu0 0
        %913 = vmatprep.subr.bf16.mxu0 0
        %914 = vmatpush1.bf16.msra.mxu0 0
        %915 = vmatprep.subr.bf16.mxu0 0
        %916 = vmatpush1.bf16.msra.mxu0 0
        %917 = vmatprep.subr.bf16.mxu0 0
        %918 = vmatpush1.bf16.msra.mxu0 0
        %919 = vmatprep.subr.bf16.mxu0 0
        %920 = vmatpush1.bf16.msra.mxu0 0
        %921 = vmatprep.subr.bf16.mxu0 0
        %922 = vmatpush1.bf16.msra.mxu0 0
        %923 = vmatprep.mubr.bf16.mxu0 0
        %924 = vmatmul.mubr.bf16.gmra.mrb[0].mxu0 %v745
        %v925 = vpop.f32.mrb[0].mxu0
        %v926 = vadd.f32 %v751, %v925
        %v927 = vpop.f32.mrb[0].mxu0
        %v928 = vadd.f32 %v755, %v927
        %v929 = vpop.f32.mrb[0].mxu0
        %v930 = vadd.f32 %v751, %v929
        %v931 = vpop.f32.mrb[0].mxu0
        %v932 = vadd.f32 %v755, %v931
        %933 = vdwg.mxu0
        %934 = vmatprep.subr.bf16.mxu0 0
        %935 = vmatpush1.bf16.msra.mxu0 %v845
        %936 = vmatprep.subr.bf16.mxu0 0
        %937 = vmatpush1.bf16.msra.mxu0 %v848
        %938 = vmatprep.subr.bf16.mxu0 0
        %939 = vmatpush1.bf16.msra.mxu0 %v851
        %940 = vmatprep.subr.bf16.mxu0 0
        %941 = vmatpush1.bf16.msra.mxu0 %v854
        %942 = vmatprep.subr.bf16.mxu0 0
        %943 = vmatpush1.bf16.msra.mxu0 %v857
        %944 = vmatprep.subr.bf16.mxu0 0
        %945 = vmatpush1.bf16.msra.mxu0 %v860
        %946 = vmatprep.subr.bf16.mxu0 0
        %947 = vmatpush1.bf16.msra.mxu0 %v863
        %948 = vmatprep.subr.bf16.mxu0 0
        %949 = vmatpush1.bf16.msra.mxu0 %v866
        %950 = vmatprep.subr.bf16.mxu0 0
        %951 = vmatpush1.bf16.msra.mxu0 0
        %952 = vmatprep.subr.bf16.mxu0 0
        %953 = vmatpush1.bf16.msra.mxu0 0
        %954 = vmatprep.subr.bf16.mxu0 0
        %955 = vmatpush1.bf16.msra.mxu0 0
        %956 = vmatprep.subr.bf16.mxu0 0
        %957 = vmatpush1.bf16.msra.mxu0 0
        %958 = vmatprep.subr.bf16.mxu0 0
        %959 = vmatpush1.bf16.msra.mxu0 0
        %960 = vmatprep.subr.bf16.mxu0 0
        %961 = vmatpush1.bf16.msra.mxu0 0
        %962 = vmatprep.subr.bf16.mxu0 0
        %963 = vmatpush1.bf16.msra.mxu0 0
        %964 = vmatprep.subr.bf16.mxu0 0
        %965 = vmatpush1.bf16.msra.mxu0 0
        %966 = vmatprep.mubr.bf16.mxu0 0
        %967 = vmatmul.mubr.bf16.gmra.mrb[0].mxu0 %v745
        %v968 = vpop.f32.mrb[0].mxu0
        %v969 = vadd.f32 %v759, %v968
        %v970 = vpop.f32.mrb[0].mxu0
        %v971 = vpop.f32.mrb[0].mxu0
        %v972 = vadd.f32 %v759, %v971
        %v973 = vpop.f32.mrb[0].mxu0
        %974 = vdwg.mxu0
        %v976 = vsel %vm644, %v926, 0
        %v979 = vsel %vm644, %v930, 0
        %v982 = vsel %vm644, %v928, 0
        %v985 = vsel %vm644, %v932, 0
        %987 = vmatprep.subr.mxu0 0.0
        %988 = vmatpush1.xpose.msra.mxu0 %v982
        %989 = vmatprep.subr.mxu0 0.0
        %990 = vmatpush1.xpose.msra.mxu0 %v985
        %991 = vmatprep.subr.mxu0 0.0
        %992 = vmatpush1.xpose.msra.mxu0 0.0
        %993 = vmatprep.subr.mxu0 0.0
        %994 = vmatpush1.xpose.msra.mxu0 0.0
        %995 = vmatprep.subr.mxu0 0.0
        %996 = vmatpush1.xpose.msra.mxu0 0.0
        %997 = vmatprep.subr.mxu0 0.0
        %998 = vmatpush1.xpose.msra.mxu0 0.0
        %999 = vmatprep.subr.mxu0 0.0
        %1000 = vmatpush1.xpose.msra.mxu0 0.0
        %1001 = vmatprep.subr.mxu0 0.0
        %1002 = vmatpush1.xpose.msra.mxu0 0.0
        %1003 = vmatprep.subr.mxu0 0.0
        %1004 = vmatpush1.xpose.msra.mxu0 0.0
        %1005 = vmatprep.subr.mxu0 0.0
        %1006 = vmatpush1.xpose.msra.mxu0 0.0
        %1007 = vmatprep.subr.mxu0 0.0
        %1008 = vmatpush1.xpose.msra.mxu0 0.0
        %1009 = vmatprep.subr.mxu0 0.0
        %1010 = vmatpush1.xpose.msra.mxu0 0.0
        %1011 = vmatprep.subr.mxu0 0.0
        %1012 = vmatpush1.xpose.msra.mxu0 0.0
        %1013 = vmatprep.subr.mxu0 0.0
        %1014 = vmatpush1.xpose.msra.mxu0 0.0
        %1015 = vmatprep.subr.mxu0 0.0
        %1016 = vmatpush1.xpose.msra.mxu0 0.0
        %1017 = vmatprep.subr.mxu0 0.0
        %1018 = vmatpush1.xpose.msra.mxu0 0.0
        %1019 = vmatprep.subr.mxu0 0.0
        %1020 = vmatpush1.xpose.msra.mxu0 0.0
        %1021 = vmatprep.subr.mxu0 0.0
        %1022 = vmatpush1.xpose.msra.mxu0 0.0
        %1023 = vmatprep.subr.mxu0 0.0
        %1024 = vmatpush1.xpose.msra.mxu0 0.0
        %1025 = vmatprep.subr.mxu0 0.0
        %1026 = vmatpush1.xpose.msra.mxu0 0.0
        %1027 = vmatprep.subr.mxu0 0.0
        %1028 = vmatpush1.xpose.msra.mxu0 0.0
        %1029 = vmatprep.subr.mxu0 0.0
        %1030 = vmatpush1.xpose.msra.mxu0 0.0
        %1031 = vmatprep.subr.mxu0 0.0
        %1032 = vmatpush1.xpose.msra.mxu0 0.0
        %1033 = vmatprep.subr.mxu0 0.0
        %1034 = vmatpush1.xpose.msra.mxu0 0.0
        %1035 = vmatprep.subr.mxu0 0.0
        %1036 = vmatpush1.xpose.msra.mxu0 0.0
        %1037 = vmatprep.subr.mxu0 0.0
        %1038 = vmatpush1.xpose.msra.mxu0 0.0
        %1039 = vmatprep.subr.mxu0 0.0
        %1040 = vmatpush1.xpose.msra.mxu0 0.0
        %1041 = vmatprep.subr.mxu0 0.0
        %1042 = vmatpush1.xpose.msra.mxu0 0.0
        %1043 = vmatprep.subr.mxu0 0.0
        %1044 = vmatpush1.xpose.msra.mxu0 0.0
        %1045 = vmatprep.subr.mxu0 0.0
        %1046 = vmatpush1.xpose.msra.mxu0 0.0
        %1047 = vmatprep.subr.mxu0 0.0
        %1048 = vmatpush1.xpose.msra.mxu0 0.0
        %1049 = vmatprep.subr.mxu0 0.0
        %1050 = vmatpush1.xpose.msra.mxu0 0.0
        %1051 = vmatprep.mubr.f32.mxu0 0.0
        %1052 = vmatmul.mubr.f32.gmra.mrb[0].mxu0 %v976
        %v1053 = vpop.f32.mrb[0].mxu0
        %v1054 = vadd.f32 0.0, %v1053
        %v1055 = vpop.f32.mrb[0].mxu0
        %1056 = vmatprep.mubr.f32.mxu0 0.0
        %1057 = vmatmul.mubr.f32.gmra.mrb[0].mxu0 %v979
        %v1058 = vpop.f32.mrb[0].mxu0
        %v1059 = vadd.f32 0.0, %v1058
        %v1060 = vpop.f32.mrb[0].mxu0
        %1061 = vdwg.mxu0
        %v1062 = vmul.f32 %v1054, 0.17677669
        %v1063 = vmul.f32 %v1059, 0.17677669
        %v1064 = vadd.f32 %v1062, %v695
        %v1065 = vadd.f32 %v1063, %v696
        %vm1066 = vcmask 72704
        %v1067 = vsel %vm1066, %v1064, -inf
        %1068 = vmax.xlane.f32.xlu0 %v1067
        %v1069 = vpop.xlane.xlu0 %1068
        %vm1070 = vcmask 65536
        %v1071 = vsel %vm1070, %v1065, -inf
        %1072 = vmax.xlane.f32.xlu0 %v1071
        %v1073 = vpop.xlane.xlu0 %1072
        %v1074 = vsub.f32 %v1064, %v1069
        %v1075 = vsub.f32 %v1065, %v1073
        %v1076 = vmul.f32 %v1074, 1.442695
        %v1077 = vpow.pop %v1076
        %v1078 = vmul.f32 %v1075, 1.442695
        %v1079 = vpow.pop %v1078
        %v1080 = vsel %vm1066, %v1077, 0.0
        %1081 = vadd.xlane.f32.xlu0 %v1080
        %v1082 = vpop.xlane.xlu0 %1081
        %v1083 = vsel %vm1070, %v1079, 0.0
        %1084 = vadd.xlane.f32.xlu0 %v1083
        %v1085 = vpop.xlane.xlu0 %1084
        %v1086 = vrcp.pop %v1082
        %v1087 = vrcp.pop %v1085
        %v1088 = vmul.f32 %v1077, %v1086
        %v1089 = vmul.f32 %v1079, %v1087
        %v1091 = vsel %vm1066, %v1088, 0
        %v1094 = vsel %vm1066, %v1089, 0
        %vm1096 = vcmask 1040384
        %v1098 = vsel %vm1096, %v972, 0
        %1100 = vmatprep.subr.mxu0 0.0
        %1101 = vmatpush1.msra.mxu0 %v969
        %1102 = vmatprep.subr.mxu0 0.0
        %1103 = vmatpush1.msra.mxu0 %v1098
        %1104 = vmatprep.subr.mxu0 0.0
        %1105 = vmatpush1.msra.mxu0 0.0
        %1106 = vmatprep.subr.mxu0 0.0
        %1107 = vmatpush1.msra.mxu0 0.0
        %1108 = vmatprep.subr.mxu0 0.0
        %1109 = vmatpush1.msra.mxu0 0.0
        %1110 = vmatprep.subr.mxu0 0.0
        %1111 = vmatpush1.msra.mxu0 0.0
        %1112 = vmatprep.subr.mxu0 0.0
        %1113 = vmatpush1.msra.mxu0 0.0
        %1114 = vmatprep.subr.mxu0 0.0
        %1115 = vmatpush1.msra.mxu0 0.0
        %1116 = vmatprep.subr.mxu0 0.0
        %1117 = vmatpush1.msra.mxu0 0.0
        %1118 = vmatprep.subr.mxu0 0.0
        %1119 = vmatpush1.msra.mxu0 0.0
        %1120 = vmatprep.subr.mxu0 0.0
        %1121 = vmatpush1.msra.mxu0 0.0
        %1122 = vmatprep.subr.mxu0 0.0
        %1123 = vmatpush1.msra.mxu0 0.0
        %1124 = vmatprep.subr.mxu0 0.0
        %1125 = vmatpush1.msra.mxu0 0.0
        %1126 = vmatprep.subr.mxu0 0.0
        %1127 = vmatpush1.msra.mxu0 0.0
        %1128 = vmatprep.subr.mxu0 0.0
        %1129 = vmatpush1.msra.mxu0 0.0
        %1130 = vmatprep.subr.mxu0 0.0
        %1131 = vmatpush1.msra.mxu0 0.0
        %1132 = vmatprep.subr.mxu0 0.0
        %1133 = vmatpush1.msra.mxu0 0.0
        %1134 = vmatprep.subr.mxu0 0.0
        %1135 = vmatpush1.msra.mxu0 0.0
        %1136 = vmatprep.subr.mxu0 0.0
        %1137 = vmatpush1.msra.mxu0 0.0
        %1138 = vmatprep.subr.mxu0 0.0
        %1139 = vmatpush1.msra.mxu0 0.0
        %1140 = vmatprep.subr.mxu0 0.0
        %1141 = vmatpush1.msra.mxu0 0.0
        %1142 = vmatprep.subr.mxu0 0.0
        %1143 = vmatpush1.msra.mxu0 0.0
        %1144 = vmatprep.subr.mxu0 0.0
        %1145 = vmatpush1.msra.mxu0 0.0
        %1146 = vmatprep.subr.mxu0 0.0
        %1147 = vmatpush1.msra.mxu0 0.0
        %1148 = vmatprep.subr.mxu0 0.0
        %1149 = vmatpush1.msra.mxu0 0.0
        %1150 = vmatprep.subr.mxu0 0.0
        %1151 = vmatpush1.msra.mxu0 0.0
        %1152 = vmatprep.subr.mxu0 0.0
        %1153 = vmatpush1.msra.mxu0 0.0
        %1154 = vmatprep.subr.mxu0 0.0
        %1155 = vmatpush1.msra.mxu0 0.0
        %1156 = vmatprep.subr.mxu0 0.0
        %1157 = vmatpush1.msra.mxu0 0.0
        %1158 = vmatprep.subr.mxu0 0.0
        %1159 = vmatpush1.msra.mxu0 0.0
        %1160 = vmatprep.subr.mxu0 0.0
        %1161 = vmatpush1.msra.mxu0 0.0
        %1162 = vmatprep.subr.mxu0 0.0
        %1163 = vmatpush1.msra.mxu0 0.0
        %1164 = vmatprep.mubr.f32.mxu0 0.0
        %1165 = vmatmul.mubr.f32.gmra.mrb[0].mxu0 %v1091
        %v1166 = vpop.f32.mrb[0].mxu0
        %v1167 = vadd.f32 0.0, %v1166
        %v1168 = vpop.f32.mrb[0].mxu0
        %1169 = vmatprep.mubr.f32.mxu0 0.0
        %1170 = vmatmul.mubr.f32.gmra.mrb[0].mxu0 %v1094
        %v1171 = vpop.f32.mrb[0].mxu0
        %v1172 = vadd.f32 0.0, %v1171
        %v1173 = vpop.f32.mrb[0].mxu0
        %1174 = vdwg.mxu0
        %v1175 = vpack.c.bf16 %v1172, %v1167
        %1176 = vrot.lane.b32.xlu0 %v926, 96
        %v1177 = vpop.permute.xlu0 %1176
        %1178 = vrot.lane.b32.xlu0 %v930, 96
        %v1179 = vpop.permute.xlu0 %1178
        %1180 = vrot.lane.b32.xlu0 %v928, 96
        %v1181 = vpop.permute.xlu0 %1180
        %1182 = vrot.lane.b32.xlu0 %v932, 96
        %v1183 = vpop.permute.xlu0 %1182
        %v1184 = vsel %vm644, %v1177, 0
        %v1186 = vsel %vm644, %v1179, 0
        %v1188 = vsel %vm644, %v1181, 0
        %v1190 = vsel %vm644, %v1183, 0
        %1192 = vmatprep.subr.mxu0 0.0
        %1193 = vmatpush1.xpose.msra.mxu0 %v1188
        %1194 = vmatprep.subr.mxu0 0.0
        %1195 = vmatpush1.xpose.msra.mxu0 %v1190
        %1196 = vmatprep.subr.mxu0 0.0
        %1197 = vmatpush1.xpose.msra.mxu0 0.0
        %1198 = vmatprep.subr.mxu0 0.0
        %1199 = vmatpush1.xpose.msra.mxu0 0.0
        %1200 = vmatprep.subr.mxu0 0.0
        %1201 = vmatpush1.xpose.msra.mxu0 0.0
        %1202 = vmatprep.subr.mxu0 0.0
        %1203 = vmatpush1.xpose.msra.mxu0 0.0
        %1204 = vmatprep.subr.mxu0 0.0
        %1205 = vmatpush1.xpose.msra.mxu0 0.0
        %1206 = vmatprep.subr.mxu0 0.0
        %1207 = vmatpush1.xpose.msra.mxu0 0.0
        %1208 = vmatprep.subr.mxu0 0.0
        %1209 = vmatpush1.xpose.msra.mxu0 0.0
        %1210 = vmatprep.subr.mxu0 0.0
        %1211 = vmatpush1.xpose.msra.mxu0 0.0
        %1212 = vmatprep.subr.mxu0 0.0
        %1213 = vmatpush1.xpose.msra.mxu0 0.0
        %1214 = vmatprep.subr.mxu0 0.0
        %1215 = vmatpush1.xpose.msra.mxu0 0.0
        %1216 = vmatprep.subr.mxu0 0.0
        %1217 = vmatpush1.xpose.msra.mxu0 0.0
        %1218 = vmatprep.subr.mxu0 0.0
        %1219 = vmatpush1.xpose.msra.mxu0 0.0
        %1220 = vmatprep.subr.mxu0 0.0
        %1221 = vmatpush1.xpose.msra.mxu0 0.0
        %1222 = vmatprep.subr.mxu0 0.0
        %1223 = vmatpush1.xpose.msra.mxu0 0.0
        %1224 = vmatprep.subr.mxu0 0.0
        %1225 = vmatpush1.xpose.msra.mxu0 0.0
        %1226 = vmatprep.subr.mxu0 0.0
        %1227 = vmatpush1.xpose.msra.mxu0 0.0
        %1228 = vmatprep.subr.mxu0 0.0
        %1229 = vmatpush1.xpose.msra.mxu0 0.0
        %1230 = vmatprep.subr.mxu0 0.0
        %1231 = vmatpush1.xpose.msra.mxu0 0.0
        %1232 = vmatprep.subr.mxu0 0.0
        %1233 = vmatpush1.xpose.msra.mxu0 0.0
        %1234 = vmatprep.subr.mxu0 0.0
        %1235 = vmatpush1.xpose.msra.mxu0 0.0
        %1236 = vmatprep.subr.mxu0 0.0
        %1237 = vmatpush1.xpose.msra.mxu0 0.0
        %1238 = vmatprep.subr.mxu0 0.0
        %1239 = vmatpush1.xpose.msra.mxu0 0.0
        %1240 = vmatprep.subr.mxu0 0.0
        %1241 = vmatpush1.xpose.msra.mxu0 0.0
        %1242 = vmatprep.subr.mxu0 0.0
        %1243 = vmatpush1.xpose.msra.mxu0 0.0
        %1244 = vmatprep.subr.mxu0 0.0
        %1245 = vmatpush1.xpose.msra.mxu0 0.0
        %1246 = vmatprep.subr.mxu0 0.0
        %1247 = vmatpush1.xpose.msra.mxu0 0.0
        %1248 = vmatprep.subr.mxu0 0.0
        %1249 = vmatpush1.xpose.msra.mxu0 0.0
        %1250 = vmatprep.subr.mxu0 0.0
        %1251 = vmatpush1.xpose.msra.mxu0 0.0
        %1252 = vmatprep.subr.mxu0 0.0
        %1253 = vmatpush1.xpose.msra.mxu0 0.0
        %1254 = vmatprep.subr.mxu0 0.0
        %1255 = vmatpush1.xpose.msra.mxu0 0.0
        %1256 = vmatprep.mubr.f32.mxu0 0.0
        %1257 = vmatmul.mubr.f32.gmra.mrb[0].mxu0 %v1184
        %v1258 = vpop.f32.mrb[0].mxu0
        %v1259 = vadd.f32 0.0, %v1258
        %v1260 = vpop.f32.mrb[0].mxu0
        %1261 = vmatprep.mubr.f32.mxu0 0.0
        %1262 = vmatmul.mubr.f32.gmra.mrb[0].mxu0 %v1186
        %v1263 = vpop.f32.mrb[0].mxu0
        %v1264 = vadd.f32 0.0, %v1263
        %v1265 = vpop.f32.mrb[0].mxu0
        %1266 = vdwg.mxu0
        %v1267 = vmul.f32 %v1259, 0.17677669
        %v1268 = vmul.f32 %v1264, 0.17677669
        %v1269 = vadd.f32 %v1267, %v695
        %v1270 = vadd.f32 %v1268, %v696
        %v1271 = vsel %vm1066, %v1269, -inf
        %1272 = vmax.xlane.f32.xlu0 %v1271
        %v1273 = vpop.xlane.xlu0 %1272
        %v1274 = vsel %vm1070, %v1270, -inf
        %1275 = vmax.xlane.f32.xlu0 %v1274
        %v1276 = vpop.xlane.xlu0 %1275
        %v1277 = vsub.f32 %v1269, %v1273
        %v1278 = vsub.f32 %v1270, %v1276
        %v1279 = vmul.f32 %v1277, 1.442695
        %v1280 = vpow.pop %v1279
        %v1281 = vmul.f32 %v1278, 1.442695
        %v1282 = vpow.pop %v1281
        %v1283 = vsel %vm1066, %v1280, 0.0
        %1284 = vadd.xlane.f32.xlu0 %v1283
        %v1285 = vpop.xlane.xlu0 %1284
        %v1286 = vsel %vm1070, %v1282, 0.0
        %1287 = vadd.xlane.f32.xlu0 %v1286
        %v1288 = vpop.xlane.xlu0 %1287
        %v1289 = vrcp.pop %v1285
        %v1290 = vrcp.pop %v1288
        %v1291 = vmul.f32 %v1280, %v1289
        %v1292 = vmul.f32 %v1282, %v1290
        %1294 = vrot.lane.b32.xlu0 %v969, 96
        %v1295 = vpop.permute.xlu0 %1294
        %1296 = vrot.lane.b32.xlu0 %v972, 96
        %v1297 = vpop.permute.xlu0 %1296
        %v1300 = vsel %vm1066, %v1291, 0
        %v1303 = vsel %vm1066, %v1292, 0
        %v1305 = vsel %vm1096, %v1297, 0
        %1307 = vmatprep.subr.mxu0 0.0
        %1308 = vmatpush1.msra.mxu0 %v1295
        %1309 = vmatprep.subr.mxu0 0.0
        %1310 = vmatpush1.msra.mxu0 %v1305
        %1311 = vmatprep.subr.mxu0 0.0
        %1312 = vmatpush1.msra.mxu0 0.0
        %1313 = vmatprep.subr.mxu0 0.0
        %1314 = vmatpush1.msra.mxu0 0.0
        %1315 = vmatprep.subr.mxu0 0.0
        %1316 = vmatpush1.msra.mxu0 0.0
        %1317 = vmatprep.subr.mxu0 0.0
        %1318 = vmatpush1.msra.mxu0 0.0
        %1319 = vmatprep.subr.mxu0 0.0
        %1320 = vmatpush1.msra.mxu0 0.0
        %1321 = vmatprep.subr.mxu0 0.0
        %1322 = vmatpush1.msra.mxu0 0.0
        %1323 = vmatprep.subr.mxu0 0.0
        %1324 = vmatpush1.msra.mxu0 0.0
        %1325 = vmatprep.subr.mxu0 0.0
        %1326 = vmatpush1.msra.mxu0 0.0
        %1327 = vmatprep.subr.mxu0 0.0
        %1328 = vmatpush1.msra.mxu0 0.0
        %1329 = vmatprep.subr.mxu0 0.0
        %1330 = vmatpush1.msra.mxu0 0.0
        %1331 = vmatprep.subr.mxu0 0.0
        %1332 = vmatpush1.msra.mxu0 0.0
        %1333 = vmatprep.subr.mxu0 0.0
        %1334 = vmatpush1.msra.mxu0 0.0
        %1335 = vmatprep.subr.mxu0 0.0
        %1336 = vmatpush1.msra.mxu0 0.0
        %1337 = vmatprep.subr.mxu0 0.0
        %1338 = vmatpush1.msra.mxu0 0.0
        %1339 = vmatprep.subr.mxu0 0.0
        %1340 = vmatpush1.msra.mxu0 0.0
        %1341 = vmatprep.subr.mxu0 0.0
        %1342 = vmatpush1.msra.mxu0 0.0
        %1343 = vmatprep.subr.mxu0 0.0
        %1344 = vmatpush1.msra.mxu0 0.0
        %1345 = vmatprep.subr.mxu0 0.0
        %1346 = vmatpush1.msra.mxu0 0.0
        %1347 = vmatprep.subr.mxu0 0.0
        %1348 = vmatpush1.msra.mxu0 0.0
        %1349 = vmatprep.subr.mxu0 0.0
        %1350 = vmatpush1.msra.mxu0 0.0
        %1351 = vmatprep.subr.mxu0 0.0
        %1352 = vmatpush1.msra.mxu0 0.0
        %1353 = vmatprep.subr.mxu0 0.0
        %1354 = vmatpush1.msra.mxu0 0.0
        %1355 = vmatprep.subr.mxu0 0.0
        %1356 = vmatpush1.msra.mxu0 0.0
        %1357 = vmatprep.subr.mxu0 0.0
        %1358 = vmatpush1.msra.mxu0 0.0
        %1359 = vmatprep.subr.mxu0 0.0
        %1360 = vmatpush1.msra.mxu0 0.0
        %1361 = vmatprep.subr.mxu0 0.0
        %1362 = vmatpush1.msra.mxu0 0.0
        %1363 = vmatprep.subr.mxu0 0.0
        %1364 = vmatpush1.msra.mxu0 0.0
        %1365 = vmatprep.subr.mxu0 0.0
        %1366 = vmatpush1.msra.mxu0 0.0
        %1367 = vmatprep.subr.mxu0 0.0
        %1368 = vmatpush1.msra.mxu0 0.0
        %1369 = vmatprep.subr.mxu0 0.0
        %1370 = vmatpush1.msra.mxu0 0.0
        %1371 = vmatprep.mubr.f32.mxu0 0.0
        %1372 = vmatmul.mubr.f32.gmra.mrb[0].mxu0 %v1300
        %v1373 = vpop.f32.mrb[0].mxu0
        %v1374 = vadd.f32 0.0, %v1373
        %v1375 = vpop.f32.mrb[0].mxu0
        %1376 = vmatprep.mubr.f32.mxu0 0.0
        %1377 = vmatmul.mubr.f32.gmra.mrb[0].mxu0 %v1303
        %v1378 = vpop.f32.mrb[0].mxu0
        %v1379 = vadd.f32 0.0, %v1378
        %v1380 = vpop.f32.mrb[0].mxu0
        %1381 = vdwg.mxu0
        %v1382 = vpack.c.bf16 %v1379, %v1374
        %v1387 = vunpack.c.l.b16 %v733
        %v1388 = vunpack.c.l.b16 %v734
        %v1389 = vunpack.c.l.b16 %v735
        %v1390 = vunpack.c.l.b16 %v736
        %v1391 = vpack.c.b16 %v1388, %v1387
        %v1392 = vpack.c.b16 %v1390, %v1389
        %v1396 = vsel %vm644, %v1382, 0
        %1398 = vmatprep.subr.bf16.mxu0 0
        %1399 = vmatpush1.bf16.msra.mxu0 %v1391
        %1400 = vmatprep.subr.bf16.mxu0 0
        %1401 = vmatpush1.bf16.msra.mxu0 %v1392
        %1402 = vmatprep.subr.bf16.mxu0 0
        %1403 = vmatpush1.bf16.msra.mxu0 0
        %1404 = vmatprep.subr.bf16.mxu0 0
        %1405 = vmatpush1.bf16.msra.mxu0 0
        %1406 = vmatprep.subr.bf16.mxu0 0
        %1407 = vmatpush1.bf16.msra.mxu0 0
        %1408 = vmatprep.subr.bf16.mxu0 0
        %1409 = vmatpush1.bf16.msra.mxu0 0
        %1410 = vmatprep.subr.bf16.mxu0 0
        %1411 = vmatpush1.bf16.msra.mxu0 0
        %1412 = vmatprep.subr.bf16.mxu0 0
        %1413 = vmatpush1.bf16.msra.mxu0 0
        %1414 = vmatprep.subr.bf16.mxu0 0
        %1415 = vmatpush1.bf16.msra.mxu0 0
        %1416 = vmatprep.subr.bf16.mxu0 0
        %1417 = vmatpush1.bf16.msra.mxu0 0
        %1418 = vmatprep.subr.bf16.mxu0 0
        %1419 = vmatpush1.bf16.msra.mxu0 0
        %1420 = vmatprep.subr.bf16.mxu0 0
        %1421 = vmatpush1.bf16.msra.mxu0 0
        %1422 = vmatprep.subr.bf16.mxu0 0
        %1423 = vmatpush1.bf16.msra.mxu0 0
        %1424 = vmatprep.subr.bf16.mxu0 0
        %1425 = vmatpush1.bf16.msra.mxu0 0
        %1426 = vmatprep.subr.bf16.mxu0 0
        %1427 = vmatpush1.bf16.msra.mxu0 0
        %1428 = vmatprep.subr.bf16.mxu0 0
        %1429 = vmatpush1.bf16.msra.mxu0 0
        %1430 = vmatprep.mubr.bf16.mxu0 0
        %1431 = vmatmul.mubr.bf16.gmra.mrb[0].mxu0 %v1396
        %v1432 = vpop.f32.mrb[0].mxu0
        %v1433 = vadd.f32 0.0, %v1432
        %v1434 = vpop.f32.mrb[0].mxu0
        %v1435 = vpop.f32.mrb[0].mxu0
        %v1436 = vadd.f32 0.0, %v1435
        %v1437 = vpop.f32.mrb[0].mxu0
        %1438 = vdwg.mxu0
        %v1443 = vunpack.c.l.b16 %v729
        %v1444 = vunpack.c.l.b16 %v730
        %v1445 = vunpack.c.l.b16 %v731
        %v1446 = vunpack.c.l.b16 %v732
        %v1447 = vpack.c.b16 %v1444, %v1443
        %v1448 = vpack.c.b16 %v1446, %v1445
        %v1452 = vsel %vm644, %v1175, 0
        %1454 = vmatprep.subr.bf16.mxu0 0
        %1455 = vmatpush1.bf16.msra.mxu0 %v1447
        %1456 = vmatprep.subr.bf16.mxu0 0
        %1457 = vmatpush1.bf16.msra.mxu0 %v1448
        %1458 = vmatprep.subr.bf16.mxu0 0
        %1459 = vmatpush1.bf16.msra.mxu0 0
        %1460 = vmatprep.subr.bf16.mxu0 0
        %1461 = vmatpush1.bf16.msra.mxu0 0
        %1462 = vmatprep.subr.bf16.mxu0 0
        %1463 = vmatpush1.bf16.msra.mxu0 0
        %1464 = vmatprep.subr.bf16.mxu0 0
        %1465 = vmatpush1.bf16.msra.mxu0 0
        %1466 = vmatprep.subr.bf16.mxu0 0
        %1467 = vmatpush1.bf16.msra.mxu0 0
        %1468 = vmatprep.subr.bf16.mxu0 0
        %1469 = vmatpush1.bf16.msra.mxu0 0
        %1470 = vmatprep.subr.bf16.mxu0 0
        %1471 = vmatpush1.bf16.msra.mxu0 0
        %1472 = vmatprep.subr.bf16.mxu0 0
        %1473 = vmatpush1.bf16.msra.mxu0 0
        %1474 = vmatprep.subr.bf16.mxu0 0
        %1475 = vmatpush1.bf16.msra.mxu0 0
        %1476 = vmatprep.subr.bf16.mxu0 0
        %1477 = vmatpush1.bf16.msra.mxu0 0
        %1478 = vmatprep.subr.bf16.mxu0 0
        %1479 = vmatpush1.bf16.msra.mxu0 0
        %1480 = vmatprep.subr.bf16.mxu0 0
        %1481 = vmatpush1.bf16.msra.mxu0 0
        %1482 = vmatprep.subr.bf16.mxu0 0
        %1483 = vmatpush1.bf16.msra.mxu0 0
        %1484 = vmatprep.subr.bf16.mxu0 0
        %1485 = vmatpush1.bf16.msra.mxu0 0
        %1486 = vmatprep.mubr.bf16.mxu0 0
        %1487 = vmatmul.mubr.bf16.gmra.mrb[0].mxu0 %v1452
        %v1488 = vpop.f32.mrb[0].mxu0
        %v1489 = vadd.f32 %v1433, %v1488
        %v1490 = vpop.f32.mrb[0].mxu0
        %v1491 = vpop.f32.mrb[0].mxu0
        %v1492 = vadd.f32 %v1436, %v1491
        %v1493 = vpop.f32.mrb[0].mxu0
        %1494 = vdwg.mxu0
        %1495 = vrot.lane.b32.xlu0 %v926, 64
        %v1496 = vpop.permute.xlu0 %1495
        %1497 = vrot.lane.b32.xlu0 %v930, 64
        %v1498 = vpop.permute.xlu0 %1497
        %1499 = vrot.lane.b32.xlu0 %v928, 64
        %v1500 = vpop.permute.xlu0 %1499
        %1501 = vrot.lane.b32.xlu0 %v932, 64
        %v1502 = vpop.permute.xlu0 %1501
        %v1503 = vsel %vm644, %v1496, 0
        %v1505 = vsel %vm644, %v1498, 0
        %v1507 = vsel %vm644, %v1500, 0
        %v1509 = vsel %vm644, %v1502, 0
        %1511 = vmatprep.subr.mxu0 0.0
        %1512 = vmatpush1.xpose.msra.mxu0 %v1507
        %1513 = vmatprep.subr.mxu0 0.0
        %1514 = vmatpush1.xpose.msra.mxu0 %v1509
        %1515 = vmatprep.subr.mxu0 0.0
        %1516 = vmatpush1.xpose.msra.mxu0 0.0
        %1517 = vmatprep.subr.mxu0 0.0
        %1518 = vmatpush1.xpose.msra.mxu0 0.0
        %1519 = vmatprep.subr.mxu0 0.0
        %1520 = vmatpush1.xpose.msra.mxu0 0.0
        %1521 = vmatprep.subr.mxu0 0.0
        %1522 = vmatpush1.xpose.msra.mxu0 0.0
        %1523 = vmatprep.subr.mxu0 0.0
        %1524 = vmatpush1.xpose.msra.mxu0 0.0
        %1525 = vmatprep.subr.mxu0 0.0
        %1526 = vmatpush1.xpose.msra.mxu0 0.0
        %1527 = vmatprep.subr.mxu0 0.0
        %1528 = vmatpush1.xpose.msra.mxu0 0.0
        %1529 = vmatprep.subr.mxu0 0.0
        %1530 = vmatpush1.xpose.msra.mxu0 0.0
        %1531 = vmatprep.subr.mxu0 0.0
        %1532 = vmatpush1.xpose.msra.mxu0 0.0
        %1533 = vmatprep.subr.mxu0 0.0
        %1534 = vmatpush1.xpose.msra.mxu0 0.0
        %1535 = vmatprep.subr.mxu0 0.0
        %1536 = vmatpush1.xpose.msra.mxu0 0.0
        %1537 = vmatprep.subr.mxu0 0.0
        %1538 = vmatpush1.xpose.msra.mxu0 0.0
        %1539 = vmatprep.subr.mxu0 0.0
        %1540 = vmatpush1.xpose.msra.mxu0 0.0
        %1541 = vmatprep.subr.mxu0 0.0
        %1542 = vmatpush1.xpose.msra.mxu0 0.0
        %1543 = vmatprep.subr.mxu0 0.0
        %1544 = vmatpush1.xpose.msra.mxu0 0.0
        %1545 = vmatprep.subr.mxu0 0.0
        %1546 = vmatpush1.xpose.msra.mxu0 0.0
        %1547 = vmatprep.subr.mxu0 0.0
        %1548 = vmatpush1.xpose.msra.mxu0 0.0
        %1549 = vmatprep.subr.mxu0 0.0
        %1550 = vmatpush1.xpose.msra.mxu0 0.0
        %1551 = vmatprep.subr.mxu0 0.0
        %1552 = vmatpush1.xpose.msra.mxu0 0.0
        %1553 = vmatprep.subr.mxu0 0.0
        %1554 = vmatpush1.xpose.msra.mxu0 0.0
        %1555 = vmatprep.subr.mxu0 0.0
        %1556 = vmatpush1.xpose.msra.mxu0 0.0
        %1557 = vmatprep.subr.mxu0 0.0
        %1558 = vmatpush1.xpose.msra.mxu0 0.0
        %1559 = vmatprep.subr.mxu0 0.0
        %1560 = vmatpush1.xpose.msra.mxu0 0.0
        %1561 = vmatprep.subr.mxu0 0.0
        %1562 = vmatpush1.xpose.msra.mxu0 0.0
        %1563 = vmatprep.subr.mxu0 0.0
        %1564 = vmatpush1.xpose.msra.mxu0 0.0
        %1565 = vmatprep.subr.mxu0 0.0
        %1566 = vmatpush1.xpose.msra.mxu0 0.0
        %1567 = vmatprep.subr.mxu0 0.0
        %1568 = vmatpush1.xpose.msra.mxu0 0.0
        %1569 = vmatprep.subr.mxu0 0.0
        %1570 = vmatpush1.xpose.msra.mxu0 0.0
        %1571 = vmatprep.subr.mxu0 0.0
        %1572 = vmatpush1.xpose.msra.mxu0 0.0
        %1573 = vmatprep.subr.mxu0 0.0
        %1574 = vmatpush1.xpose.msra.mxu0 0.0
        %1575 = vmatprep.mubr.f32.mxu0 0.0
        %1576 = vmatmul.mubr.f32.gmra.mrb[0].mxu0 %v1503
        %v1577 = vpop.f32.mrb[0].mxu0
        %v1578 = vadd.f32 0.0, %v1577
        %v1579 = vpop.f32.mrb[0].mxu0
        %1580 = vmatprep.mubr.f32.mxu0 0.0
        %1581 = vmatmul.mubr.f32.gmra.mrb[0].mxu0 %v1505
        %v1582 = vpop.f32.mrb[0].mxu0
        %v1583 = vadd.f32 0.0, %v1582
        %v1584 = vpop.f32.mrb[0].mxu0
        %1585 = vdwg.mxu0
        %v1586 = vmul.f32 %v1578, 0.17677669
        %v1587 = vmul.f32 %v1583, 0.17677669
        %v1588 = vadd.f32 %v1586, %v695
        %v1589 = vadd.f32 %v1587, %v696
        %v1590 = vsel %vm1066, %v1588, -inf
        %1591 = vmax.xlane.f32.xlu0 %v1590
        %v1592 = vpop.xlane.xlu0 %1591
        %v1593 = vsel %vm1070, %v1589, -inf
        %1594 = vmax.xlane.f32.xlu0 %v1593
        %v1595 = vpop.xlane.xlu0 %1594
        %v1596 = vsub.f32 %v1588, %v1592
        %v1597 = vsub.f32 %v1589, %v1595
        %v1598 = vmul.f32 %v1596, 1.442695
        %v1599 = vpow.pop %v1598
        %v1600 = vmul.f32 %v1597, 1.442695
        %v1601 = vpow.pop %v1600
        %v1602 = vsel %vm1066, %v1599, 0.0
        %1603 = vadd.xlane.f32.xlu0 %v1602
        %v1604 = vpop.xlane.xlu0 %1603
        %v1605 = vsel %vm1070, %v1601, 0.0
        %1606 = vadd.xlane.f32.xlu0 %v1605
        %v1607 = vpop.xlane.xlu0 %1606
        %v1608 = vrcp.pop %v1604
        %v1609 = vrcp.pop %v1607
        %v1610 = vmul.f32 %v1599, %v1608
        %v1611 = vmul.f32 %v1601, %v1609
        %1612 = vrot.lane.b32.xlu0 %v969, 64
        %v1613 = vpop.permute.xlu0 %1612
        %1614 = vrot.lane.b32.xlu0 %v972, 64
        %v1615 = vpop.permute.xlu0 %1614
        %v1618 = vsel %vm1066, %v1610, 0
        %v1621 = vsel %vm1066, %v1611, 0
        %v1623 = vsel %vm1096, %v1615, 0
        %1625 = vmatprep.subr.mxu0 0.0
        %1626 = vmatpush1.msra.mxu0 %v1613
        %1627 = vmatprep.subr.mxu0 0.0
        %1628 = vmatpush1.msra.mxu0 %v1623
        %1629 = vmatprep.subr.mxu0 0.0
        %1630 = vmatpush1.msra.mxu0 0.0
        %1631 = vmatprep.subr.mxu0 0.0
        %1632 = vmatpush1.msra.mxu0 0.0
        %1633 = vmatprep.subr.mxu0 0.0
        %1634 = vmatpush1.msra.mxu0 0.0
        %1635 = vmatprep.subr.mxu0 0.0
        %1636 = vmatpush1.msra.mxu0 0.0
        %1637 = vmatprep.subr.mxu0 0.0
        %1638 = vmatpush1.msra.mxu0 0.0
        %1639 = vmatprep.subr.mxu0 0.0
        %1640 = vmatpush1.msra.mxu0 0.0
        %1641 = vmatprep.subr.mxu0 0.0
        %1642 = vmatpush1.msra.mxu0 0.0
        %1643 = vmatprep.subr.mxu0 0.0
        %1644 = vmatpush1.msra.mxu0 0.0
        %1645 = vmatprep.subr.mxu0 0.0
        %1646 = vmatpush1.msra.mxu0 0.0
        %1647 = vmatprep.subr.mxu0 0.0
        %1648 = vmatpush1.msra.mxu0 0.0
        %1649 = vmatprep.subr.mxu0 0.0
        %1650 = vmatpush1.msra.mxu0 0.0
        %1651 = vmatprep.subr.mxu0 0.0
        %1652 = vmatpush1.msra.mxu0 0.0
        %1653 = vmatprep.subr.mxu0 0.0
        %1654 = vmatpush1.msra.mxu0 0.0
        %1655 = vmatprep.subr.mxu0 0.0
        %1656 = vmatpush1.msra.mxu0 0.0
        %1657 = vmatprep.subr.mxu0 0.0
        %1658 = vmatpush1.msra.mxu0 0.0
        %1659 = vmatprep.subr.mxu0 0.0
        %1660 = vmatpush1.msra.mxu0 0.0
        %1661 = vmatprep.subr.mxu0 0.0
        %1662 = vmatpush1.msra.mxu0 0.0
        %1663 = vmatprep.subr.mxu0 0.0
        %1664 = vmatpush1.msra.mxu0 0.0
        %1665 = vmatprep.subr.mxu0 0.0
        %1666 = vmatpush1.msra.mxu0 0.0
        %1667 = vmatprep.subr.mxu0 0.0
        %1668 = vmatpush1.msra.mxu0 0.0
        %1669 = vmatprep.subr.mxu0 0.0
        %1670 = vmatpush1.msra.mxu0 0.0
        %1671 = vmatprep.subr.mxu0 0.0
        %1672 = vmatpush1.msra.mxu0 0.0
        %1673 = vmatprep.subr.mxu0 0.0
        %1674 = vmatpush1.msra.mxu0 0.0
        %1675 = vmatprep.subr.mxu0 0.0
        %1676 = vmatpush1.msra.mxu0 0.0
        %1677 = vmatprep.subr.mxu0 0.0
        %1678 = vmatpush1.msra.mxu0 0.0
        %1679 = vmatprep.subr.mxu0 0.0
        %1680 = vmatpush1.msra.mxu0 0.0
        %1681 = vmatprep.subr.mxu0 0.0
        %1682 = vmatpush1.msra.mxu0 0.0
        %1683 = vmatprep.subr.mxu0 0.0
        %1684 = vmatpush1.msra.mxu0 0.0
        %1685 = vmatprep.subr.mxu0 0.0
        %1686 = vmatpush1.msra.mxu0 0.0
        %1687 = vmatprep.subr.mxu0 0.0
        %1688 = vmatpush1.msra.mxu0 0.0
        %1689 = vmatprep.mubr.f32.mxu0 0.0
        %1690 = vmatmul.mubr.f32.gmra.mrb[0].mxu0 %v1618
        %v1691 = vpop.f32.mrb[0].mxu0
        %v1692 = vadd.f32 0.0, %v1691
        %v1693 = vpop.f32.mrb[0].mxu0
        %1694 = vmatprep.mubr.f32.mxu0 0.0
        %1695 = vmatmul.mubr.f32.gmra.mrb[0].mxu0 %v1621
        %v1696 = vpop.f32.mrb[0].mxu0
        %v1697 = vadd.f32 0.0, %v1696
        %v1698 = vpop.f32.mrb[0].mxu0
        %1699 = vdwg.mxu0
        %v1700 = vpack.c.bf16 %v1697, %v1692
        %v1705 = vunpack.c.l.b16 %v737
        %v1706 = vunpack.c.l.b16 %v738
        %v1707 = vunpack.c.l.b16 %v739
        %v1708 = vunpack.c.l.b16 %v740
        %v1709 = vpack.c.b16 %v1706, %v1705
        %v1710 = vpack.c.b16 %v1708, %v1707
        %v1714 = vsel %vm644, %v1700, 0
        %1716 = vmatprep.subr.bf16.mxu0 0
        %1717 = vmatpush1.bf16.msra.mxu0 %v1709
        %1718 = vmatprep.subr.bf16.mxu0 0
        %1719 = vmatpush1.bf16.msra.mxu0 %v1710
        %1720 = vmatprep.subr.bf16.mxu0 0
        %1721 = vmatpush1.bf16.msra.mxu0 0
        %1722 = vmatprep.subr.bf16.mxu0 0
        %1723 = vmatpush1.bf16.msra.mxu0 0
        %1724 = vmatprep.subr.bf16.mxu0 0
        %1725 = vmatpush1.bf16.msra.mxu0 0
        %1726 = vmatprep.subr.bf16.mxu0 0
        %1727 = vmatpush1.bf16.msra.mxu0 0
        %1728 = vmatprep.subr.bf16.mxu0 0
        %1729 = vmatpush1.bf16.msra.mxu0 0
        %1730 = vmatprep.subr.bf16.mxu0 0
        %1731 = vmatpush1.bf16.msra.mxu0 0
        %1732 = vmatprep.subr.bf16.mxu0 0
        %1733 = vmatpush1.bf16.msra.mxu0 0
        %1734 = vmatprep.subr.bf16.mxu0 0
        %1735 = vmatpush1.bf16.msra.mxu0 0
        %1736 = vmatprep.subr.bf16.mxu0 0
        %1737 = vmatpush1.bf16.msra.mxu0 0
        %1738 = vmatprep.subr.bf16.mxu0 0
        %1739 = vmatpush1.bf16.msra.mxu0 0
        %1740 = vmatprep.subr.bf16.mxu0 0
        %1741 = vmatpush1.bf16.msra.mxu0 0
        %1742 = vmatprep.subr.bf16.mxu0 0
        %1743 = vmatpush1.bf16.msra.mxu0 0
        %1744 = vmatprep.subr.bf16.mxu0 0
        %1745 = vmatpush1.bf16.msra.mxu0 0
        %1746 = vmatprep.subr.bf16.mxu0 0
        %1747 = vmatpush1.bf16.msra.mxu0 0
        %1748 = vmatprep.mubr.bf16.mxu0 0
        %1749 = vmatmul.mubr.bf16.gmra.mrb[0].mxu0 %v1714
        %v1750 = vpop.f32.mrb[0].mxu0
        %v1751 = vadd.f32 0.0, %v1750
        %v1752 = vpop.f32.mrb[0].mxu0
        %v1753 = vpop.f32.mrb[0].mxu0
        %v1754 = vadd.f32 0.0, %v1753
        %v1755 = vpop.f32.mrb[0].mxu0
        %1756 = vdwg.mxu0
        %v1757 = vadd.f32 %v1489, %v1751
        %v1758 = vadd.f32 %v1492, %v1754
        %1759 = vrot.lane.b32.xlu0 %v926, 32
        %v1760 = vpop.permute.xlu0 %1759
        %1761 = vrot.lane.b32.xlu0 %v930, 32
        %v1762 = vpop.permute.xlu0 %1761
        %1763 = vrot.lane.b32.xlu0 %v928, 32
        %v1764 = vpop.permute.xlu0 %1763
        %1765 = vrot.lane.b32.xlu0 %v932, 32
        %v1766 = vpop.permute.xlu0 %1765
        %v1767 = vsel %vm644, %v1760, 0
        %v1769 = vsel %vm644, %v1762, 0
        %v1771 = vsel %vm644, %v1764, 0
        %v1773 = vsel %vm644, %v1766, 0
        %1775 = vmatprep.subr.mxu0 0.0
        %1776 = vmatpush1.xpose.msra.mxu0 %v1771
        %1777 = vmatprep.subr.mxu0 0.0
        %1778 = vmatpush1.xpose.msra.mxu0 %v1773
        %1779 = vmatprep.subr.mxu0 0.0
        %1780 = vmatpush1.xpose.msra.mxu0 0.0
        %1781 = vmatprep.subr.mxu0 0.0
        %1782 = vmatpush1.xpose.msra.mxu0 0.0
        %1783 = vmatprep.subr.mxu0 0.0
        %1784 = vmatpush1.xpose.msra.mxu0 0.0
        %1785 = vmatprep.subr.mxu0 0.0
        %1786 = vmatpush1.xpose.msra.mxu0 0.0
        %1787 = vmatprep.subr.mxu0 0.0
        %1788 = vmatpush1.xpose.msra.mxu0 0.0
        %1789 = vmatprep.subr.mxu0 0.0
        %1790 = vmatpush1.xpose.msra.mxu0 0.0
        %1791 = vmatprep.subr.mxu0 0.0
        %1792 = vmatpush1.xpose.msra.mxu0 0.0
        %1793 = vmatprep.subr.mxu0 0.0
        %1794 = vmatpush1.xpose.msra.mxu0 0.0
        %1795 = vmatprep.subr.mxu0 0.0
        %1796 = vmatpush1.xpose.msra.mxu0 0.0
        %1797 = vmatprep.subr.mxu0 0.0
        %1798 = vmatpush1.xpose.msra.mxu0 0.0
        %1799 = vmatprep.subr.mxu0 0.0
        %1800 = vmatpush1.xpose.msra.mxu0 0.0
        %1801 = vmatprep.subr.mxu0 0.0
        %1802 = vmatpush1.xpose.msra.mxu0 0.0
        %1803 = vmatprep.subr.mxu0 0.0
        %1804 = vmatpush1.xpose.msra.mxu0 0.0
        %1805 = vmatprep.subr.mxu0 0.0
        %1806 = vmatpush1.xpose.msra.mxu0 0.0
        %1807 = vmatprep.subr.mxu0 0.0
        %1808 = vmatpush1.xpose.msra.mxu0 0.0
        %1809 = vmatprep.subr.mxu0 0.0
        %1810 = vmatpush1.xpose.msra.mxu0 0.0
        %1811 = vmatprep.subr.mxu0 0.0
        %1812 = vmatpush1.xpose.msra.mxu0 0.0
        %1813 = vmatprep.subr.mxu0 0.0
        %1814 = vmatpush1.xpose.msra.mxu0 0.0
        %1815 = vmatprep.subr.mxu0 0.0
        %1816 = vmatpush1.xpose.msra.mxu0 0.0
        %1817 = vmatprep.subr.mxu0 0.0
        %1818 = vmatpush1.xpose.msra.mxu0 0.0
        %1819 = vmatprep.subr.mxu0 0.0
        %1820 = vmatpush1.xpose.msra.mxu0 0.0
        %1821 = vmatprep.subr.mxu0 0.0
        %1822 = vmatpush1.xpose.msra.mxu0 0.0
        %1823 = vmatprep.subr.mxu0 0.0
        %1824 = vmatpush1.xpose.msra.mxu0 0.0
        %1825 = vmatprep.subr.mxu0 0.0
        %1826 = vmatpush1.xpose.msra.mxu0 0.0
        %1827 = vmatprep.subr.mxu0 0.0
        %1828 = vmatpush1.xpose.msra.mxu0 0.0
        %1829 = vmatprep.subr.mxu0 0.0
        %1830 = vmatpush1.xpose.msra.mxu0 0.0
        %1831 = vmatprep.subr.mxu0 0.0
        %1832 = vmatpush1.xpose.msra.mxu0 0.0
        %1833 = vmatprep.subr.mxu0 0.0
        %1834 = vmatpush1.xpose.msra.mxu0 0.0
        %1835 = vmatprep.subr.mxu0 0.0
        %1836 = vmatpush1.xpose.msra.mxu0 0.0
        %1837 = vmatprep.subr.mxu0 0.0
        %1838 = vmatpush1.xpose.msra.mxu0 0.0
        %1839 = vmatprep.mubr.f32.mxu0 0.0
        %1840 = vmatmul.mubr.f32.gmra.mrb[0].mxu0 %v1767
        %v1841 = vpop.f32.mrb[0].mxu0
        %v1842 = vadd.f32 0.0, %v1841
        %v1843 = vpop.f32.mrb[0].mxu0
        %1844 = vmatprep.mubr.f32.mxu0 0.0
        %1845 = vmatmul.mubr.f32.gmra.mrb[0].mxu0 %v1769
        %v1846 = vpop.f32.mrb[0].mxu0
        %v1847 = vadd.f32 0.0, %v1846
        %v1848 = vpop.f32.mrb[0].mxu0
        %1849 = vdwg.mxu0
        %v1850 = vmul.f32 %v1842, 0.17677669
        %v1851 = vmul.f32 %v1847, 0.17677669
        %v1852 = vadd.f32 %v1850, %v695
        %v1853 = vadd.f32 %v1851, %v696
        %v1854 = vsel %vm1066, %v1852, -inf
        %1855 = vmax.xlane.f32.xlu0 %v1854
        %v1856 = vpop.xlane.xlu0 %1855
        %v1857 = vsel %vm1070, %v1853, -inf
        %1858 = vmax.xlane.f32.xlu0 %v1857
        %v1859 = vpop.xlane.xlu0 %1858
        %v1860 = vsub.f32 %v1852, %v1856
        %v1861 = vsub.f32 %v1853, %v1859
        %v1862 = vmul.f32 %v1860, 1.442695
        %v1863 = vpow.pop %v1862
        %v1864 = vmul.f32 %v1861, 1.442695
        %v1865 = vpow.pop %v1864
        %v1866 = vsel %vm1066, %v1863, 0.0
        %1867 = vadd.xlane.f32.xlu0 %v1866
        %v1868 = vpop.xlane.xlu0 %1867
        %v1869 = vsel %vm1070, %v1865, 0.0
        %1870 = vadd.xlane.f32.xlu0 %v1869
        %v1871 = vpop.xlane.xlu0 %1870
        %v1872 = vrcp.pop %v1868
        %v1873 = vrcp.pop %v1871
        %v1874 = vmul.f32 %v1863, %v1872
        %v1875 = vmul.f32 %v1865, %v1873
        %1876 = vrot.lane.b32.xlu0 %v969, 32
        %v1877 = vpop.permute.xlu0 %1876
        %1878 = vrot.lane.b32.xlu0 %v972, 32
        %v1879 = vpop.permute.xlu0 %1878
        %v1882 = vsel %vm1066, %v1874, 0
        %v1885 = vsel %vm1066, %v1875, 0
        %v1887 = vsel %vm1096, %v1879, 0
        %1889 = vmatprep.subr.mxu0 0.0
        %1890 = vmatpush1.msra.mxu0 %v1877
        %1891 = vmatprep.subr.mxu0 0.0
        %1892 = vmatpush1.msra.mxu0 %v1887
        %1893 = vmatprep.subr.mxu0 0.0
        %1894 = vmatpush1.msra.mxu0 0.0
        %1895 = vmatprep.subr.mxu0 0.0
        %1896 = vmatpush1.msra.mxu0 0.0
        %1897 = vmatprep.subr.mxu0 0.0
        %1898 = vmatpush1.msra.mxu0 0.0
        %1899 = vmatprep.subr.mxu0 0.0
        %1900 = vmatpush1.msra.mxu0 0.0
        %1901 = vmatprep.subr.mxu0 0.0
        %1902 = vmatpush1.msra.mxu0 0.0
        %1903 = vmatprep.subr.mxu0 0.0
        %1904 = vmatpush1.msra.mxu0 0.0
        %1905 = vmatprep.subr.mxu0 0.0
        %1906 = vmatpush1.msra.mxu0 0.0
        %1907 = vmatprep.subr.mxu0 0.0
        %1908 = vmatpush1.msra.mxu0 0.0
        %1909 = vmatprep.subr.mxu0 0.0
        %1910 = vmatpush1.msra.mxu0 0.0
        %1911 = vmatprep.subr.mxu0 0.0
        %1912 = vmatpush1.msra.mxu0 0.0
        %1913 = vmatprep.subr.mxu0 0.0
        %1914 = vmatpush1.msra.mxu0 0.0
        %1915 = vmatprep.subr.mxu0 0.0
        %1916 = vmatpush1.msra.mxu0 0.0
        %1917 = vmatprep.subr.mxu0 0.0
        %1918 = vmatpush1.msra.mxu0 0.0
        %1919 = vmatprep.subr.mxu0 0.0
        %1920 = vmatpush1.msra.mxu0 0.0
        %1921 = vmatprep.subr.mxu0 0.0
        %1922 = vmatpush1.msra.mxu0 0.0
        %1923 = vmatprep.subr.mxu0 0.0
        %1924 = vmatpush1.msra.mxu0 0.0
        %1925 = vmatprep.subr.mxu0 0.0
        %1926 = vmatpush1.msra.mxu0 0.0
        %1927 = vmatprep.subr.mxu0 0.0
        %1928 = vmatpush1.msra.mxu0 0.0
        %1929 = vmatprep.subr.mxu0 0.0
        %1930 = vmatpush1.msra.mxu0 0.0
        %1931 = vmatprep.subr.mxu0 0.0
        %1932 = vmatpush1.msra.mxu0 0.0
        %1933 = vmatprep.subr.mxu0 0.0
        %1934 = vmatpush1.msra.mxu0 0.0
        %1935 = vmatprep.subr.mxu0 0.0
        %1936 = vmatpush1.msra.mxu0 0.0
        %1937 = vmatprep.subr.mxu0 0.0
        %1938 = vmatpush1.msra.mxu0 0.0
        %1939 = vmatprep.subr.mxu0 0.0
        %1940 = vmatpush1.msra.mxu0 0.0
        %1941 = vmatprep.subr.mxu0 0.0
        %1942 = vmatpush1.msra.mxu0 0.0
        %1943 = vmatprep.subr.mxu0 0.0
        %1944 = vmatpush1.msra.mxu0 0.0
        %1945 = vmatprep.subr.mxu0 0.0
        %1946 = vmatpush1.msra.mxu0 0.0
        %1947 = vmatprep.subr.mxu0 0.0
        %1948 = vmatpush1.msra.mxu0 0.0
        %1949 = vmatprep.subr.mxu0 0.0
        %1950 = vmatpush1.msra.mxu0 0.0
        %1951 = vmatprep.subr.mxu0 0.0
        %1952 = vmatpush1.msra.mxu0 0.0
        %1953 = vmatprep.mubr.f32.mxu0 0.0
        %1954 = vmatmul.mubr.f32.gmra.mrb[0].mxu0 %v1882
        %v1955 = vpop.f32.mrb[0].mxu0
        %v1956 = vadd.f32 0.0, %v1955
        %v1957 = vpop.f32.mrb[0].mxu0
        %1958 = vmatprep.mubr.f32.mxu0 0.0
        %1959 = vmatmul.mubr.f32.gmra.mrb[0].mxu0 %v1885
        %v1960 = vpop.f32.mrb[0].mxu0
        %v1961 = vadd.f32 0.0, %v1960
        %v1962 = vpop.f32.mrb[0].mxu0
        %1963 = vdwg.mxu0
        %v1964 = vpack.c.bf16 %v1961, %v1956
        %v1969 = vunpack.c.l.b16 %v741
        %v1970 = vunpack.c.l.b16 %v742
        %v1971 = vunpack.c.l.b16 %v743
        %v1972 = vunpack.c.l.b16 %v744
        %v1973 = vpack.c.b16 %v1970, %v1969
        %v1974 = vpack.c.b16 %v1972, %v1971
        %v1978 = vsel %vm644, %v1964, 0
        %1980 = vmatprep.subr.bf16.mxu0 0
        %1981 = vmatpush1.bf16.msra.mxu0 %v1973
        %1982 = vmatprep.subr.bf16.mxu0 0
        %1983 = vmatpush1.bf16.msra.mxu0 %v1974
        %1984 = vmatprep.subr.bf16.mxu0 0
        %1985 = vmatpush1.bf16.msra.mxu0 0
        %1986 = vmatprep.subr.bf16.mxu0 0
        %1987 = vmatpush1.bf16.msra.mxu0 0
        %1988 = vmatprep.subr.bf16.mxu0 0
        %1989 = vmatpush1.bf16.msra.mxu0 0
        %1990 = vmatprep.subr.bf16.mxu0 0
        %1991 = vmatpush1.bf16.msra.mxu0 0
        %1992 = vmatprep.subr.bf16.mxu0 0
        %1993 = vmatpush1.bf16.msra.mxu0 0
        %1994 = vmatprep.subr.bf16.mxu0 0
        %1995 = vmatpush1.bf16.msra.mxu0 0
        %1996 = vmatprep.subr.bf16.mxu0 0
        %1997 = vmatpush1.bf16.msra.mxu0 0
        %1998 = vmatprep.subr.bf16.mxu0 0
        %1999 = vmatpush1.bf16.msra.mxu0 0
        %2000 = vmatprep.subr.bf16.mxu0 0
        %2001 = vmatpush1.bf16.msra.mxu0 0
        %2002 = vmatprep.subr.bf16.mxu0 0
        %2003 = vmatpush1.bf16.msra.mxu0 0
        %2004 = vmatprep.subr.bf16.mxu0 0
        %2005 = vmatpush1.bf16.msra.mxu0 0
        %2006 = vmatprep.subr.bf16.mxu0 0
        %2007 = vmatpush1.bf16.msra.mxu0 0
        %2008 = vmatprep.subr.bf16.mxu0 0
        %2009 = vmatpush1.bf16.msra.mxu0 0
        %2010 = vmatprep.subr.bf16.mxu0 0
        %2011 = vmatpush1.bf16.msra.mxu0 0
        %2012 = vmatprep.mubr.bf16.mxu0 0
        %2013 = vmatmul.mubr.bf16.gmra.mrb[0].mxu0 %v1978
        %v2014 = vpop.f32.mrb[0].mxu0
        %v2015 = vadd.f32 0.0, %v2014
        %v2016 = vpop.f32.mrb[0].mxu0
        %v2017 = vpop.f32.mrb[0].mxu0
        %v2018 = vadd.f32 0.0, %v2017
        %v2019 = vpop.f32.mrb[0].mxu0
        %2020 = vdwg.mxu0
        %v2021 = vadd.f32 %v1757, %v2015
        %v2022 = vadd.f32 %v1758, %v2018
        %v2023 = vld [vmem:[%s8] sm:$0x1]
        %v2025 = vlaneseq
        %v2026 = vshrl.u32 %v2025, 7
        %v2027 = vsub.s32 0, %v2026
        %v2028 = vrot.slane %v2023, %v2027
        %v2030 = vadd.f32 %v2021, %v2028
        %v2031 = vadd.f32 %v2022, %v2028
        %v2032 = vadd.f32 %v693, %v2030
        %v2033 = vadd.f32 %v694, %v2031
        %2034 = vadd.xlane.f32.xlu0 %v2032
        %v2035 = vpop.xlane.xlu0 %2034
        %v2036 = vsel %vm1096, %v2033, 0.0
        %2037 = vadd.xlane.f32.xlu0 %v2036
        %v2038 = vpop.xlane.xlu0 %2037
        %v2039 = vrcp.pop 128.0
        %v2040 = vmul.f32 %v2035, %v2039
        %v2041 = vmul.f32 %v2038, %v2039
        %v2042 = vsub.f32 %v2032, %v2040
        %v2043 = vsub.f32 %v2033, %v2041
        %v2044 = vmul.f32 %v2042, %v2042
        %v2045 = vmul.f32 %v2043, %v2043
        %2046 = vadd.xlane.f32.xlu0 %v2044
        %v2047 = vpop.xlane.xlu0 %2046
        %v2048 = vsel %vm1096, %v2045, 0.0
        %2049 = vadd.xlane.f32.xlu0 %v2048
        %v2050 = vpop.xlane.xlu0 %2049
        %v2051 = vmul.f32 %v2047, %v2039
        %v2052 = vmul.f32 %v2050, %v2039
        %v2053 = vadd.f32 %v2051, 1e-05
        %v2054 = vadd.f32 %v2052, 1e-05
        %v2055 = vrsqrt.pop %v2053
        %v2056 = vrsqrt.pop %v2054
        %v2057 = vmul.f32 %v2042, %v2055
        %v2058 = vmul.f32 %v2043, %v2056
        %v2059 = vld [vmem:[%s13] sm:$0x1]
        %v2061 = vlaneseq
        %v2062 = vshrl.u32 %v2061, 7
        %v2063 = vsub.s32 0, %v2062
        %v2064 = vrot.slane %v2059, %v2063
        %v2066 = vmul.f32 %v2057, %v2064
        %v2067 = vmul.f32 %v2058, %v2064
        %v2068 = vld [vmem:[%s14] sm:$0x1]
        %v2070 = vlaneseq
        %v2071 = vshrl.u32 %v2070, 7
        %v2072 = vsub.s32 0, %v2071
        %v2073 = vrot.slane %v2068, %v2072
        %v2075 = vadd.f32 %v2066, %v2073
        %v2076 = vadd.f32 %v2067, %v2073
        %v2077 = vpack.c.bf16 %v2076, %v2075
        %v2078 = vld [vmem:[#allocation8] sm:$0xff]
        %v2079 = vld [vmem:[#allocation8 + $0x8] sm:$0xff]
        %v2080 = vld [vmem:[#allocation8 + $0x10] sm:$0xff]
        %v2081 = vld [vmem:[#allocation8 + $0x18] sm:$0xff]
        %v2082 = vld [vmem:[#allocation8 + $0x20] sm:$0xff]
        %v2083 = vld [vmem:[#allocation8 + $0x28] sm:$0xff]
        %v2084 = vld [vmem:[#allocation8 + $0x30] sm:$0xff]
        %v2085 = vld [vmem:[#allocation8 + $0x38] sm:$0xff]
        %v2086 = vld [vmem:[#allocation8 + $0x40] sm:$0xff]
        %v2087 = vld [vmem:[#allocation8 + $0x48] sm:$0xff]
        %v2088 = vld [vmem:[#allocation8 + $0x50] sm:$0xff]
        %v2089 = vld [vmem:[#allocation8 + $0x58] sm:$0xff]
        %v2090 = vld [vmem:[#allocation8 + $0x60] sm:$0xff]
        %v2091 = vld [vmem:[#allocation8 + $0x68] sm:$0xff]
        %v2092 = vld [vmem:[#allocation8 + $0x70] sm:$0xff]
        %v2093 = vld [vmem:[#allocation8 + $0x78] sm:$0xff]
        %v2094 = vld [vmem:[%s10] sm:$0x3]
        %v2096 = vlaneseq
        %v2097 = vshrl.u32 %v2096, 7
        %v2098 = vsub.s32 0, %v2097
        %v2099 = vrot.slane %v2094, %v2098
        %v2100 = vlaneseq
        %v2101 = vshrl.u32 %v2100, 7
        %v2102 = vsub.s32 1, %v2101
        %v2103 = vrot.slane %v2094, %v2102
        %v2122 = vunpack.c.l.b16 %v2078
        %v2123 = vunpack.c.h.b16 %v2078
        %v2124 = vunpack.c.l.b16 %v2079
        %v2125 = vunpack.c.h.b16 %v2079
        %v2126 = vunpack.c.l.b16 %v2080
        %v2127 = vunpack.c.h.b16 %v2080
        %v2128 = vunpack.c.l.b16 %v2081
        %v2129 = vunpack.c.h.b16 %v2081
        %v2130 = vunpack.c.l.b16 %v2082
        %v2131 = vunpack.c.h.b16 %v2082
        %v2132 = vunpack.c.l.b16 %v2083
        %v2133 = vunpack.c.h.b16 %v2083
        %v2134 = vunpack.c.l.b16 %v2084
        %v2135 = vunpack.c.h.b16 %v2084
        %v2136 = vunpack.c.l.b16 %v2085
        %v2137 = vunpack.c.h.b16 %v2085
        %v2138 = vunpack.c.l.b16 %v2086
        %v2139 = vunpack.c.h.b16 %v2086
        %v2140 = vunpack.c.l.b16 %v2087
        %v2141 = vunpack.c.h.b16 %v2087
        %v2142 = vunpack.c.l.b16 %v2088
        %v2143 = vunpack.c.h.b16 %v2088
        %v2144 = vunpack.c.l.b16 %v2089
        %v2145 = vunpack.c.h.b16 %v2089
        %v2146 = vunpack.c.l.b16 %v2090
        %v2147 = vunpack.c.h.b16 %v2090
        %v2148 = vunpack.c.l.b16 %v2091
        %v2149 = vunpack.c.h.b16 %v2091
        %v2150 = vunpack.c.l.b16 %v2092
        %v2151 = vunpack.c.h.b16 %v2092
        %v2152 = vunpack.c.l.b16 %v2093
        %v2153 = vunpack.c.h.b16 %v2093
        %v2154 = vpack.c.b16 %v2124, %v2122
        %v2155 = vpack.c.b16 %v2125, %v2123
        %v2156 = vpack.c.b16 %v2128, %v2126
        %v2157 = vpack.c.b16 %v2129, %v2127
        %v2158 = vpack.c.b16 %v2132, %v2130
        %v2159 = vpack.c.b16 %v2133, %v2131
        %v2160 = vpack.c.b16 %v2136, %v2134
        %v2161 = vpack.c.b16 %v2137, %v2135
        %v2162 = vpack.c.b16 %v2140, %v2138
        %v2163 = vpack.c.b16 %v2141, %v2139
        %v2164 = vpack.c.b16 %v2144, %v2142
        %v2165 = vpack.c.b16 %v2145, %v2143
        %v2166 = vpack.c.b16 %v2148, %v2146
        %v2167 = vpack.c.b16 %v2149, %v2147
        %v2168 = vpack.c.b16 %v2152, %v2150
        %v2169 = vpack.c.b16 %v2153, %v2151
        %2186 = vmatprep.subr.bf16.mxu0 %v2155
        %2187 = vmatpush1.bf16.msra.mxu0 %v2154
        %2188 = vmatprep.subr.bf16.mxu0 %v2157
        %2189 = vmatpush1.bf16.msra.mxu0 %v2156
        %2190 = vmatprep.subr.bf16.mxu0 %v2159
        %2191 = vmatpush1.bf16.msra.mxu0 %v2158
        %2192 = vmatprep.subr.bf16.mxu0 %v2161
        %2193 = vmatpush1.bf16.msra.mxu0 %v2160
        %2194 = vmatprep.subr.bf16.mxu0 %v2163
        %2195 = vmatpush1.bf16.msra.mxu0 %v2162
        %2196 = vmatprep.subr.bf16.mxu0 %v2165
        %2197 = vmatpush1.bf16.msra.mxu0 %v2164
        %2198 = vmatprep.subr.bf16.mxu0 %v2167
        %2199 = vmatpush1.bf16.msra.mxu0 %v2166
        %2200 = vmatprep.subr.bf16.mxu0 %v2169
        %2201 = vmatpush1.bf16.msra.mxu0 %v2168
        %2202 = vmatprep.subr.bf16.mxu0 0
        %2203 = vmatpush1.bf16.msra.mxu0 0
        %2204 = vmatprep.subr.bf16.mxu0 0
        %2205 = vmatpush1.bf16.msra.mxu0 0
        %2206 = vmatprep.subr.bf16.mxu0 0
        %2207 = vmatpush1.bf16.msra.mxu0 0
        %2208 = vmatprep.subr.bf16.mxu0 0
        %2209 = vmatpush1.bf16.msra.mxu0 0
        %2210 = vmatprep.subr.bf16.mxu0 0
        %2211 = vmatpush1.bf16.msra.mxu0 0
        %2212 = vmatprep.subr.bf16.mxu0 0
        %2213 = vmatpush1.bf16.msra.mxu0 0
        %2214 = vmatprep.subr.bf16.mxu0 0
        %2215 = vmatpush1.bf16.msra.mxu0 0
        %2216 = vmatprep.subr.bf16.mxu0 0
        %2217 = vmatpush1.bf16.msra.mxu0 0
        %2218 = vmatprep.mubr.bf16.mxu0 0
        %2219 = vmatmul.mubr.bf16.gmra.mrb[0].mxu0 %v2077
        %v2220 = vpop.f32.mrb[0].mxu0
        %v2221 = vadd.f32 %v2099, %v2220
        %v2222 = vpop.f32.mrb[0].mxu0
        %v2223 = vadd.f32 %v2103, %v2222
        %v2224 = vpop.f32.mrb[0].mxu0
        %v2225 = vadd.f32 %v2099, %v2224
        %v2226 = vpop.f32.mrb[0].mxu0
        %v2227 = vadd.f32 %v2103, %v2226
        %2228 = vdwg.mxu0
        %v2229 = vmax.f32 %v2221, 0.0
        %v2230 = vmax.f32 %v2223, 0.0
        %v2231 = vmax.f32 %v2225, 0.0
        %v2232 = vmax.f32 %v2227, 0.0
        %v2233 = vpack.c.bf16 %v2231, %v2229
        %v2234 = vpack.c.bf16 %v2232, %v2230
        %v2235 = vld [vmem:[#allocation10] sm:$0xf]
        %v2236 = vld [vmem:[#allocation10 + $0x4] sm:$0xf]
        %v2237 = vld [vmem:[#allocation10 + $0x8] sm:$0xf]
        %v2238 = vld [vmem:[#allocation10 + $0xc] sm:$0xf]
        %v2239 = vld [vmem:[#allocation10 + $0x10] sm:$0xf]
        %v2240 = vld [vmem:[#allocation10 + $0x14] sm:$0xf]
        %v2241 = vld [vmem:[#allocation10 + $0x18] sm:$0xf]
        %v2242 = vld [vmem:[#allocation10 + $0x1c] sm:$0xf]
        %v2243 = vld [vmem:[#allocation10 + $0x20] sm:$0xf]
        %v2244 = vld [vmem:[#allocation10 + $0x24] sm:$0xf]
        %v2245 = vld [vmem:[#allocation10 + $0x28] sm:$0xf]
        %v2246 = vld [vmem:[#allocation10 + $0x2c] sm:$0xf]
        %v2247 = vld [vmem:[#allocation10 + $0x30] sm:$0xf]
        %v2248 = vld [vmem:[#allocation10 + $0x34] sm:$0xf]
        %v2249 = vld [vmem:[#allocation10 + $0x38] sm:$0xf]
        %v2250 = vld [vmem:[#allocation10 + $0x3c] sm:$0xf]
        %v2251 = vld [vmem:[#allocation10 + $0x40] sm:$0xf]
        %v2252 = vld [vmem:[#allocation10 + $0x44] sm:$0xf]
        %v2253 = vld [vmem:[#allocation10 + $0x48] sm:$0xf]
        %v2254 = vld [vmem:[#allocation10 + $0x4c] sm:$0xf]
        %v2255 = vld [vmem:[#allocation10 + $0x50] sm:$0xf]
        %v2256 = vld [vmem:[#allocation10 + $0x54] sm:$0xf]
        %v2257 = vld [vmem:[#allocation10 + $0x58] sm:$0xf]
        %v2258 = vld [vmem:[#allocation10 + $0x5c] sm:$0xf]
        %v2259 = vld [vmem:[#allocation10 + $0x60] sm:$0xf]
        %v2260 = vld [vmem:[#allocation10 + $0x64] sm:$0xf]
        %v2261 = vld [vmem:[#allocation10 + $0x68] sm:$0xf]
        %v2262 = vld [vmem:[#allocation10 + $0x6c] sm:$0xf]
        %v2263 = vld [vmem:[#allocation10 + $0x70] sm:$0xf]
        %v2264 = vld [vmem:[#allocation10 + $0x74] sm:$0xf]
        %v2265 = vld [vmem:[#allocation10 + $0x78] sm:$0xf]
        %v2266 = vld [vmem:[#allocation10 + $0x7c] sm:$0xf]
        %v2267 = vld [vmem:[%s12] sm:$0x1]
        %v2269 = vlaneseq
        %v2270 = vshrl.u32 %v2269, 7
        %v2271 = vsub.s32 0, %v2270
        %v2272 = vrot.slane %v2267, %v2271
        %v2306 = vunpack.c.l.b16 %v2235
        %v2307 = vunpack.c.l.b16 %v2236
        %v2308 = vunpack.c.l.b16 %v2237
        %v2309 = vunpack.c.l.b16 %v2238
        %v2310 = vunpack.c.l.b16 %v2239
        %v2311 = vunpack.c.l.b16 %v2240
        %v2312 = vunpack.c.l.b16 %v2241
        %v2313 = vunpack.c.l.b16 %v2242
        %v2314 = vunpack.c.l.b16 %v2243
        %v2315 = vunpack.c.l.b16 %v2244
        %v2316 = vunpack.c.l.b16 %v2245
        %v2317 = vunpack.c.l.b16 %v2246
        %v2318 = vunpack.c.l.b16 %v2247
        %v2319 = vunpack.c.l.b16 %v2248
        %v2320 = vunpack.c.l.b16 %v2249
        %v2321 = vunpack.c.l.b16 %v2250
        %v2322 = vunpack.c.l.b16 %v2251
        %v2323 = vunpack.c.l.b16 %v2252
        %v2324 = vunpack.c.l.b16 %v2253
        %v2325 = vunpack.c.l.b16 %v2254
        %v2326 = vunpack.c.l.b16 %v2255
        %v2327 = vunpack.c.l.b16 %v2256
        %v2328 = vunpack.c.l.b16 %v2257
        %v2329 = vunpack.c.l.b16 %v2258
        %v2330 = vunpack.c.l.b16 %v2259
        %v2331 = vunpack.c.l.b16 %v2260
        %v2332 = vunpack.c.l.b16 %v2261
        %v2333 = vunpack.c.l.b16 %v2262
        %v2334 = vunpack.c.l.b16 %v2263
        %v2335 = vunpack.c.l.b16 %v2264
        %v2336 = vunpack.c.l.b16 %v2265
        %v2337 = vunpack.c.l.b16 %v2266
        %v2338 = vpack.c.b16 %v2307, %v2306
        %v2339 = vpack.c.b16 %v2309, %v2308
        %v2340 = vpack.c.b16 %v2311, %v2310
        %v2341 = vpack.c.b16 %v2313, %v2312
        %v2342 = vpack.c.b16 %v2315, %v2314
        %v2343 = vpack.c.b16 %v2317, %v2316
        %v2344 = vpack.c.b16 %v2319, %v2318
        %v2345 = vpack.c.b16 %v2321, %v2320
        %v2346 = vpack.c.b16 %v2323, %v2322
        %v2347 = vpack.c.b16 %v2325, %v2324
        %v2348 = vpack.c.b16 %v2327, %v2326
        %v2349 = vpack.c.b16 %v2329, %v2328
        %v2350 = vpack.c.b16 %v2331, %v2330
        %v2351 = vpack.c.b16 %v2333, %v2332
        %v2352 = vpack.c.b16 %v2335, %v2334
        %v2353 = vpack.c.b16 %v2337, %v2336
        %2370 = vmatprep.subr.bf16.mxu0 0
        %2371 = vmatpush1.bf16.msra.mxu0 %v2338
        %2372 = vmatprep.subr.bf16.mxu0 0
        %2373 = vmatpush1.bf16.msra.mxu0 %v2339
        %2374 = vmatprep.subr.bf16.mxu0 0
        %2375 = vmatpush1.bf16.msra.mxu0 %v2340
        %2376 = vmatprep.subr.bf16.mxu0 0
        %2377 = vmatpush1.bf16.msra.mxu0 %v2341
        %2378 = vmatprep.subr.bf16.mxu0 0
        %2379 = vmatpush1.bf16.msra.mxu0 %v2342
        %2380 = vmatprep.subr.bf16.mxu0 0
        %2381 = vmatpush1.bf16.msra.mxu0 %v2343
        %2382 = vmatprep.subr.bf16.mxu0 0
        %2383 = vmatpush1.bf16.msra.mxu0 %v2344
        %2384 = vmatprep.subr.bf16.mxu0 0
        %2385 = vmatpush1.bf16.msra.mxu0 %v2345
        %2386 = vmatprep.subr.bf16.mxu0 0
        %2387 = vmatpush1.bf16.msra.mxu0 %v2346
        %2388 = vmatprep.subr.bf16.mxu0 0
        %2389 = vmatpush1.bf16.msra.mxu0 %v2347
        %2390 = vmatprep.subr.bf16.mxu0 0
        %2391 = vmatpush1.bf16.msra.mxu0 %v2348
        %2392 = vmatprep.subr.bf16.mxu0 0
        %2393 = vmatpush1.bf16.msra.mxu0 %v2349
        %2394 = vmatprep.subr.bf16.mxu0 0
        %2395 = vmatpush1.bf16.msra.mxu0 %v2350
        %2396 = vmatprep.subr.bf16.mxu0 0
        %2397 = vmatpush1.bf16.msra.mxu0 %v2351
        %2398 = vmatprep.subr.bf16.mxu0 0
        %2399 = vmatpush1.bf16.msra.mxu0 %v2352
        %2400 = vmatprep.subr.bf16.mxu0 0
        %2401 = vmatpush1.bf16.msra.mxu0 %v2353
        %2402 = vmatprep.mubr.bf16.mxu0 %v2234
        %2403 = vmatmul.mubr.bf16.gmra.mrb[0].mxu0 %v2233
        %v2404 = vpop.f32.mrb[0].mxu0
        %v2405 = vadd.f32 %v2272, %v2404
        %v2406 = vpop.f32.mrb[0].mxu0
        %v2407 = vpop.f32.mrb[0].mxu0
        %v2408 = vadd.f32 %v2272, %v2407
        %v2409 = vpop.f32.mrb[0].mxu0
        %2410 = vdwg.mxu0
        %v2411 = vadd.f32 %v2075, %v2405
        %v2412 = vadd.f32 %v2076, %v2408
        %2413 = vadd.xlane.f32.xlu0 %v2411
        %v2414 = vpop.xlane.xlu0 %2413
        %v2415 = vsel %vm1096, %v2412, 0.0
        %2416 = vadd.xlane.f32.xlu0 %v2415
        %v2417 = vpop.xlane.xlu0 %2416
        %v2418 = vmul.f32 %v2414, %v2039
        %v2419 = vmul.f32 %v2417, %v2039
        %v2420 = vsub.f32 %v2411, %v2418
        %v2421 = vsub.f32 %v2412, %v2419
        %v2422 = vmul.f32 %v2420, %v2420
        %v2423 = vmul.f32 %v2421, %v2421
        %2424 = vadd.xlane.f32.xlu0 %v2422
        %v2425 = vpop.xlane.xlu0 %2424
        %v2426 = vsel %vm1096, %v2423, 0.0
        %2427 = vadd.xlane.f32.xlu0 %v2426
        %v2428 = vpop.xlane.xlu0 %2427
        %v2429 = vmul.f32 %v2425, %v2039
        %v2430 = vmul.f32 %v2428, %v2039
        %v2431 = vadd.f32 %v2429, 1e-05
        %v2432 = vadd.f32 %v2430, 1e-05
        %v2433 = vrsqrt.pop %v2431
        %v2434 = vrsqrt.pop %v2432
        %v2435 = vmul.f32 %v2420, %v2433
        %v2436 = vmul.f32 %v2421, %v2434
        %v2437 = vld [vmem:[%s15] sm:$0x1]
        %v2439 = vlaneseq
        %v2440 = vshrl.u32 %v2439, 7
        %v2441 = vsub.s32 0, %v2440
        %v2442 = vrot.slane %v2437, %v2441
        %v2444 = vmul.f32 %v2435, %v2442
        %v2445 = vmul.f32 %v2436, %v2442
        %v2446 = vld [vmem:[%s16] sm:$0x1]
        %v2448 = vlaneseq
        %v2449 = vshrl.u32 %v2448, 7
        %v2450 = vsub.s32 0, %v2449
        %v2451 = vrot.slane %v2446, %v2450
        %v2453 = vadd.f32 %v2444, %v2451
        %v2454 = vadd.f32 %v2445, %v2451
        %s2455 = scalar_lea.vmem [#allocation5], 192
        %v2456 = vld [vmem:[%s2455] sm:$0xff]
        %v2457 = vld [vmem:[%s2455 + $0x8] sm:$0xf]
        %v2458 = vld [vmem:[%s2455 + $0xc] sm:$0xff]
        %v2459 = vld [vmem:[%s2455 + $0x14] sm:$0xf]
        %v2460 = vld [vmem:[%s2455 + $0x18] sm:$0xff]
        %v2461 = vld [vmem:[%s2455 + $0x20] sm:$0xf]
        %v2462 = vld [vmem:[%s2455 + $0x24] sm:$0xff]
        %v2463 = vld [vmem:[%s2455 + $0x2c] sm:$0xf]
        %v2464 = vld [vmem:[%s2455 + $0x30] sm:$0xff]
        %v2465 = vld [vmem:[%s2455 + $0x38] sm:$0xf]
        %v2466 = vld [vmem:[%s2455 + $0x3c] sm:$0xff]
        %v2467 = vld [vmem:[%s2455 + $0x44] sm:$0xf]
        %v2468 = vld [vmem:[%s2455 + $0x48] sm:$0xff]
        %v2469 = vld [vmem:[%s2455 + $0x50] sm:$0xf]
        %v2470 = vld [vmem:[%s2455 + $0x54] sm:$0xff]
        %v2471 = vld [vmem:[%s2455 + $0x5c] sm:$0xf]
        %v2472 = vld [vmem:[%s2455 + $0x60] sm:$0xff]
        %v2473 = vld [vmem:[%s2455 + $0x68] sm:$0xf]
        %v2474 = vld [vmem:[%s2455 + $0x6c] sm:$0xff]
        %v2475 = vld [vmem:[%s2455 + $0x74] sm:$0xf]
        %v2476 = vld [vmem:[%s2455 + $0x78] sm:$0xff]
        %v2477 = vld [vmem:[%s2455 + $0x80] sm:$0xf]
        %v2478 = vld [vmem:[%s2455 + $0x84] sm:$0xff]
        %v2479 = vld [vmem:[%s2455 + $0x8c] sm:$0xf]
        %v2480 = vld [vmem:[%s2455 + $0x90] sm:$0xff]
        %v2481 = vld [vmem:[%s2455 + $0x98] sm:$0xf]
        %v2482 = vld [vmem:[%s2455 + $0x9c] sm:$0xff]
        %v2483 = vld [vmem:[%s2455 + $0xa4] sm:$0xf]
        %v2484 = vld [vmem:[%s2455 + $0xa8] sm:$0xff]
        %v2485 = vld [vmem:[%s2455 + $0xb0] sm:$0xf]
        %v2486 = vld [vmem:[%s2455 + $0xb4] sm:$0xff]
        %v2487 = vld [vmem:[%s2455 + $0xbc] sm:$0xf]
        %s2488 = scalar_lea.vmem [#allocation7], 64
        %v2489 = vld [vmem:[%s2488] sm:$0xf]
        %v2490 = vld [vmem:[%s2488 + $0x4] sm:$0xf]
        %v2491 = vld [vmem:[%s2488 + $0x8] sm:$0xf]
        %v2492 = vld [vmem:[%s2488 + $0xc] sm:$0xf]
        %v2493 = vld [vmem:[%s2488 + $0x10] sm:$0xf]
        %v2494 = vld [vmem:[%s2488 + $0x14] sm:$0xf]
        %v2495 = vld [vmem:[%s2488 + $0x18] sm:$0xf]
        %v2496 = vld [vmem:[%s2488 + $0x1c] sm:$0xf]
        %v2497 = vld [vmem:[%s2488 + $0x20] sm:$0xf]
        %v2498 = vld [vmem:[%s2488 + $0x24] sm:$0xf]
        %v2499 = vld [vmem:[%s2488 + $0x28] sm:$0xf]
        %v2500 = vld [vmem:[%s2488 + $0x2c] sm:$0xf]
        %v2501 = vld [vmem:[%s2488 + $0x30] sm:$0xf]
        %v2502 = vld [vmem:[%s2488 + $0x34] sm:$0xf]
        %v2503 = vld [vmem:[%s2488 + $0x38] sm:$0xf]
        %v2504 = vld [vmem:[%s2488 + $0x3c] sm:$0xf]
        %v2505 = vpack.c.bf16 %v2454, %v2453
        %s2506 = scalar_lea.vmem %s6, 3
        %v2507 = vld [vmem:[%s2506] sm:$0x7]
        %v2509 = vlaneseq
        %v2510 = vshrl.u32 %v2509, 7
        %v2511 = vsub.s32 0, %v2510
        %v2512 = vrot.slane %v2507, %v2511
        %v2513 = vlaneseq
        %v2514 = vshrl.u32 %v2513, 7
        %v2515 = vsub.s32 1, %v2514
        %v2516 = vrot.slane %v2507, %v2515
        %v2517 = vlaneseq
        %v2518 = vshrl.u32 %v2517, 7
        %v2519 = vsub.s32 2, %v2518
        %v2520 = vrot.slane %v2507, %v2519
        %v2556 = vunpack.c.l.b16 %v2456
        %v2557 = vunpack.c.h.b16 %v2456
        %v2558 = vunpack.c.l.b16 %v2457
        %v2559 = vunpack.c.l.b16 %v2458
        %v2560 = vunpack.c.h.b16 %v2458
        %v2561 = vunpack.c.l.b16 %v2459
        %v2562 = vunpack.c.l.b16 %v2460
        %v2563 = vunpack.c.h.b16 %v2460
        %v2564 = vunpack.c.l.b16 %v2461
        %v2565 = vunpack.c.l.b16 %v2462
        %v2566 = vunpack.c.h.b16 %v2462
        %v2567 = vunpack.c.l.b16 %v2463
        %v2568 = vunpack.c.l.b16 %v2464
        %v2569 = vunpack.c.h.b16 %v2464
        %v2570 = vunpack.c.l.b16 %v2465
        %v2571 = vunpack.c.l.b16 %v2466
        %v2572 = vunpack.c.h.b16 %v2466
        %v2573 = vunpack.c.l.b16 %v2467
        %v2574 = vunpack.c.l.b16 %v2468
        %v2575 = vunpack.c.h.b16 %v2468
        %v2576 = vunpack.c.l.b16 %v2469
        %v2577 = vunpack.c.l.b16 %v2470
        %v2578 = vunpack.c.h.b16 %v2470
        %v2579 = vunpack.c.l.b16 %v2471
        %v2580 = vunpack.c.l.b16 %v2472
        %v2581 = vunpack.c.h.b16 %v2472
        %v2582 = vunpack.c.l.b16 %v2473
        %v2583 = vunpack.c.l.b16 %v2474
        %v2584 = vunpack.c.h.b16 %v2474
        %v2585 = vunpack.c.l.b16 %v2475
        %v2586 = vunpack.c.l.b16 %v2476
        %v2587 = vunpack.c.h.b16 %v2476
        %v2588 = vunpack.c.l.b16 %v2477
        %v2589 = vunpack.c.l.b16 %v2478
        %v2590 = vunpack.c.h.b16 %v2478
        %v2591 = vunpack.c.l.b16 %v2479
        %v2592 = vunpack.c.l.b16 %v2480
        %v2593 = vunpack.c.h.b16 %v2480
        %v2594 = vunpack.c.l.b16 %v2481
        %v2595 = vunpack.c.l.b16 %v2482
        %v2596 = vunpack.c.h.b16 %v2482
        %v2597 = vunpack.c.l.b16 %v2483
        %v2598 = vunpack.c.l.b16 %v2484
        %v2599 = vunpack.c.h.b16 %v2484
        %v2600 = vunpack.c.l.b16 %v2485
        %v2601 = vunpack.c.l.b16 %v2486
        %v2602 = vunpack.c.h.b16 %v2486
        %v2603 = vunpack.c.l.b16 %v2487
        %v2604 = vpack.c.b16 %v2559, %v2556
        %v2605 = vpack.c.b16 %v2560, %v2557
        %v2606 = vpack.c.b16 %v2561, %v2558
        %v2607 = vpack.c.b16 %v2565, %v2562
        %v2608 = vpack.c.b16 %v2566, %v2563
        %v2609 = vpack.c.b16 %v2567, %v2564
        %v2610 = vpack.c.b16 %v2571, %v2568
        %v2611 = vpack.c.b16 %v2572, %v2569
        %v2612 = vpack.c.b16 %v2573, %v2570
        %v2613 = vpack.c.b16 %v2577, %v2574
        %v2614 = vpack.c.b16 %v2578, %v2575
        %v2615 = vpack.c.b16 %v2579, %v2576
        %v2616 = vpack.c.b16 %v2583, %v2580
        %v2617 = vpack.c.b16 %v2584, %v2581
        %v2618 = vpack.c.b16 %v2585, %v2582
        %v2619 = vpack.c.b16 %v2589, %v2586
        %v2620 = vpack.c.b16 %v2590, %v2587
        %v2621 = vpack.c.b16 %v2591, %v2588
        %v2622 = vpack.c.b16 %v2595, %v2592
        %v2623 = vpack.c.b16 %v2596, %v2593
        %v2624 = vpack.c.b16 %v2597, %v2594
        %v2625 = vpack.c.b16 %v2601, %v2598
        %v2626 = vpack.c.b16 %v2602, %v2599
        %v2627 = vpack.c.b16 %v2603, %v2600
        %2652 = vmatprep.subr.bf16.mxu0 %v2605
        %2653 = vmatpush1.bf16.msra.mxu0 %v2604
        %2654 = vmatprep.subr.bf16.mxu0 %v2608
        %2655 = vmatpush1.bf16.msra.mxu0 %v2607
        %2656 = vmatprep.subr.bf16.mxu0 %v2611
        %2657 = vmatpush1.bf16.msra.mxu0 %v2610
        %2658 = vmatprep.subr.bf16.mxu0 %v2614
        %2659 = vmatpush1.bf16.msra.mxu0 %v2613
        %2660 = vmatprep.subr.bf16.mxu0 %v2617
        %2661 = vmatpush1.bf16.msra.mxu0 %v2616
        %2662 = vmatprep.subr.bf16.mxu0 %v2620
        %2663 = vmatpush1.bf16.msra.mxu0 %v2619
        %2664 = vmatprep.subr.bf16.mxu0 %v2623
        %2665 = vmatpush1.bf16.msra.mxu0 %v2622
        %2666 = vmatprep.subr.bf16.mxu0 %v2626
        %2667 = vmatpush1.bf16.msra.mxu0 %v2625
        %2668 = vmatprep.subr.bf16.mxu0 0
        %2669 = vmatpush1.bf16.msra.mxu0 0
        %2670 = vmatprep.subr.bf16.mxu0 0
        %2671 = vmatpush1.bf16.msra.mxu0 0
        %2672 = vmatprep.subr.bf16.mxu0 0
        %2673 = vmatpush1.bf16.msra.mxu0 0
        %2674 = vmatprep.subr.bf16.mxu0 0
        %2675 = vmatpush1.bf16.msra.mxu0 0
        %2676 = vmatprep.subr.bf16.mxu0 0
        %2677 = vmatpush1.bf16.msra.mxu0 0
        %2678 = vmatprep.subr.bf16.mxu0 0
        %2679 = vmatpush1.bf16.msra.mxu0 0
        %2680 = vmatprep.subr.bf16.mxu0 0
        %2681 = vmatpush1.bf16.msra.mxu0 0
        %2682 = vmatprep.subr.bf16.mxu0 0
        %2683 = vmatpush1.bf16.msra.mxu0 0
        %2684 = vmatprep.mubr.bf16.mxu0 0
        %2685 = vmatmul.mubr.bf16.gmra.mrb[0].mxu0 %v2505
        %v2686 = vpop.f32.mrb[0].mxu0
        %v2687 = vadd.f32 %v2512, %v2686
        %v2688 = vpop.f32.mrb[0].mxu0
        %v2689 = vadd.f32 %v2516, %v2688
        %v2690 = vpop.f32.mrb[0].mxu0
        %v2691 = vadd.f32 %v2512, %v2690
        %v2692 = vpop.f32.mrb[0].mxu0
        %v2693 = vadd.f32 %v2516, %v2692
        %2694 = vdwg.mxu0
        %2695 = vmatprep.subr.bf16.mxu0 0
        %2696 = vmatpush1.bf16.msra.mxu0 %v2606
        %2697 = vmatprep.subr.bf16.mxu0 0
        %2698 = vmatpush1.bf16.msra.mxu0 %v2609
        %2699 = vmatprep.subr.bf16.mxu0 0
        %2700 = vmatpush1.bf16.msra.mxu0 %v2612
        %2701 = vmatprep.subr.bf16.mxu0 0
        %2702 = vmatpush1.bf16.msra.mxu0 %v2615
        %2703 = vmatprep.subr.bf16.mxu0 0
        %2704 = vmatpush1.bf16.msra.mxu0 %v2618
        %2705 = vmatprep.subr.bf16.mxu0 0
        %2706 = vmatpush1.bf16.msra.mxu0 %v2621
        %2707 = vmatprep.subr.bf16.mxu0 0
        %2708 = vmatpush1.bf16.msra.mxu0 %v2624
        %2709 = vmatprep.subr.bf16.mxu0 0
        %2710 = vmatpush1.bf16.msra.mxu0 %v2627
        %2711 = vmatprep.subr.bf16.mxu0 0
        %2712 = vmatpush1.bf16.msra.mxu0 0
        %2713 = vmatprep.subr.bf16.mxu0 0
        %2714 = vmatpush1.bf16.msra.mxu0 0
        %2715 = vmatprep.subr.bf16.mxu0 0
        %2716 = vmatpush1.bf16.msra.mxu0 0
        %2717 = vmatprep.subr.bf16.mxu0 0
        %2718 = vmatpush1.bf16.msra.mxu0 0
        %2719 = vmatprep.subr.bf16.mxu0 0
        %2720 = vmatpush1.bf16.msra.mxu0 0
        %2721 = vmatprep.subr.bf16.mxu0 0
        %2722 = vmatpush1.bf16.msra.mxu0 0
        %2723 = vmatprep.subr.bf16.mxu0 0
        %2724 = vmatpush1.bf16.msra.mxu0 0
        %2725 = vmatprep.subr.bf16.mxu0 0
        %2726 = vmatpush1.bf16.msra.mxu0 0
        %2727 = vmatprep.mubr.bf16.mxu0 0
        %2728 = vmatmul.mubr.bf16.gmra.mrb[0].mxu0 %v2505
        %v2729 = vpop.f32.mrb[0].mxu0
        %v2730 = vadd.f32 %v2520, %v2729
        %v2731 = vpop.f32.mrb[0].mxu0
        %v2732 = vpop.f32.mrb[0].mxu0
        %v2733 = vadd.f32 %v2520, %v2732
        %v2734 = vpop.f32.mrb[0].mxu0
        %2735 = vdwg.mxu0
        %v2737 = vsel %vm644, %v2687, 0
        %v2740 = vsel %vm644, %v2691, 0
        %v2743 = vsel %vm644, %v2689, 0
        %v2746 = vsel %vm644, %v2693, 0
        %2748 = vmatprep.subr.mxu0 0.0
        %2749 = vmatpush1.xpose.msra.mxu0 %v2743
        %2750 = vmatprep.subr.mxu0 0.0
        %2751 = vmatpush1.xpose.msra.mxu0 %v2746
        %2752 = vmatprep.subr.mxu0 0.0
        %2753 = vmatpush1.xpose.msra.mxu0 0.0
        %2754 = vmatprep.subr.mxu0 0.0
        %2755 = vmatpush1.xpose.msra.mxu0 0.0
        %2756 = vmatprep.subr.mxu0 0.0
        %2757 = vmatpush1.xpose.msra.mxu0 0.0
        %2758 = vmatprep.subr.mxu0 0.0
        %2759 = vmatpush1.xpose.msra.mxu0 0.0
        %2760 = vmatprep.subr.mxu0 0.0
        %2761 = vmatpush1.xpose.msra.mxu0 0.0
        %2762 = vmatprep.subr.mxu0 0.0
        %2763 = vmatpush1.xpose.msra.mxu0 0.0
        %2764 = vmatprep.subr.mxu0 0.0
        %2765 = vmatpush1.xpose.msra.mxu0 0.0
        %2766 = vmatprep.subr.mxu0 0.0
        %2767 = vmatpush1.xpose.msra.mxu0 0.0
        %2768 = vmatprep.subr.mxu0 0.0
        %2769 = vmatpush1.xpose.msra.mxu0 0.0
        %2770 = vmatprep.subr.mxu0 0.0
        %2771 = vmatpush1.xpose.msra.mxu0 0.0
        %2772 = vmatprep.subr.mxu0 0.0
        %2773 = vmatpush1.xpose.msra.mxu0 0.0
        %2774 = vmatprep.subr.mxu0 0.0
        %2775 = vmatpush1.xpose.msra.mxu0 0.0
        %2776 = vmatprep.subr.mxu0 0.0
        %2777 = vmatpush1.xpose.msra.mxu0 0.0
        %2778 = vmatprep.subr.mxu0 0.0
        %2779 = vmatpush1.xpose.msra.mxu0 0.0
        %2780 = vmatprep.subr.mxu0 0.0
        %2781 = vmatpush1.xpose.msra.mxu0 0.0
        %2782 = vmatprep.subr.mxu0 0.0
        %2783 = vmatpush1.xpose.msra.mxu0 0.0
        %2784 = vmatprep.subr.mxu0 0.0
        %2785 = vmatpush1.xpose.msra.mxu0 0.0
        %2786 = vmatprep.subr.mxu0 0.0
        %2787 = vmatpush1.xpose.msra.mxu0 0.0
        %2788 = vmatprep.subr.mxu0 0.0
        %2789 = vmatpush1.xpose.msra.mxu0 0.0
        %2790 = vmatprep.subr.mxu0 0.0
        %2791 = vmatpush1.xpose.msra.mxu0 0.0
        %2792 = vmatprep.subr.mxu0 0.0
        %2793 = vmatpush1.xpose.msra.mxu0 0.0
        %2794 = vmatprep.subr.mxu0 0.0
        %2795 = vmatpush1.xpose.msra.mxu0 0.0
        %2796 = vmatprep.subr.mxu0 0.0
        %2797 = vmatpush1.xpose.msra.mxu0 0.0
        %2798 = vmatprep.subr.mxu0 0.0
        %2799 = vmatpush1.xpose.msra.mxu0 0.0
        %2800 = vmatprep.subr.mxu0 0.0
        %2801 = vmatpush1.xpose.msra.mxu0 0.0
        %2802 = vmatprep.subr.mxu0 0.0
        %2803 = vmatpush1.xpose.msra.mxu0 0.0
        %2804 = vmatprep.subr.mxu0 0.0
        %2805 = vmatpush1.xpose.msra.mxu0 0.0
        %2806 = vmatprep.subr.mxu0 0.0
        %2807 = vmatpush1.xpose.msra.mxu0 0.0
        %2808 = vmatprep.subr.mxu0 0.0
        %2809 = vmatpush1.xpose.msra.mxu0 0.0
        %2810 = vmatprep.subr.mxu0 0.0
        %2811 = vmatpush1.xpose.msra.mxu0 0.0
        %2812 = vmatprep.mubr.f32.mxu0 0.0
        %2813 = vmatmul.mubr.f32.gmra.mrb[0].mxu0 %v2737
        %v2814 = vpop.f32.mrb[0].mxu0
        %v2815 = vadd.f32 0.0, %v2814
        %v2816 = vpop.f32.mrb[0].mxu0
        %2817 = vmatprep.mubr.f32.mxu0 0.0
        %2818 = vmatmul.mubr.f32.gmra.mrb[0].mxu0 %v2740
        %v2819 = vpop.f32.mrb[0].mxu0
        %v2820 = vadd.f32 0.0, %v2819
        %v2821 = vpop.f32.mrb[0].mxu0
        %2822 = vdwg.mxu0
        %v2823 = vmul.f32 %v2815, 0.17677669
        %v2824 = vmul.f32 %v2820, 0.17677669
        %v2825 = vadd.f32 %v2823, %v695
        %v2826 = vadd.f32 %v2824, %v696
        %v2827 = vsel %vm1066, %v2825, -inf
        %2828 = vmax.xlane.f32.xlu0 %v2827
        %v2829 = vpop.xlane.xlu0 %2828
        %v2830 = vsel %vm1070, %v2826, -inf
        %2831 = vmax.xlane.f32.xlu0 %v2830
        %v2832 = vpop.xlane.xlu0 %2831
        %v2833 = vsub.f32 %v2825, %v2829
        %v2834 = vsub.f32 %v2826, %v2832
        %v2835 = vmul.f32 %v2833, 1.442695
        %v2836 = vpow.pop %v2835
        %v2837 = vmul.f32 %v2834, 1.442695
        %v2838 = vpow.pop %v2837
        %v2839 = vsel %vm1066, %v2836, 0.0
        %2840 = vadd.xlane.f32.xlu0 %v2839
        %v2841 = vpop.xlane.xlu0 %2840
        %v2842 = vsel %vm1070, %v2838, 0.0
        %2843 = vadd.xlane.f32.xlu0 %v2842
        %v2844 = vpop.xlane.xlu0 %2843
        %v2845 = vrcp.pop %v2841
        %v2846 = vrcp.pop %v2844
        %v2847 = vmul.f32 %v2836, %v2845
        %v2848 = vmul.f32 %v2838, %v2846
        %v2850 = vsel %vm1066, %v2847, 0
        %v2853 = vsel %vm1066, %v2848, 0
        %v2856 = vsel %vm1096, %v2733, 0
        %2858 = vmatprep.subr.mxu0 0.0
        %2859 = vmatpush1.msra.mxu0 %v2730
        %2860 = vmatprep.subr.mxu0 0.0
        %2861 = vmatpush1.msra.mxu0 %v2856
        %2862 = vmatprep.subr.mxu0 0.0
        %2863 = vmatpush1.msra.mxu0 0.0
        %2864 = vmatprep.subr.mxu0 0.0
        %2865 = vmatpush1.msra.mxu0 0.0
        %2866 = vmatprep.subr.mxu0 0.0
        %2867 = vmatpush1.msra.mxu0 0.0
        %2868 = vmatprep.subr.mxu0 0.0
        %2869 = vmatpush1.msra.mxu0 0.0
        %2870 = vmatprep.subr.mxu0 0.0
        %2871 = vmatpush1.msra.mxu0 0.0
        %2872 = vmatprep.subr.mxu0 0.0
        %2873 = vmatpush1.msra.mxu0 0.0
        %2874 = vmatprep.subr.mxu0 0.0
        %2875 = vmatpush1.msra.mxu0 0.0
        %2876 = vmatprep.subr.mxu0 0.0
        %2877 = vmatpush1.msra.mxu0 0.0
        %2878 = vmatprep.subr.mxu0 0.0
        %2879 = vmatpush1.msra.mxu0 0.0
        %2880 = vmatprep.subr.mxu0 0.0
        %2881 = vmatpush1.msra.mxu0 0.0
        %2882 = vmatprep.subr.mxu0 0.0
        %2883 = vmatpush1.msra.mxu0 0.0
        %2884 = vmatprep.subr.mxu0 0.0
        %2885 = vmatpush1.msra.mxu0 0.0
        %2886 = vmatprep.subr.mxu0 0.0
        %2887 = vmatpush1.msra.mxu0 0.0
        %2888 = vmatprep.subr.mxu0 0.0
        %2889 = vmatpush1.msra.mxu0 0.0
        %2890 = vmatprep.subr.mxu0 0.0
        %2891 = vmatpush1.msra.mxu0 0.0
        %2892 = vmatprep.subr.mxu0 0.0
        %2893 = vmatpush1.msra.mxu0 0.0
        %2894 = vmatprep.subr.mxu0 0.0
        %2895 = vmatpush1.msra.mxu0 0.0
        %2896 = vmatprep.subr.mxu0 0.0
        %2897 = vmatpush1.msra.mxu0 0.0
        %2898 = vmatprep.subr.mxu0 0.0
        %2899 = vmatpush1.msra.mxu0 0.0
        %2900 = vmatprep.subr.mxu0 0.0
        %2901 = vmatpush1.msra.mxu0 0.0
        %2902 = vmatprep.subr.mxu0 0.0
        %2903 = vmatpush1.msra.mxu0 0.0
        %2904 = vmatprep.subr.mxu0 0.0
        %2905 = vmatpush1.msra.mxu0 0.0
        %2906 = vmatprep.subr.mxu0 0.0
        %2907 = vmatpush1.msra.mxu0 0.0
        %2908 = vmatprep.subr.mxu0 0.0
        %2909 = vmatpush1.msra.mxu0 0.0
        %2910 = vmatprep.subr.mxu0 0.0
        %2911 = vmatpush1.msra.mxu0 0.0
        %2912 = vmatprep.subr.mxu0 0.0
        %2913 = vmatpush1.msra.mxu0 0.0
        %2914 = vmatprep.subr.mxu0 0.0
        %2915 = vmatpush1.msra.mxu0 0.0
        %2916 = vmatprep.subr.mxu0 0.0
        %2917 = vmatpush1.msra.mxu0 0.0
        %2918 = vmatprep.subr.mxu0 0.0
        %2919 = vmatpush1.msra.mxu0 0.0
        %2920 = vmatprep.subr.mxu0 0.0
        %2921 = vmatpush1.msra.mxu0 0.0
        %2922 = vmatprep.mubr.f32.mxu0 0.0
        %2923 = vmatmul.mubr.f32.gmra.mrb[0].mxu0 %v2850
        %v2924 = vpop.f32.mrb[0].mxu0
        %v2925 = vadd.f32 0.0, %v2924
        %v2926 = vpop.f32.mrb[0].mxu0
        %2927 = vmatprep.mubr.f32.mxu0 0.0
        %2928 = vmatmul.mubr.f32.gmra.mrb[0].mxu0 %v2853
        %v2929 = vpop.f32.mrb[0].mxu0
        %v2930 = vadd.f32 0.0, %v2929
        %v2931 = vpop.f32.mrb[0].mxu0
        %2932 = vdwg.mxu0
        %v2933 = vpack.c.bf16 %v2930, %v2925
        %2934 = vrot.lane.b32.xlu0 %v2687, 96
        %v2935 = vpop.permute.xlu0 %2934
        %2936 = vrot.lane.b32.xlu0 %v2691, 96
        %v2937 = vpop.permute.xlu0 %2936
        %2938 = vrot.lane.b32.xlu0 %v2689, 96
        %v2939 = vpop.permute.xlu0 %2938
        %2940 = vrot.lane.b32.xlu0 %v2693, 96
        %v2941 = vpop.permute.xlu0 %2940
        %v2942 = vsel %vm644, %v2935, 0
        %v2944 = vsel %vm644, %v2937, 0
        %v2946 = vsel %vm644, %v2939, 0
        %v2948 = vsel %vm644, %v2941, 0
        %2950 = vmatprep.subr.mxu0 0.0
        %2951 = vmatpush1.xpose.msra.mxu0 %v2946
        %2952 = vmatprep.subr.mxu0 0.0
        %2953 = vmatpush1.xpose.msra.mxu0 %v2948
        %2954 = vmatprep.subr.mxu0 0.0
        %2955 = vmatpush1.xpose.msra.mxu0 0.0
        %2956 = vmatprep.subr.mxu0 0.0
        %2957 = vmatpush1.xpose.msra.mxu0 0.0
        %2958 = vmatprep.subr.mxu0 0.0
        %2959 = vmatpush1.xpose.msra.mxu0 0.0
        %2960 = vmatprep.subr.mxu0 0.0
        %2961 = vmatpush1.xpose.msra.mxu0 0.0
        %2962 = vmatprep.subr.mxu0 0.0
        %2963 = vmatpush1.xpose.msra.mxu0 0.0
        %2964 = vmatprep.subr.mxu0 0.0
        %2965 = vmatpush1.xpose.msra.mxu0 0.0
        %2966 = vmatprep.subr.mxu0 0.0
        %2967 = vmatpush1.xpose.msra.mxu0 0.0
        %2968 = vmatprep.subr.mxu0 0.0
        %2969 = vmatpush1.xpose.msra.mxu0 0.0
        %2970 = vmatprep.subr.mxu0 0.0
        %2971 = vmatpush1.xpose.msra.mxu0 0.0
        %2972 = vmatprep.subr.mxu0 0.0
        %2973 = vmatpush1.xpose.msra.mxu0 0.0
        %2974 = vmatprep.subr.mxu0 0.0
        %2975 = vmatpush1.xpose.msra.mxu0 0.0
        %2976 = vmatprep.subr.mxu0 0.0
        %2977 = vmatpush1.xpose.msra.mxu0 0.0
        %2978 = vmatprep.subr.mxu0 0.0
        %2979 = vmatpush1.xpose.msra.mxu0 0.0
        %2980 = vmatprep.subr.mxu0 0.0
        %2981 = vmatpush1.xpose.msra.mxu0 0.0
        %2982 = vmatprep.subr.mxu0 0.0
        %2983 = vmatpush1.xpose.msra.mxu0 0.0
        %2984 = vmatprep.subr.mxu0 0.0
        %2985 = vmatpush1.xpose.msra.mxu0 0.0
        %2986 = vmatprep.subr.mxu0 0.0
        %2987 = vmatpush1.xpose.msra.mxu0 0.0
        %2988 = vmatprep.subr.mxu0 0.0
        %2989 = vmatpush1.xpose.msra.mxu0 0.0
        %2990 = vmatprep.subr.mxu0 0.0
        %2991 = vmatpush1.xpose.msra.mxu0 0.0
        %2992 = vmatprep.subr.mxu0 0.0
        %2993 = vmatpush1.xpose.msra.mxu0 0.0
        %2994 = vmatprep.subr.mxu0 0.0
        %2995 = vmatpush1.xpose.msra.mxu0 0.0
        %2996 = vmatprep.subr.mxu0 0.0
        %2997 = vmatpush1.xpose.msra.mxu0 0.0
        %2998 = vmatprep.subr.mxu0 0.0
        %2999 = vmatpush1.xpose.msra.mxu0 0.0
        %3000 = vmatprep.subr.mxu0 0.0
        %3001 = vmatpush1.xpose.msra.mxu0 0.0
        %3002 = vmatprep.subr.mxu0 0.0
        %3003 = vmatpush1.xpose.msra.mxu0 0.0
        %3004 = vmatprep.subr.mxu0 0.0
        %3005 = vmatpush1.xpose.msra.mxu0 0.0
        %3006 = vmatprep.subr.mxu0 0.0
        %3007 = vmatpush1.xpose.msra.mxu0 0.0
        %3008 = vmatprep.subr.mxu0 0.0
        %3009 = vmatpush1.xpose.msra.mxu0 0.0
        %3010 = vmatprep.subr.mxu0 0.0
        %3011 = vmatpush1.xpose.msra.mxu0 0.0
        %3012 = vmatprep.subr.mxu0 0.0
        %3013 = vmatpush1.xpose.msra.mxu0 0.0
        %3014 = vmatprep.mubr.f32.mxu0 0.0
        %3015 = vmatmul.mubr.f32.gmra.mrb[0].mxu0 %v2942
        %v3016 = vpop.f32.mrb[0].mxu0
        %v3017 = vadd.f32 0.0, %v3016
        %v3018 = vpop.f32.mrb[0].mxu0
        %3019 = vmatprep.mubr.f32.mxu0 0.0
        %3020 = vmatmul.mubr.f32.gmra.mrb[0].mxu0 %v2944
        %v3021 = vpop.f32.mrb[0].mxu0
        %v3022 = vadd.f32 0.0, %v3021
        %v3023 = vpop.f32.mrb[0].mxu0
        %3024 = vdwg.mxu0
        %v3025 = vmul.f32 %v3017, 0.17677669
        %v3026 = vmul.f32 %v3022, 0.17677669
        %v3027 = vadd.f32 %v3025, %v695
        %v3028 = vadd.f32 %v3026, %v696
        %v3029 = vsel %vm1066, %v3027, -inf
        %3030 = vmax.xlane.f32.xlu0 %v3029
        %v3031 = vpop.xlane.xlu0 %3030
        %v3032 = vsel %vm1070, %v3028, -inf
        %3033 = vmax.xlane.f32.xlu0 %v3032
        %v3034 = vpop.xlane.xlu0 %3033
        %v3035 = vsub.f32 %v3027, %v3031
        %v3036 = vsub.f32 %v3028, %v3034
        %v3037 = vmul.f32 %v3035, 1.442695
        %v3038 = vpow.pop %v3037
        %v3039 = vmul.f32 %v3036, 1.442695
        %v3040 = vpow.pop %v3039
        %v3041 = vsel %vm1066, %v3038, 0.0
        %3042 = vadd.xlane.f32.xlu0 %v3041
        %v3043 = vpop.xlane.xlu0 %3042
        %v3044 = vsel %vm1070, %v3040, 0.0
        %3045 = vadd.xlane.f32.xlu0 %v3044
        %v3046 = vpop.xlane.xlu0 %3045
        %v3047 = vrcp.pop %v3043
        %v3048 = vrcp.pop %v3046
        %v3049 = vmul.f32 %v3038, %v3047
        %v3050 = vmul.f32 %v3040, %v3048
        %3052 = vrot.lane.b32.xlu0 %v2730, 96
        %v3053 = vpop.permute.xlu0 %3052
        %3054 = vrot.lane.b32.xlu0 %v2733, 96
        %v3055 = vpop.permute.xlu0 %3054
        %v3058 = vsel %vm1066, %v3049, 0
        %v3061 = vsel %vm1066, %v3050, 0
        %v3063 = vsel %vm1096, %v3055, 0
        %3065 = vmatprep.subr.mxu0 0.0
        %3066 = vmatpush1.msra.mxu0 %v3053
        %3067 = vmatprep.subr.mxu0 0.0
        %3068 = vmatpush1.msra.mxu0 %v3063
        %3069 = vmatprep.subr.mxu0 0.0
        %3070 = vmatpush1.msra.mxu0 0.0
        %3071 = vmatprep.subr.mxu0 0.0
        %3072 = vmatpush1.msra.mxu0 0.0
        %3073 = vmatprep.subr.mxu0 0.0
        %3074 = vmatpush1.msra.mxu0 0.0
        %3075 = vmatprep.subr.mxu0 0.0
        %3076 = vmatpush1.msra.mxu0 0.0
        %3077 = vmatprep.subr.mxu0 0.0
        %3078 = vmatpush1.msra.mxu0 0.0
        %3079 = vmatprep.subr.mxu0 0.0
        %3080 = vmatpush1.msra.mxu0 0.0
        %3081 = vmatprep.subr.mxu0 0.0
        %3082 = vmatpush1.msra.mxu0 0.0
        %3083 = vmatprep.subr.mxu0 0.0
        %3084 = vmatpush1.msra.mxu0 0.0
        %3085 = vmatprep.subr.mxu0 0.0
        %3086 = vmatpush1.msra.mxu0 0.0
        %3087 = vmatprep.subr.mxu0 0.0
        %3088 = vmatpush1.msra.mxu0 0.0
        %3089 = vmatprep.subr.mxu0 0.0
        %3090 = vmatpush1.msra.mxu0 0.0
        %3091 = vmatprep.subr.mxu0 0.0
        %3092 = vmatpush1.msra.mxu0 0.0
        %3093 = vmatprep.subr.mxu0 0.0
        %3094 = vmatpush1.msra.mxu0 0.0
        %3095 = vmatprep.subr.mxu0 0.0
        %3096 = vmatpush1.msra.mxu0 0.0
        %3097 = vmatprep.subr.mxu0 0.0
        %3098 = vmatpush1.msra.mxu0 0.0
        %3099 = vmatprep.subr.mxu0 0.0
        %3100 = vmatpush1.msra.mxu0 0.0
        %3101 = vmatprep.subr.mxu0 0.0
        %3102 = vmatpush1.msra.mxu0 0.0
        %3103 = vmatprep.subr.mxu0 0.0
        %3104 = vmatpush1.msra.mxu0 0.0
        %3105 = vmatprep.subr.mxu0 0.0
        %3106 = vmatpush1.msra.mxu0 0.0
        %3107 = vmatprep.subr.mxu0 0.0
        %3108 = vmatpush1.msra.mxu0 0.0
        %3109 = vmatprep.subr.mxu0 0.0
        %3110 = vmatpush1.msra.mxu0 0.0
        %3111 = vmatprep.subr.mxu0 0.0
        %3112 = vmatpush1.msra.mxu0 0.0
        %3113 = vmatprep.subr.mxu0 0.0
        %3114 = vmatpush1.msra.mxu0 0.0
        %3115 = vmatprep.subr.mxu0 0.0
        %3116 = vmatpush1.msra.mxu0 0.0
        %3117 = vmatprep.subr.mxu0 0.0
        %3118 = vmatpush1.msra.mxu0 0.0
        %3119 = vmatprep.subr.mxu0 0.0
        %3120 = vmatpush1.msra.mxu0 0.0
        %3121 = vmatprep.subr.mxu0 0.0
        %3122 = vmatpush1.msra.mxu0 0.0
        %3123 = vmatprep.subr.mxu0 0.0
        %3124 = vmatpush1.msra.mxu0 0.0
        %3125 = vmatprep.subr.mxu0 0.0
        %3126 = vmatpush1.msra.mxu0 0.0
        %3127 = vmatprep.subr.mxu0 0.0
        %3128 = vmatpush1.msra.mxu0 0.0
        %3129 = vmatprep.mubr.f32.mxu0 0.0
        %3130 = vmatmul.mubr.f32.gmra.mrb[0].mxu0 %v3058
        %v3131 = vpop.f32.mrb[0].mxu0
        %v3132 = vadd.f32 0.0, %v3131
        %v3133 = vpop.f32.mrb[0].mxu0
        %3134 = vmatprep.mubr.f32.mxu0 0.0
        %3135 = vmatmul.mubr.f32.gmra.mrb[0].mxu0 %v3061
        %v3136 = vpop.f32.mrb[0].mxu0
        %v3137 = vadd.f32 0.0, %v3136
        %v3138 = vpop.f32.mrb[0].mxu0
        %3139 = vdwg.mxu0
        %v3140 = vpack.c.bf16 %v3137, %v3132
        %v3145 = vunpack.c.l.b16 %v2493
        %v3146 = vunpack.c.l.b16 %v2494
        %v3147 = vunpack.c.l.b16 %v2495
        %v3148 = vunpack.c.l.b16 %v2496
        %v3149 = vpack.c.b16 %v3146, %v3145
        %v3150 = vpack.c.b16 %v3148, %v3147
        %v3154 = vsel %vm644, %v3140, 0
        %3156 = vmatprep.subr.bf16.mxu0 0
        %3157 = vmatpush1.bf16.msra.mxu0 %v3149
        %3158 = vmatprep.subr.bf16.mxu0 0
        %3159 = vmatpush1.bf16.msra.mxu0 %v3150
        %3160 = vmatprep.subr.bf16.mxu0 0
        %3161 = vmatpush1.bf16.msra.mxu0 0
        %3162 = vmatprep.subr.bf16.mxu0 0
        %3163 = vmatpush1.bf16.msra.mxu0 0
        %3164 = vmatprep.subr.bf16.mxu0 0
        %3165 = vmatpush1.bf16.msra.mxu0 0
        %3166 = vmatprep.subr.bf16.mxu0 0
        %3167 = vmatpush1.bf16.msra.mxu0 0
        %3168 = vmatprep.subr.bf16.mxu0 0
        %3169 = vmatpush1.bf16.msra.mxu0 0
        %3170 = vmatprep.subr.bf16.mxu0 0
        %3171 = vmatpush1.bf16.msra.mxu0 0
        %3172 = vmatprep.subr.bf16.mxu0 0
        %3173 = vmatpush1.bf16.msra.mxu0 0
        %3174 = vmatprep.subr.bf16.mxu0 0
        %3175 = vmatpush1.bf16.msra.mxu0 0
        %3176 = vmatprep.subr.bf16.mxu0 0
        %3177 = vmatpush1.bf16.msra.mxu0 0
        %3178 = vmatprep.subr.bf16.mxu0 0
        %3179 = vmatpush1.bf16.msra.mxu0 0
        %3180 = vmatprep.subr.bf16.mxu0 0
        %3181 = vmatpush1.bf16.msra.mxu0 0
        %3182 = vmatprep.subr.bf16.mxu0 0
        %3183 = vmatpush1.bf16.msra.mxu0 0
        %3184 = vmatprep.subr.bf16.mxu0 0
        %3185 = vmatpush1.bf16.msra.mxu0 0
        %3186 = vmatprep.subr.bf16.mxu0 0
        %3187 = vmatpush1.bf16.msra.mxu0 0
        %3188 = vmatprep.mubr.bf16.mxu0 0
        %3189 = vmatmul.mubr.bf16.gmra.mrb[0].mxu0 %v3154
        %v3190 = vpop.f32.mrb[0].mxu0
        %v3191 = vadd.f32 0.0, %v3190
        %v3192 = vpop.f32.mrb[0].mxu0
        %v3193 = vpop.f32.mrb[0].mxu0
        %v3194 = vadd.f32 0.0, %v3193
        %v3195 = vpop.f32.mrb[0].mxu0
        %3196 = vdwg.mxu0
        %v3201 = vunpack.c.l.b16 %v2489
        %v3202 = vunpack.c.l.b16 %v2490
        %v3203 = vunpack.c.l.b16 %v2491
        %v3204 = vunpack.c.l.b16 %v2492
        %v3205 = vpack.c.b16 %v3202, %v3201
        %v3206 = vpack.c.b16 %v3204, %v3203
        %v3210 = vsel %vm644, %v2933, 0
        %3212 = vmatprep.subr.bf16.mxu0 0
        %3213 = vmatpush1.bf16.msra.mxu0 %v3205
        %3214 = vmatprep.subr.bf16.mxu0 0
        %3215 = vmatpush1.bf16.msra.mxu0 %v3206
        %3216 = vmatprep.subr.bf16.mxu0 0
        %3217 = vmatpush1.bf16.msra.mxu0 0
        %3218 = vmatprep.subr.bf16.mxu0 0
        %3219 = vmatpush1.bf16.msra.mxu0 0
        %3220 = vmatprep.subr.bf16.mxu0 0
        %3221 = vmatpush1.bf16.msra.mxu0 0
        %3222 = vmatprep.subr.bf16.mxu0 0
        %3223 = vmatpush1.bf16.msra.mxu0 0
        %3224 = vmatprep.subr.bf16.mxu0 0
        %3225 = vmatpush1.bf16.msra.mxu0 0
        %3226 = vmatprep.subr.bf16.mxu0 0
        %3227 = vmatpush1.bf16.msra.mxu0 0
        %3228 = vmatprep.subr.bf16.mxu0 0
        %3229 = vmatpush1.bf16.msra.mxu0 0
        %3230 = vmatprep.subr.bf16.mxu0 0
        %3231 = vmatpush1.bf16.msra.mxu0 0
        %3232 = vmatprep.subr.bf16.mxu0 0
        %3233 = vmatpush1.bf16.msra.mxu0 0
        %3234 = vmatprep.subr.bf16.mxu0 0
        %3235 = vmatpush1.bf16.msra.mxu0 0
        %3236 = vmatprep.subr.bf16.mxu0 0
        %3237 = vmatpush1.bf16.msra.mxu0 0
        %3238 = vmatprep.subr.bf16.mxu0 0
        %3239 = vmatpush1.bf16.msra.mxu0 0
        %3240 = vmatprep.subr.bf16.mxu0 0
        %3241 = vmatpush1.bf16.msra.mxu0 0
        %3242 = vmatprep.subr.bf16.mxu0 0
        %3243 = vmatpush1.bf16.msra.mxu0 0
        %3244 = vmatprep.mubr.bf16.mxu0 0
        %3245 = vmatmul.mubr.bf16.gmra.mrb[0].mxu0 %v3210
        %v3246 = vpop.f32.mrb[0].mxu0
        %v3247 = vadd.f32 %v3191, %v3246
        %v3248 = vpop.f32.mrb[0].mxu0
        %v3249 = vpop.f32.mrb[0].mxu0
        %v3250 = vadd.f32 %v3194, %v3249
        %v3251 = vpop.f32.mrb[0].mxu0
        %3252 = vdwg.mxu0
        %3253 = vrot.lane.b32.xlu0 %v2687, 64
        %v3254 = vpop.permute.xlu0 %3253
        %3255 = vrot.lane.b32.xlu0 %v2691, 64
        %v3256 = vpop.permute.xlu0 %3255
        %3257 = vrot.lane.b32.xlu0 %v2689, 64
        %v3258 = vpop.permute.xlu0 %3257
        %3259 = vrot.lane.b32.xlu0 %v2693, 64
        %v3260 = vpop.permute.xlu0 %3259
        %v3261 = vsel %vm644, %v3254, 0
        %v3263 = vsel %vm644, %v3256, 0
        %v3265 = vsel %vm644, %v3258, 0
        %v3267 = vsel %vm644, %v3260, 0
        %3269 = vmatprep.subr.mxu0 0.0
        %3270 = vmatpush1.xpose.msra.mxu0 %v3265
        %3271 = vmatprep.subr.mxu0 0.0
        %3272 = vmatpush1.xpose.msra.mxu0 %v3267
        %3273 = vmatprep.subr.mxu0 0.0
        %3274 = vmatpush1.xpose.msra.mxu0 0.0
        %3275 = vmatprep.subr.mxu0 0.0
        %3276 = vmatpush1.xpose.msra.mxu0 0.0
        %3277 = vmatprep.subr.mxu0 0.0
        %3278 = vmatpush1.xpose.msra.mxu0 0.0
        %3279 = vmatprep.subr.mxu0 0.0
        %3280 = vmatpush1.xpose.msra.mxu0 0.0
        %3281 = vmatprep.subr.mxu0 0.0
        %3282 = vmatpush1.xpose.msra.mxu0 0.0
        %3283 = vmatprep.subr.mxu0 0.0
        %3284 = vmatpush1.xpose.msra.mxu0 0.0
        %3285 = vmatprep.subr.mxu0 0.0
        %3286 = vmatpush1.xpose.msra.mxu0 0.0
        %3287 = vmatprep.subr.mxu0 0.0
        %3288 = vmatpush1.xpose.msra.mxu0 0.0
        %3289 = vmatprep.subr.mxu0 0.0
        %3290 = vmatpush1.xpose.msra.mxu0 0.0
        %3291 = vmatprep.subr.mxu0 0.0
        %3292 = vmatpush1.xpose.msra.mxu0 0.0
        %3293 = vmatprep.subr.mxu0 0.0
        %3294 = vmatpush1.xpose.msra.mxu0 0.0
        %3295 = vmatprep.subr.mxu0 0.0
        %3296 = vmatpush1.xpose.msra.mxu0 0.0
        %3297 = vmatprep.subr.mxu0 0.0
        %3298 = vmatpush1.xpose.msra.mxu0 0.0
        %3299 = vmatprep.subr.mxu0 0.0
        %3300 = vmatpush1.xpose.msra.mxu0 0.0
        %3301 = vmatprep.subr.mxu0 0.0
        %3302 = vmatpush1.xpose.msra.mxu0 0.0
        %3303 = vmatprep.subr.mxu0 0.0
        %3304 = vmatpush1.xpose.msra.mxu0 0.0
        %3305 = vmatprep.subr.mxu0 0.0
        %3306 = vmatpush1.xpose.msra.mxu0 0.0
        %3307 = vmatprep.subr.mxu0 0.0
        %3308 = vmatpush1.xpose.msra.mxu0 0.0
        %3309 = vmatprep.subr.mxu0 0.0
        %3310 = vmatpush1.xpose.msra.mxu0 0.0
        %3311 = vmatprep.subr.mxu0 0.0
        %3312 = vmatpush1.xpose.msra.mxu0 0.0
        %3313 = vmatprep.subr.mxu0 0.0
        %3314 = vmatpush1.xpose.msra.mxu0 0.0
        %3315 = vmatprep.subr.mxu0 0.0
        %3316 = vmatpush1.xpose.msra.mxu0 0.0
        %3317 = vmatprep.subr.mxu0 0.0
        %3318 = vmatpush1.xpose.msra.mxu0 0.0
        %3319 = vmatprep.subr.mxu0 0.0
        %3320 = vmatpush1.xpose.msra.mxu0 0.0
        %3321 = vmatprep.subr.mxu0 0.0
        %3322 = vmatpush1.xpose.msra.mxu0 0.0
        %3323 = vmatprep.subr.mxu0 0.0
        %3324 = vmatpush1.xpose.msra.mxu0 0.0
        %3325 = vmatprep.subr.mxu0 0.0
        %3326 = vmatpush1.xpose.msra.mxu0 0.0
        %3327 = vmatprep.subr.mxu0 0.0
        %3328 = vmatpush1.xpose.msra.mxu0 0.0
        %3329 = vmatprep.subr.mxu0 0.0
        %3330 = vmatpush1.xpose.msra.mxu0 0.0
        %3331 = vmatprep.subr.mxu0 0.0
        %3332 = vmatpush1.xpose.msra.mxu0 0.0
        %3333 = vmatprep.mubr.f32.mxu0 0.0
        %3334 = vmatmul.mubr.f32.gmra.mrb[0].mxu0 %v3261
        %v3335 = vpop.f32.mrb[0].mxu0
        %v3336 = vadd.f32 0.0, %v3335
        %v3337 = vpop.f32.mrb[0].mxu0
        %3338 = vmatprep.mubr.f32.mxu0 0.0
        %3339 = vmatmul.mubr.f32.gmra.mrb[0].mxu0 %v3263
        %v3340 = vpop.f32.mrb[0].mxu0
        %v3341 = vadd.f32 0.0, %v3340
        %v3342 = vpop.f32.mrb[0].mxu0
        %3343 = vdwg.mxu0
        %v3344 = vmul.f32 %v3336, 0.17677669
        %v3345 = vmul.f32 %v3341, 0.17677669
        %v3346 = vadd.f32 %v3344, %v695
        %v3347 = vadd.f32 %v3345, %v696
        %v3348 = vsel %vm1066, %v3346, -inf
        %3349 = vmax.xlane.f32.xlu0 %v3348
        %v3350 = vpop.xlane.xlu0 %3349
        %v3351 = vsel %vm1070, %v3347, -inf
        %3352 = vmax.xlane.f32.xlu0 %v3351
        %v3353 = vpop.xlane.xlu0 %3352
        %v3354 = vsub.f32 %v3346, %v3350
        %v3355 = vsub.f32 %v3347, %v3353
        %v3356 = vmul.f32 %v3354, 1.442695
        %v3357 = vpow.pop %v3356
        %v3358 = vmul.f32 %v3355, 1.442695
        %v3359 = vpow.pop %v3358
        %v3360 = vsel %vm1066, %v3357, 0.0
        %3361 = vadd.xlane.f32.xlu0 %v3360
        %v3362 = vpop.xlane.xlu0 %3361
        %v3363 = vsel %vm1070, %v3359, 0.0
        %3364 = vadd.xlane.f32.xlu0 %v3363
        %v3365 = vpop.xlane.xlu0 %3364
        %v3366 = vrcp.pop %v3362
        %v3367 = vrcp.pop %v3365
        %v3368 = vmul.f32 %v3357, %v3366
        %v3369 = vmul.f32 %v3359, %v3367
        %3370 = vrot.lane.b32.xlu0 %v2730, 64
        %v3371 = vpop.permute.xlu0 %3370
        %3372 = vrot.lane.b32.xlu0 %v2733, 64
        %v3373 = vpop.permute.xlu0 %3372
        %v3376 = vsel %vm1066, %v3368, 0
        %v3379 = vsel %vm1066, %v3369, 0
        %v3381 = vsel %vm1096, %v3373, 0
        %3383 = vmatprep.subr.mxu0 0.0
        %3384 = vmatpush1.msra.mxu0 %v3371
        %3385 = vmatprep.subr.mxu0 0.0
        %3386 = vmatpush1.msra.mxu0 %v3381
        %3387 = vmatprep.subr.mxu0 0.0
        %3388 = vmatpush1.msra.mxu0 0.0
        %3389 = vmatprep.subr.mxu0 0.0
        %3390 = vmatpush1.msra.mxu0 0.0
        %3391 = vmatprep.subr.mxu0 0.0
        %3392 = vmatpush1.msra.mxu0 0.0
        %3393 = vmatprep.subr.mxu0 0.0
        %3394 = vmatpush1.msra.mxu0 0.0
        %3395 = vmatprep.subr.mxu0 0.0
        %3396 = vmatpush1.msra.mxu0 0.0
        %3397 = vmatprep.subr.mxu0 0.0
        %3398 = vmatpush1.msra.mxu0 0.0
        %3399 = vmatprep.subr.mxu0 0.0
        %3400 = vmatpush1.msra.mxu0 0.0
        %3401 = vmatprep.subr.mxu0 0.0
        %3402 = vmatpush1.msra.mxu0 0.0
        %3403 = vmatprep.subr.mxu0 0.0
        %3404 = vmatpush1.msra.mxu0 0.0
        %3405 = vmatprep.subr.mxu0 0.0
        %3406 = vmatpush1.msra.mxu0 0.0
        %3407 = vmatprep.subr.mxu0 0.0
        %3408 = vmatpush1.msra.mxu0 0.0
        %3409 = vmatprep.subr.mxu0 0.0
        %3410 = vmatpush1.msra.mxu0 0.0
        %3411 = vmatprep.subr.mxu0 0.0
        %3412 = vmatpush1.msra.mxu0 0.0
        %3413 = vmatprep.subr.mxu0 0.0
        %3414 = vmatpush1.msra.mxu0 0.0
        %3415 = vmatprep.subr.mxu0 0.0
        %3416 = vmatpush1.msra.mxu0 0.0
        %3417 = vmatprep.subr.mxu0 0.0
        %3418 = vmatpush1.msra.mxu0 0.0
        %3419 = vmatprep.subr.mxu0 0.0
        %3420 = vmatpush1.msra.mxu0 0.0
        %3421 = vmatprep.subr.mxu0 0.0
        %3422 = vmatpush1.msra.mxu0 0.0
        %3423 = vmatprep.subr.mxu0 0.0
        %3424 = vmatpush1.msra.mxu0 0.0
        %3425 = vmatprep.subr.mxu0 0.0
        %3426 = vmatpush1.msra.mxu0 0.0
        %3427 = vmatprep.subr.mxu0 0.0
        %3428 = vmatpush1.msra.mxu0 0.0
        %3429 = vmatprep.subr.mxu0 0.0
        %3430 = vmatpush1.msra.mxu0 0.0
        %3431 = vmatprep.subr.mxu0 0.0
        %3432 = vmatpush1.msra.mxu0 0.0
        %3433 = vmatprep.subr.mxu0 0.0
        %3434 = vmatpush1.msra.mxu0 0.0
        %3435 = vmatprep.subr.mxu0 0.0
        %3436 = vmatpush1.msra.mxu0 0.0
        %3437 = vmatprep.subr.mxu0 0.0
        %3438 = vmatpush1.msra.mxu0 0.0
        %3439 = vmatprep.subr.mxu0 0.0
        %3440 = vmatpush1.msra.mxu0 0.0
        %3441 = vmatprep.subr.mxu0 0.0
        %3442 = vmatpush1.msra.mxu0 0.0
        %3443 = vmatprep.subr.mxu0 0.0
        %3444 = vmatpush1.msra.mxu0 0.0
        %3445 = vmatprep.subr.mxu0 0.0
        %3446 = vmatpush1.msra.mxu0 0.0
        %3447 = vmatprep.mubr.f32.mxu0 0.0
        %3448 = vmatmul.mubr.f32.gmra.mrb[0].mxu0 %v3376
        %v3449 = vpop.f32.mrb[0].mxu0
        %v3450 = vadd.f32 0.0, %v3449
        %v3451 = vpop.f32.mrb[0].mxu0
        %3452 = vmatprep.mubr.f32.mxu0 0.0
        %3453 = vmatmul.mubr.f32.gmra.mrb[0].mxu0 %v3379
        %v3454 = vpop.f32.mrb[0].mxu0
        %v3455 = vadd.f32 0.0, %v3454
        %v3456 = vpop.f32.mrb[0].mxu0
        %3457 = vdwg.mxu0
        %v3458 = vpack.c.bf16 %v3455, %v3450
        %v3463 = vunpack.c.l.b16 %v2497
        %v3464 = vunpack.c.l.b16 %v2498
        %v3465 = vunpack.c.l.b16 %v2499
        %v3466 = vunpack.c.l.b16 %v2500
        %v3467 = vpack.c.b16 %v3464, %v3463
        %v3468 = vpack.c.b16 %v3466, %v3465
        %v3472 = vsel %vm644, %v3458, 0
        %3474 = vmatprep.subr.bf16.mxu0 0
        %3475 = vmatpush1.bf16.msra.mxu0 %v3467
        %3476 = vmatprep.subr.bf16.mxu0 0
        %3477 = vmatpush1.bf16.msra.mxu0 %v3468
        %3478 = vmatprep.subr.bf16.mxu0 0
        %3479 = vmatpush1.bf16.msra.mxu0 0
        %3480 = vmatprep.subr.bf16.mxu0 0
        %3481 = vmatpush1.bf16.msra.mxu0 0
        %3482 = vmatprep.subr.bf16.mxu0 0
        %3483 = vmatpush1.bf16.msra.mxu0 0
        %3484 = vmatprep.subr.bf16.mxu0 0
        %3485 = vmatpush1.bf16.msra.mxu0 0
        %3486 = vmatprep.subr.bf16.mxu0 0
        %3487 = vmatpush1.bf16.msra.mxu0 0
        %3488 = vmatprep.subr.bf16.mxu0 0
        %3489 = vmatpush1.bf16.msra.mxu0 0
        %3490 = vmatprep.subr.bf16.mxu0 0
        %3491 = vmatpush1.bf16.msra.mxu0 0
        %3492 = vmatprep.subr.bf16.mxu0 0
        %3493 = vmatpush1.bf16.msra.mxu0 0
        %3494 = vmatprep.subr.bf16.mxu0 0
        %3495 = vmatpush1.bf16.msra.mxu0 0
        %3496 = vmatprep.subr.bf16.mxu0 0
        %3497 = vmatpush1.bf16.msra.mxu0 0
        %3498 = vmatprep.subr.bf16.mxu0 0
        %3499 = vmatpush1.bf16.msra.mxu0 0
        %3500 = vmatprep.subr.bf16.mxu0 0
        %3501 = vmatpush1.bf16.msra.mxu0 0
        %3502 = vmatprep.subr.bf16.mxu0 0
        %3503 = vmatpush1.bf16.msra.mxu0 0
        %3504 = vmatprep.subr.bf16.mxu0 0
        %3505 = vmatpush1.bf16.msra.mxu0 0
        %3506 = vmatprep.mubr.bf16.mxu0 0
        %3507 = vmatmul.mubr.bf16.gmra.mrb[0].mxu0 %v3472
        %v3508 = vpop.f32.mrb[0].mxu0
        %v3509 = vadd.f32 0.0, %v3508
        %v3510 = vpop.f32.mrb[0].mxu0
        %v3511 = vpop.f32.mrb[0].mxu0
        %v3512 = vadd.f32 0.0, %v3511
        %v3513 = vpop.f32.mrb[0].mxu0
        %3514 = vdwg.mxu0
        %v3515 = vadd.f32 %v3247, %v3509
        %v3516 = vadd.f32 %v3250, %v3512
        %3517 = vrot.lane.b32.xlu0 %v2687, 32
        %v3518 = vpop.permute.xlu0 %3517
        %3519 = vrot.lane.b32.xlu0 %v2691, 32
        %v3520 = vpop.permute.xlu0 %3519
        %3521 = vrot.lane.b32.xlu0 %v2689, 32
        %v3522 = vpop.permute.xlu0 %3521
        %3523 = vrot.lane.b32.xlu0 %v2693, 32
        %v3524 = vpop.permute.xlu0 %3523
        %v3525 = vsel %vm644, %v3518, 0
        %v3527 = vsel %vm644, %v3520, 0
        %v3529 = vsel %vm644, %v3522, 0
        %v3531 = vsel %vm644, %v3524, 0
        %3533 = vmatprep.subr.mxu0 0.0
        %3534 = vmatpush1.xpose.msra.mxu0 %v3529
        %3535 = vmatprep.subr.mxu0 0.0
        %3536 = vmatpush1.xpose.msra.mxu0 %v3531
        %3537 = vmatprep.subr.mxu0 0.0
        %3538 = vmatpush1.xpose.msra.mxu0 0.0
        %3539 = vmatprep.subr.mxu0 0.0
        %3540 = vmatpush1.xpose.msra.mxu0 0.0
        %3541 = vmatprep.subr.mxu0 0.0
        %3542 = vmatpush1.xpose.msra.mxu0 0.0
        %3543 = vmatprep.subr.mxu0 0.0
        %3544 = vmatpush1.xpose.msra.mxu0 0.0
        %3545 = vmatprep.subr.mxu0 0.0
        %3546 = vmatpush1.xpose.msra.mxu0 0.0
        %3547 = vmatprep.subr.mxu0 0.0
        %3548 = vmatpush1.xpose.msra.mxu0 0.0
        %3549 = vmatprep.subr.mxu0 0.0
        %3550 = vmatpush1.xpose.msra.mxu0 0.0
        %3551 = vmatprep.subr.mxu0 0.0
        %3552 = vmatpush1.xpose.msra.mxu0 0.0
        %3553 = vmatprep.subr.mxu0 0.0
        %3554 = vmatpush1.xpose.msra.mxu0 0.0
        %3555 = vmatprep.subr.mxu0 0.0
        %3556 = vmatpush1.xpose.msra.mxu0 0.0
        %3557 = vmatprep.subr.mxu0 0.0
        %3558 = vmatpush1.xpose.msra.mxu0 0.0
        %3559 = vmatprep.subr.mxu0 0.0
        %3560 = vmatpush1.xpose.msra.mxu0 0.0
        %3561 = vmatprep.subr.mxu0 0.0
        %3562 = vmatpush1.xpose.msra.mxu0 0.0
        %3563 = vmatprep.subr.mxu0 0.0
        %3564 = vmatpush1.xpose.msra.mxu0 0.0
        %3565 = vmatprep.subr.mxu0 0.0
        %3566 = vmatpush1.xpose.msra.mxu0 0.0
        %3567 = vmatprep.subr.mxu0 0.0
        %3568 = vmatpush1.xpose.msra.mxu0 0.0
        %3569 = vmatprep.subr.mxu0 0.0
        %3570 = vmatpush1.xpose.msra.mxu0 0.0
        %3571 = vmatprep.subr.mxu0 0.0
        %3572 = vmatpush1.xpose.msra.mxu0 0.0
        %3573 = vmatprep.subr.mxu0 0.0
        %3574 = vmatpush1.xpose.msra.mxu0 0.0
        %3575 = vmatprep.subr.mxu0 0.0
        %3576 = vmatpush1.xpose.msra.mxu0 0.0
        %3577 = vmatprep.subr.mxu0 0.0
        %3578 = vmatpush1.xpose.msra.mxu0 0.0
        %3579 = vmatprep.subr.mxu0 0.0
        %3580 = vmatpush1.xpose.msra.mxu0 0.0
        %3581 = vmatprep.subr.mxu0 0.0
        %3582 = vmatpush1.xpose.msra.mxu0 0.0
        %3583 = vmatprep.subr.mxu0 0.0
        %3584 = vmatpush1.xpose.msra.mxu0 0.0
        %3585 = vmatprep.subr.mxu0 0.0
        %3586 = vmatpush1.xpose.msra.mxu0 0.0
        %3587 = vmatprep.subr.mxu0 0.0
        %3588 = vmatpush1.xpose.msra.mxu0 0.0
        %3589 = vmatprep.subr.mxu0 0.0
        %3590 = vmatpush1.xpose.msra.mxu0 0.0
        %3591 = vmatprep.subr.mxu0 0.0
        %3592 = vmatpush1.xpose.msra.mxu0 0.0
        %3593 = vmatprep.subr.mxu0 0.0
        %3594 = vmatpush1.xpose.msra.mxu0 0.0
        %3595 = vmatprep.subr.mxu0 0.0
        %3596 = vmatpush1.xpose.msra.mxu0 0.0
        %3597 = vmatprep.mubr.f32.mxu0 0.0
        %3598 = vmatmul.mubr.f32.gmra.mrb[0].mxu0 %v3525
        %v3599 = vpop.f32.mrb[0].mxu0
        %v3600 = vadd.f32 0.0, %v3599
        %v3601 = vpop.f32.mrb[0].mxu0
        %3602 = vmatprep.mubr.f32.mxu0 0.0
        %3603 = vmatmul.mubr.f32.gmra.mrb[0].mxu0 %v3527
        %v3604 = vpop.f32.mrb[0].mxu0
        %v3605 = vadd.f32 0.0, %v3604
        %v3606 = vpop.f32.mrb[0].mxu0
        %3607 = vdwg.mxu0
        %v3608 = vmul.f32 %v3600, 0.17677669
        %v3609 = vmul.f32 %v3605, 0.17677669
        %v3610 = vadd.f32 %v3608, %v695
        %v3611 = vadd.f32 %v3609, %v696
        %v3612 = vsel %vm1066, %v3610, -inf
        %3613 = vmax.xlane.f32.xlu0 %v3612
        %v3614 = vpop.xlane.xlu0 %3613
        %v3615 = vsel %vm1070, %v3611, -inf
        %3616 = vmax.xlane.f32.xlu0 %v3615
        %v3617 = vpop.xlane.xlu0 %3616
        %v3618 = vsub.f32 %v3610, %v3614
        %v3619 = vsub.f32 %v3611, %v3617
        %v3620 = vmul.f32 %v3618, 1.442695
        %v3621 = vpow.pop %v3620
        %v3622 = vmul.f32 %v3619, 1.442695
        %v3623 = vpow.pop %v3622
        %v3624 = vsel %vm1066, %v3621, 0.0
        %3625 = vadd.xlane.f32.xlu0 %v3624
        %v3626 = vpop.xlane.xlu0 %3625
        %v3627 = vsel %vm1070, %v3623, 0.0
        %3628 = vadd.xlane.f32.xlu0 %v3627
        %v3629 = vpop.xlane.xlu0 %3628
        %v3630 = vrcp.pop %v3626
        %v3631 = vrcp.pop %v3629
        %v3632 = vmul.f32 %v3621, %v3630
        %v3633 = vmul.f32 %v3623, %v3631
        %3634 = vrot.lane.b32.xlu0 %v2730, 32
        %v3635 = vpop.permute.xlu0 %3634
        %3636 = vrot.lane.b32.xlu0 %v2733, 32
        %v3637 = vpop.permute.xlu0 %3636
        %v3640 = vsel %vm1066, %v3632, 0
        %v3643 = vsel %vm1066, %v3633, 0
        %v3645 = vsel %vm1096, %v3637, 0
        %3647 = vmatprep.subr.mxu0 0.0
        %3648 = vmatpush1.msra.mxu0 %v3635
        %3649 = vmatprep.subr.mxu0 0.0
        %3650 = vmatpush1.msra.mxu0 %v3645
        %3651 = vmatprep.subr.mxu0 0.0
        %3652 = vmatpush1.msra.mxu0 0.0
        %3653 = vmatprep.subr.mxu0 0.0
        %3654 = vmatpush1.msra.mxu0 0.0
        %3655 = vmatprep.subr.mxu0 0.0
        %3656 = vmatpush1.msra.mxu0 0.0
        %3657 = vmatprep.subr.mxu0 0.0
        %3658 = vmatpush1.msra.mxu0 0.0
        %3659 = vmatprep.subr.mxu0 0.0
        %3660 = vmatpush1.msra.mxu0 0.0
        %3661 = vmatprep.subr.mxu0 0.0
        %3662 = vmatpush1.msra.mxu0 0.0
        %3663 = vmatprep.subr.mxu0 0.0
        %3664 = vmatpush1.msra.mxu0 0.0
        %3665 = vmatprep.subr.mxu0 0.0
        %3666 = vmatpush1.msra.mxu0 0.0
        %3667 = vmatprep.subr.mxu0 0.0
        %3668 = vmatpush1.msra.mxu0 0.0
        %3669 = vmatprep.subr.mxu0 0.0
        %3670 = vmatpush1.msra.mxu0 0.0
        %3671 = vmatprep.subr.mxu0 0.0
        %3672 = vmatpush1.msra.mxu0 0.0
        %3673 = vmatprep.subr.mxu0 0.0
        %3674 = vmatpush1.msra.mxu0 0.0
        %3675 = vmatprep.subr.mxu0 0.0
        %3676 = vmatpush1.msra.mxu0 0.0
        %3677 = vmatprep.subr.mxu0 0.0
        %3678 = vmatpush1.msra.mxu0 0.0
        %3679 = vmatprep.subr.mxu0 0.0
        %3680 = vmatpush1.msra.mxu0 0.0
        %3681 = vmatprep.subr.mxu0 0.0
        %3682 = vmatpush1.msra.mxu0 0.0
        %3683 = vmatprep.subr.mxu0 0.0
        %3684 = vmatpush1.msra.mxu0 0.0
        %3685 = vmatprep.subr.mxu0 0.0
        %3686 = vmatpush1.msra.mxu0 0.0
        %3687 = vmatprep.subr.mxu0 0.0
        %3688 = vmatpush1.msra.mxu0 0.0
        %3689 = vmatprep.subr.mxu0 0.0
        %3690 = vmatpush1.msra.mxu0 0.0
        %3691 = vmatprep.subr.mxu0 0.0
        %3692 = vmatpush1.msra.mxu0 0.0
        %3693 = vmatprep.subr.mxu0 0.0
        %3694 = vmatpush1.msra.mxu0 0.0
        %3695 = vmatprep.subr.mxu0 0.0
        %3696 = vmatpush1.msra.mxu0 0.0
        %3697 = vmatprep.subr.mxu0 0.0
        %3698 = vmatpush1.msra.mxu0 0.0
        %3699 = vmatprep.subr.mxu0 0.0
        %3700 = vmatpush1.msra.mxu0 0.0
        %3701 = vmatprep.subr.mxu0 0.0
        %3702 = vmatpush1.msra.mxu0 0.0
        %3703 = vmatprep.subr.mxu0 0.0
        %3704 = vmatpush1.msra.mxu0 0.0
        %3705 = vmatprep.subr.mxu0 0.0
        %3706 = vmatpush1.msra.mxu0 0.0
        %3707 = vmatprep.subr.mxu0 0.0
        %3708 = vmatpush1.msra.mxu0 0.0
        %3709 = vmatprep.subr.mxu0 0.0
        %3710 = vmatpush1.msra.mxu0 0.0
        %3711 = vmatprep.mubr.f32.mxu0 0.0
        %3712 = vmatmul.mubr.f32.gmra.mrb[0].mxu0 %v3640
        %v3713 = vpop.f32.mrb[0].mxu0
        %v3714 = vadd.f32 0.0, %v3713
        %v3715 = vpop.f32.mrb[0].mxu0
        %3716 = vmatprep.mubr.f32.mxu0 0.0
        %3717 = vmatmul.mubr.f32.gmra.mrb[0].mxu0 %v3643
        %v3718 = vpop.f32.mrb[0].mxu0
        %v3719 = vadd.f32 0.0, %v3718
        %v3720 = vpop.f32.mrb[0].mxu0
        %3721 = vdwg.mxu0
        %v3722 = vpack.c.bf16 %v3719, %v3714
        %v3727 = vunpack.c.l.b16 %v2501
        %v3728 = vunpack.c.l.b16 %v2502
        %v3729 = vunpack.c.l.b16 %v2503
        %v3730 = vunpack.c.l.b16 %v2504
        %v3731 = vpack.c.b16 %v3728, %v3727
        %v3732 = vpack.c.b16 %v3730, %v3729
        %v3736 = vsel %vm644, %v3722, 0
        %3738 = vmatprep.subr.bf16.mxu0 0
        %3739 = vmatpush1.bf16.msra.mxu0 %v3731
        %3740 = vmatprep.subr.bf16.mxu0 0
        %3741 = vmatpush1.bf16.msra.mxu0 %v3732
        %3742 = vmatprep.subr.bf16.mxu0 0
        %3743 = vmatpush1.bf16.msra.mxu0 0
        %3744 = vmatprep.subr.bf16.mxu0 0
        %3745 = vmatpush1.bf16.msra.mxu0 0
        %3746 = vmatprep.subr.bf16.mxu0 0
        %3747 = vmatpush1.bf16.msra.mxu0 0
        %3748 = vmatprep.subr.bf16.mxu0 0
        %3749 = vmatpush1.bf16.msra.mxu0 0
        %3750 = vmatprep.subr.bf16.mxu0 0
        %3751 = vmatpush1.bf16.msra.mxu0 0
        %3752 = vmatprep.subr.bf16.mxu0 0
        %3753 = vmatpush1.bf16.msra.mxu0 0
        %3754 = vmatprep.subr.bf16.mxu0 0
        %3755 = vmatpush1.bf16.msra.mxu0 0
        %3756 = vmatprep.subr.bf16.mxu0 0
        %3757 = vmatpush1.bf16.msra.mxu0 0
        %3758 = vmatprep.subr.bf16.mxu0 0
        %3759 = vmatpush1.bf16.msra.mxu0 0
        %3760 = vmatprep.subr.bf16.mxu0 0
        %3761 = vmatpush1.bf16.msra.mxu0 0
        %3762 = vmatprep.subr.bf16.mxu0 0
        %3763 = vmatpush1.bf16.msra.mxu0 0
        %3764 = vmatprep.subr.bf16.mxu0 0
        %3765 = vmatpush1.bf16.msra.mxu0 0
        %3766 = vmatprep.subr.bf16.mxu0 0
        %3767 = vmatpush1.bf16.msra.mxu0 0
        %3768 = vmatprep.subr.bf16.mxu0 0
        %3769 = vmatpush1.bf16.msra.mxu0 0
        %3770 = vmatprep.mubr.bf16.mxu0 0
        %3771 = vmatmul.mubr.bf16.gmra.mrb[0].mxu0 %v3736
        %v3772 = vpop.f32.mrb[0].mxu0
        %v3773 = vadd.f32 0.0, %v3772
        %v3774 = vpop.f32.mrb[0].mxu0
        %v3775 = vpop.f32.mrb[0].mxu0
        %v3776 = vadd.f32 0.0, %v3775
        %v3777 = vpop.f32.mrb[0].mxu0
        %3778 = vdwg.mxu0
        %v3779 = vadd.f32 %v3515, %v3773
        %v3780 = vadd.f32 %v3516, %v3776
        %s3781 = scalar_lea.vmem %s8, 1
        %v3782 = vld [vmem:[%s3781] sm:$0x1]
        %v3784 = vlaneseq
        %v3785 = vshrl.u32 %v3784, 7
        %v3786 = vsub.s32 0, %v3785
        %v3787 = vrot.slane %v3782, %v3786
        %v3789 = vadd.f32 %v3779, %v3787
        %v3790 = vadd.f32 %v3780, %v3787
        %v3791 = vadd.f32 %v2453, %v3789
        %v3792 = vadd.f32 %v2454, %v3790
        %3793 = vadd.xlane.f32.xlu0 %v3791
        %v3794 = vpop.xlane.xlu0 %3793
        %v3795 = vsel %vm1096, %v3792, 0.0
        %3796 = vadd.xlane.f32.xlu0 %v3795
        %v3797 = vpop.xlane.xlu0 %3796
        %v3798 = vmul.f32 %v3794, %v2039
        %v3799 = vmul.f32 %v3797, %v2039
        %v3800 = vsub.f32 %v3791, %v3798
        %v3801 = vsub.f32 %v3792, %v3799
        %v3802 = vmul.f32 %v3800, %v3800
        %v3803 = vmul.f32 %v3801, %v3801
        %3804 = vadd.xlane.f32.xlu0 %v3802
        %v3805 = vpop.xlane.xlu0 %3804
        %v3806 = vsel %vm1096, %v3803, 0.0
        %3807 = vadd.xlane.f32.xlu0 %v3806
        %v3808 = vpop.xlane.xlu0 %3807
        %v3809 = vmul.f32 %v3805, %v2039
        %v3810 = vmul.f32 %v3808, %v2039
        %v3811 = vadd.f32 %v3809, 1e-05
        %v3812 = vadd.f32 %v3810, 1e-05
        %v3813 = vrsqrt.pop %v3811
        %v3814 = vrsqrt.pop %v3812
        %v3815 = vmul.f32 %v3800, %v3813
        %v3816 = vmul.f32 %v3801, %v3814
        %s3817 = scalar_lea.vmem %s13, 1
        %v3818 = vld [vmem:[%s3817] sm:$0x1]
        %v3820 = vlaneseq
        %v3821 = vshrl.u32 %v3820, 7
        %v3822 = vsub.s32 0, %v3821
        %v3823 = vrot.slane %v3818, %v3822
        %v3825 = vmul.f32 %v3815, %v3823
        %v3826 = vmul.f32 %v3816, %v3823
        %s3827 = scalar_lea.vmem %s14, 1
        %v3828 = vld [vmem:[%s3827] sm:$0x1]
        %v3830 = vlaneseq
        %v3831 = vshrl.u32 %v3830, 7
        %v3832 = vsub.s32 0, %v3831
        %v3833 = vrot.slane %v3828, %v3832
        %v3835 = vadd.f32 %v3825, %v3833
        %v3836 = vadd.f32 %v3826, %v3833
        %v3837 = vpack.c.bf16 %v3836, %v3835
        %s3838 = scalar_lea.vmem [#allocation8], 128
        %v3839 = vld [vmem:[%s3838] sm:$0xff]
        %v3840 = vld [vmem:[%s3838 + $0x8] sm:$0xff]
        %v3841 = vld [vmem:[%s3838 + $0x10] sm:$0xff]
        %v3842 = vld [vmem:[%s3838 + $0x18] sm:$0xff]
        %v3843 = vld [vmem:[%s3838 + $0x20] sm:$0xff]
        %v3844 = vld [vmem:[%s3838 + $0x28] sm:$0xff]
        %v3845 = vld [vmem:[%s3838 + $0x30] sm:$0xff]
        %v3846 = vld [vmem:[%s3838 + $0x38] sm:$0xff]
        %v3847 = vld [vmem:[%s3838 + $0x40] sm:$0xff]
        %v3848 = vld [vmem:[%s3838 + $0x48] sm:$0xff]
        %v3849 = vld [vmem:[%s3838 + $0x50] sm:$0xff]
        %v3850 = vld [vmem:[%s3838 + $0x58] sm:$0xff]
        %v3851 = vld [vmem:[%s3838 + $0x60] sm:$0xff]
        %v3852 = vld [vmem:[%s3838 + $0x68] sm:$0xff]
        %v3853 = vld [vmem:[%s3838 + $0x70] sm:$0xff]
        %v3854 = vld [vmem:[%s3838 + $0x78] sm:$0xff]
        %s3855 = scalar_lea.vmem %s10, 2
        %v3856 = vld [vmem:[%s3855] sm:$0x3]
        %v3858 = vlaneseq
        %v3859 = vshrl.u32 %v3858, 7
        %v3860 = vsub.s32 0, %v3859
        %v3861 = vrot.slane %v3856, %v3860
        %v3862 = vlaneseq
        %v3863 = vshrl.u32 %v3862, 7
        %v3864 = vsub.s32 1, %v3863
        %v3865 = vrot.slane %v3856, %v3864
        %v3884 = vunpack.c.l.b16 %v3839
        %v3885 = vunpack.c.h.b16 %v3839
        %v3886 = vunpack.c.l.b16 %v3840
        %v3887 = vunpack.c.h.b16 %v3840
        %v3888 = vunpack.c.l.b16 %v3841
        %v3889 = vunpack.c.h.b16 %v3841
        %v3890 = vunpack.c.l.b16 %v3842
        %v3891 = vunpack.c.h.b16 %v3842
        %v3892 = vunpack.c.l.b16 %v3843
        %v3893 = vunpack.c.h.b16 %v3843
        %v3894 = vunpack.c.l.b16 %v3844
        %v3895 = vunpack.c.h.b16 %v3844
        %v3896 = vunpack.c.l.b16 %v3845
        %v3897 = vunpack.c.h.b16 %v3845
        %v3898 = vunpack.c.l.b16 %v3846
        %v3899 = vunpack.c.h.b16 %v3846
        %v3900 = vunpack.c.l.b16 %v3847
        %v3901 = vunpack.c.h.b16 %v3847
        %v3902 = vunpack.c.l.b16 %v3848
        %v3903 = vunpack.c.h.b16 %v3848
        %v3904 = vunpack.c.l.b16 %v3849
        %v3905 = vunpack.c.h.b16 %v3849
        %v3906 = vunpack.c.l.b16 %v3850
        %v3907 = vunpack.c.h.b16 %v3850
        %v3908 = vunpack.c.l.b16 %v3851
        %v3909 = vunpack.c.h.b16 %v3851
        %v3910 = vunpack.c.l.b16 %v3852
        %v3911 = vunpack.c.h.b16 %v3852
        %v3912 = vunpack.c.l.b16 %v3853
        %v3913 = vunpack.c.h.b16 %v3853
        %v3914 = vunpack.c.l.b16 %v3854
        %v3915 = vunpack.c.h.b16 %v3854
        %v3916 = vpack.c.b16 %v3886, %v3884
        %v3917 = vpack.c.b16 %v3887, %v3885
        %v3918 = vpack.c.b16 %v3890, %v3888
        %v3919 = vpack.c.b16 %v3891, %v3889
        %v3920 = vpack.c.b16 %v3894, %v3892
        %v3921 = vpack.c.b16 %v3895, %v3893
        %v3922 = vpack.c.b16 %v3898, %v3896
        %v3923 = vpack.c.b16 %v3899, %v3897
        %v3924 = vpack.c.b16 %v3902, %v3900
        %v3925 = vpack.c.b16 %v3903, %v3901
        %v3926 = vpack.c.b16 %v3906, %v3904
        %v3927 = vpack.c.b16 %v3907, %v3905
        %v3928 = vpack.c.b16 %v3910, %v3908
        %v3929 = vpack.c.b16 %v3911, %v3909
        %v3930 = vpack.c.b16 %v3914, %v3912
        %v3931 = vpack.c.b16 %v3915, %v3913
        %3948 = vmatprep.subr.bf16.mxu0 %v3917
        %3949 = vmatpush1.bf16.msra.mxu0 %v3916
        %3950 = vmatprep.subr.bf16.mxu0 %v3919
        %3951 = vmatpush1.bf16.msra.mxu0 %v3918
        %3952 = vmatprep.subr.bf16.mxu0 %v3921
        %3953 = vmatpush1.bf16.msra.mxu0 %v3920
        %3954 = vmatprep.subr.bf16.mxu0 %v3923
        %3955 = vmatpush1.bf16.msra.mxu0 %v3922
        %3956 = vmatprep.subr.bf16.mxu0 %v3925
        %3957 = vmatpush1.bf16.msra.mxu0 %v3924
        %3958 = vmatprep.subr.bf16.mxu0 %v3927
        %3959 = vmatpush1.bf16.msra.mxu0 %v3926
        %3960 = vmatprep.subr.bf16.mxu0 %v3929
        %3961 = vmatpush1.bf16.msra.mxu0 %v3928
        %3962 = vmatprep.subr.bf16.mxu0 %v3931
        %3963 = vmatpush1.bf16.msra.mxu0 %v3930
        %3964 = vmatprep.subr.bf16.mxu0 0
        %3965 = vmatpush1.bf16.msra.mxu0 0
        %3966 = vmatprep.subr.bf16.mxu0 0
        %3967 = vmatpush1.bf16.msra.mxu0 0
        %3968 = vmatprep.subr.bf16.mxu0 0
        %3969 = vmatpush1.bf16.msra.mxu0 0
        %3970 = vmatprep.subr.bf16.mxu0 0
        %3971 = vmatpush1.bf16.msra.mxu0 0
        %3972 = vmatprep.subr.bf16.mxu0 0
        %3973 = vmatpush1.bf16.msra.mxu0 0
        %3974 = vmatprep.subr.bf16.mxu0 0
        %3975 = vmatpush1.bf16.msra.mxu0 0
        %3976 = vmatprep.subr.bf16.mxu0 0
        %3977 = vmatpush1.bf16.msra.mxu0 0
        %3978 = vmatprep.subr.bf16.mxu0 0
        %3979 = vmatpush1.bf16.msra.mxu0 0
        %3980 = vmatprep.mubr.bf16.mxu0 0
        %3981 = vmatmul.mubr.bf16.gmra.mrb[0].mxu0 %v3837
        %v3982 = vpop.f32.mrb[0].mxu0
        %v3983 = vadd.f32 %v3861, %v3982
        %v3984 = vpop.f32.mrb[0].mxu0
        %v3985 = vadd.f32 %v3865, %v3984
        %v3986 = vpop.f32.mrb[0].mxu0
        %v3987 = vadd.f32 %v3861, %v3986
        %v3988 = vpop.f32.mrb[0].mxu0
        %v3989 = vadd.f32 %v3865, %v3988
        %3990 = vdwg.mxu0
        %v3991 = vmax.f32 %v3983, 0.0
        %v3992 = vmax.f32 %v3985, 0.0
        %v3993 = vmax.f32 %v3987, 0.0
        %v3994 = vmax.f32 %v3989, 0.0
        %v3995 = vpack.c.bf16 %v3993, %v3991
        %v3996 = vpack.c.bf16 %v3994, %v3992
        %s3997 = scalar_lea.vmem [#allocation10], 128
        %v3998 = vld [vmem:[%s3997] sm:$0xf]
        %v3999 = vld [vmem:[%s3997 + $0x4] sm:$0xf]
        %v4000 = vld [vmem:[%s3997 + $0x8] sm:$0xf]
        %v4001 = vld [vmem:[%s3997 + $0xc] sm:$0xf]
        %v4002 = vld [vmem:[%s3997 + $0x10] sm:$0xf]
        %v4003 = vld [vmem:[%s3997 + $0x14] sm:$0xf]
        %v4004 = vld [vmem:[%s3997 + $0x18] sm:$0xf]
        %v4005 = vld [vmem:[%s3997 + $0x1c] sm:$0xf]
        %v4006 = vld [vmem:[%s3997 + $0x20] sm:$0xf]
        %v4007 = vld [vmem:[%s3997 + $0x24] sm:$0xf]
        %v4008 = vld [vmem:[%s3997 + $0x28] sm:$0xf]
        %v4009 = vld [vmem:[%s3997 + $0x2c] sm:$0xf]
        %v4010 = vld [vmem:[%s3997 + $0x30] sm:$0xf]
        %v4011 = vld [vmem:[%s3997 + $0x34] sm:$0xf]
        %v4012 = vld [vmem:[%s3997 + $0x38] sm:$0xf]
        %v4013 = vld [vmem:[%s3997 + $0x3c] sm:$0xf]
        %v4014 = vld [vmem:[%s3997 + $0x40] sm:$0xf]
        %v4015 = vld [vmem:[%s3997 + $0x44] sm:$0xf]
        %v4016 = vld [vmem:[%s3997 + $0x48] sm:$0xf]
        %v4017 = vld [vmem:[%s3997 + $0x4c] sm:$0xf]
        %v4018 = vld [vmem:[%s3997 + $0x50] sm:$0xf]
        %v4019 = vld [vmem:[%s3997 + $0x54] sm:$0xf]
        %v4020 = vld [vmem:[%s3997 + $0x58] sm:$0xf]
        %v4021 = vld [vmem:[%s3997 + $0x5c] sm:$0xf]
        %v4022 = vld [vmem:[%s3997 + $0x60] sm:$0xf]
        %v4023 = vld [vmem:[%s3997 + $0x64] sm:$0xf]
        %v4024 = vld [vmem:[%s3997 + $0x68] sm:$0xf]
        %v4025 = vld [vmem:[%s3997 + $0x6c] sm:$0xf]
        %v4026 = vld [vmem:[%s3997 + $0x70] sm:$0xf]
        %v4027 = vld [vmem:[%s3997 + $0x74] sm:$0xf]
        %v4028 = vld [vmem:[%s3997 + $0x78] sm:$0xf]
        %v4029 = vld [vmem:[%s3997 + $0x7c] sm:$0xf]
        %s4030 = scalar_lea.vmem %s12, 1
        %v4031 = vld [vmem:[%s4030] sm:$0x1]
        %v4033 = vlaneseq
        %v4034 = vshrl.u32 %v4033, 7
        %v4035 = vsub.s32 0, %v4034
        %v4036 = vrot.slane %v4031, %v4035
        %v4070 = vunpack.c.l.b16 %v3998
        %v4071 = vunpack.c.l.b16 %v3999
        %v4072 = vunpack.c.l.b16 %v4000
        %v4073 = vunpack.c.l.b16 %v4001
        %v4074 = vunpack.c.l.b16 %v4002
        %v4075 = vunpack.c.l.b16 %v4003
        %v4076 = vunpack.c.l.b16 %v4004
        %v4077 = vunpack.c.l.b16 %v4005
        %v4078 = vunpack.c.l.b16 %v4006
        %v4079 = vunpack.c.l.b16 %v4007
        %v4080 = vunpack.c.l.b16 %v4008
        %v4081 = vunpack.c.l.b16 %v4009
        %v4082 = vunpack.c.l.b16 %v4010
        %v4083 = vunpack.c.l.b16 %v4011
        %v4084 = vunpack.c.l.b16 %v4012
        %v4085 = vunpack.c.l.b16 %v4013
        %v4086 = vunpack.c.l.b16 %v4014
        %v4087 = vunpack.c.l.b16 %v4015
        %v4088 = vunpack.c.l.b16 %v4016
        %v4089 = vunpack.c.l.b16 %v4017
        %v4090 = vunpack.c.l.b16 %v4018
        %v4091 = vunpack.c.l.b16 %v4019
        %v4092 = vunpack.c.l.b16 %v4020
        %v4093 = vunpack.c.l.b16 %v4021
        %v4094 = vunpack.c.l.b16 %v4022
        %v4095 = vunpack.c.l.b16 %v4023
        %v4096 = vunpack.c.l.b16 %v4024
        %v4097 = vunpack.c.l.b16 %v4025
        %v4098 = vunpack.c.l.b16 %v4026
        %v4099 = vunpack.c.l.b16 %v4027
        %v4100 = vunpack.c.l.b16 %v4028
        %v4101 = vunpack.c.l.b16 %v4029
        %v4102 = vpack.c.b16 %v4071, %v4070
        %v4103 = vpack.c.b16 %v4073, %v4072
        %v4104 = vpack.c.b16 %v4075, %v4074
        %v4105 = vpack.c.b16 %v4077, %v4076
        %v4106 = vpack.c.b16 %v4079, %v4078
        %v4107 = vpack.c.b16 %v4081, %v4080
        %v4108 = vpack.c.b16 %v4083, %v4082
        %v4109 = vpack.c.b16 %v4085, %v4084
        %v4110 = vpack.c.b16 %v4087, %v4086
        %v4111 = vpack.c.b16 %v4089, %v4088
        %v4112 = vpack.c.b16 %v4091, %v4090
        %v4113 = vpack.c.b16 %v4093, %v4092
        %v4114 = vpack.c.b16 %v4095, %v4094
        %v4115 = vpack.c.b16 %v4097, %v4096
        %v4116 = vpack.c.b16 %v4099, %v4098
        %v4117 = vpack.c.b16 %v4101, %v4100
        %4134 = vmatprep.subr.bf16.mxu0 0
        %4135 = vmatpush1.bf16.msra.mxu0 %v4102
        %4136 = vmatprep.subr.bf16.mxu0 0
        %4137 = vmatpush1.bf16.msra.mxu0 %v4103
        %4138 = vmatprep.subr.bf16.mxu0 0
        %4139 = vmatpush1.bf16.msra.mxu0 %v4104
        %4140 = vmatprep.subr.bf16.mxu0 0
        %4141 = vmatpush1.bf16.msra.mxu0 %v4105
        %4142 = vmatprep.subr.bf16.mxu0 0
        %4143 = vmatpush1.bf16.msra.mxu0 %v4106
        %4144 = vmatprep.subr.bf16.mxu0 0
        %4145 = vmatpush1.bf16.msra.mxu0 %v4107
        %4146 = vmatprep.subr.bf16.mxu0 0
        %4147 = vmatpush1.bf16.msra.mxu0 %v4108
        %4148 = vmatprep.subr.bf16.mxu0 0
        %4149 = vmatpush1.bf16.msra.mxu0 %v4109
        %4150 = vmatprep.subr.bf16.mxu0 0
        %4151 = vmatpush1.bf16.msra.mxu0 %v4110
        %4152 = vmatprep.subr.bf16.mxu0 0
        %4153 = vmatpush1.bf16.msra.mxu0 %v4111
        %4154 = vmatprep.subr.bf16.mxu0 0
        %4155 = vmatpush1.bf16.msra.mxu0 %v4112
        %4156 = vmatprep.subr.bf16.mxu0 0
        %4157 = vmatpush1.bf16.msra.mxu0 %v4113
        %4158 = vmatprep.subr.bf16.mxu0 0
        %4159 = vmatpush1.bf16.msra.mxu0 %v4114
        %4160 = vmatprep.subr.bf16.mxu0 0
        %4161 = vmatpush1.bf16.msra.mxu0 %v4115
        %4162 = vmatprep.subr.bf16.mxu0 0
        %4163 = vmatpush1.bf16.msra.mxu0 %v4116
        %4164 = vmatprep.subr.bf16.mxu0 0
        %4165 = vmatpush1.bf16.msra.mxu0 %v4117
        %4166 = vmatprep.mubr.bf16.mxu0 %v3996
        %4167 = vmatmul.mubr.bf16.gmra.mrb[0].mxu0 %v3995
        %v4168 = vpop.f32.mrb[0].mxu0
        %v4169 = vpop.f32.mrb[0].mxu0
        %v4170 = vpop.f32.mrb[0].mxu0
        %v4171 = vadd.f32 %v4036, %v4170
        %v4172 = vpop.f32.mrb[0].mxu0
        %4173 = vdwg.mxu0
        %v4174 = vadd.f32 %v3836, %v4171
        %v4175 = vsel %vm1096, %v4174, 0.0
        %4176 = vadd.xlane.f32.xlu0 %v4175
        %v4177 = vpop.xlane.xlu0 %4176
        %v4178 = vmul.f32 %v4177, %v2039
        %v4179 = vsub.f32 %v4174, %v4178
        %v4180 = vmul.f32 %v4179, %v4179
        %v4181 = vsel %vm1096, %v4180, 0.0
        %4182 = vadd.xlane.f32.xlu0 %v4181
        %v4183 = vpop.xlane.xlu0 %4182
        %v4184 = vmul.f32 %v4183, %v2039
        %v4185 = vadd.f32 %v4184, 1e-05
        %v4186 = vrsqrt.pop %v4185
        %v4187 = vmul.f32 %v4179, %v4186
        %s4188 = scalar_lea.vmem %s15, 1
        %v4189 = vld [vmem:[%s4188] sm:$0x1]
        %v4191 = vlaneseq
        %v4192 = vshrl.u32 %v4191, 7
        %v4193 = vsub.s32 0, %v4192
        %v4194 = vrot.slane %v4189, %v4193
        %v4196 = vmul.f32 %v4187, %v4194
        %s4197 = scalar_lea.vmem %s16, 1
        %v4198 = vld [vmem:[%s4197] sm:$0x1]
        %v4200 = vlaneseq
        %v4201 = vshrl.u32 %v4200, 7
        %v4202 = vsub.s32 0, %v4201
        %v4203 = vrot.slane %v4198, %v4202
        %v4205 = vadd.f32 %v4196, %v4203
        %4206 = vst [vmem:[%s611] sm:$0x1] %v4205
        %s4207 = sand.u32 %s404, 1
        %s4208 = scalar_lea.sflag [#allocation4], %s4207
        %s4209 = sand.u32 %s404, 1
        %s4210 = scalar_lea.vmem [#allocation11], %s4209
        // Predicated region
        $region109: #{tpu_custom_call.1} parent=87 // pred_check
          %p4211 = pneg %p414
        $region110: #{tpu_custom_call.1} parent=87 // pred_check_branch
          %4213 = sbr.rel (%p4211) target = $region112
        $region111: #{tpu_custom_call.1} parent=87 // pred_region
          %s4215 = ssub.s32 16, 16
          %4216 = vsyncadd %s4208, %s4215
          %s4217 = smul.addr %s34, 16
          %s4218 = scalar_lea.hbm %s17, %s4217
          %s4220 = sshll.u32 %s4210, 4
          %s4221 = int_to_ptr.vmem [resolvable:$true] %s4220
          %4223 = dma.vmem_to_hbm [thread:$0]  %s4221, 16, %s4218, %s4208
        $region112: #{tpu_custom_call.1} parent=87 // pred_fallthru
          _
      $region88: #{tpu_custom_call.1} parent=5 // pred_fallthru
        _
      %p4224 = scmp.le.s32.totalorder 2, %s29
      // Predicated region
      $region113: #{tpu_custom_call.1} parent=5 // pred_check
        %p4225 = pneg %p4224
      $region114: #{tpu_custom_call.1} parent=5 // pred_check_branch
        %4227 = sbr.rel (%p4225) target = $region116
      $region115: #{tpu_custom_call.1} parent=5 // pred_region
        %s4228 = ssub.s32 %s29, 2
        // Predicated region
        $region117: #{tpu_custom_call.1} parent=115 // pred_check
          %p4229 = pneg %p420
        $region118: #{tpu_custom_call.1} parent=115 // pred_check_branch
          %4231 = sbr.rel (%p4229) target = $region120
        $region119: #{tpu_custom_call.1} parent=115 // pred_region
          %s4232 = sand.u32 %s405, 1
          %s4233 = scalar_lea.sflag [#allocation4], %s4232
          %s4234 = sand.u32 %s405, 1
          %s4235 = scalar_lea.vmem [#allocation11], %s4234
          %4236 = dma.done %s4233, 16
        $region120: #{tpu_custom_call.1} parent=115 // pred_fallthru
          _
      $region116: #{tpu_custom_call.1} parent=5 // pred_fallthru
        _
    $region6: #{tpu_custom_call.1} parent=1 // loop_footer
      %s33 = sadd.s32 1, %s29
    $region7: #{tpu_custom_call.1} parent=1 // loop_footer_branch
      %28 = sbr.rel target = $region3
    $region8: #{tpu_custom_call.1} parent=1 // loop_exit
      _
    %4237 = vsyncpa [#allocation3], 1
    %s4238 = scalar_lea.sflag [#allocation3], 1
    %4239 = vsyncpa %s4238, 1
    %4240 = vsyncpa [#allocation6], 1
    %4241 = vsyncpa [#allocation9], 1
    %4242 = vsyncpa [#allocation4], 1
    %s4243 = scalar_lea.sflag [#allocation4], 1
    %4244 = vsyncpa %s4243, 1

</llo_original>
